<compile_context>
chip_gen: v6e
topology: v6e:2x2x1
jax: 0.10.0
libtpu: 0.0.40
codegen_flags: <defaults>
</compile_context>

<pallas_src>
import math
import functools
import numpy as np
import jax
import jax.numpy as jnp
from jax.experimental import pallas as pl
from jax.experimental.pallas import tpu as pltpu


def _silu(x):
    return x * jax.nn.sigmoid(x)


# ------------------------------- Pallas kernel --------------------------------
def egcl_kernel(row_s_ref, col_s_ref, row_l_ref, geo_ref,
                h_ref, coord_ref,
                w1s_ref, w1d_ref, w1g_ref, b1_ref, w2_ref, b2_ref,
                lng_ref, lnb_ref,
                wc1_ref, bc1_ref, wc2r_ref,
                wn1h_ref, wn1a_ref, bn1_ref, wn2_ref, bn2_ref,
                h_out_ref, coord_out_ref, acc_ref):
    TE = row_s_ref.shape[0]          # edge-tile size
    N = h_ref.shape[0]               # number of nodes (resident)
    H = w2_ref.shape[1]              # hidden_nf
    t = pl.program_id(0)

    @pl.when(t == 0)
    def _init():
        acc_ref[...] = jnp.zeros_like(acc_ref)

    # ---- per-tile gathers h[row], h[col] as one-hot matmuls on the MXU -------
    lane_n = jax.lax.broadcasted_iota(jnp.int32, (TE, N), 1)
    oh_row = (row_s_ref[...] == lane_n).astype(jnp.float32)          # [TE, N]
    oh_col = (col_s_ref[...] == lane_n).astype(jnp.float32)          # [TE, N]
    h_all = h_ref[...]
    h_row = jnp.dot(oh_row, h_all, preferred_element_type=jnp.float32)   # [TE, F]
    h_col = jnp.dot(oh_col, h_all, preferred_element_type=jnp.float32)   # [TE, F]

    geo = geo_ref[...]                                               # [TE, 16]
    geo12 = geo[:, 0:12]          # [radial, dist, dotp, so3(9)]
    coord_diff = geo[:, 12:15]    # rel_coord

    # ---- edge MLP (heads fused; split weights -> no activation concat) -------
    z1 = (jnp.dot(h_row, w1s_ref[...], preferred_element_type=jnp.float32)
          + jnp.dot(h_col, w1d_ref[...], preferred_element_type=jnp.float32)
          + jnp.dot(geo12, w1g_ref[...], preferred_element_type=jnp.float32)
          + b1_ref[...])
    z1 = _silu(z1)
    z2 = jnp.dot(z1, w2_ref[...], preferred_element_type=jnp.float32) + b2_ref[...]

    # LayerNorm (var = E[x^2] - mu^2 so both reductions issue off z2)
    mu = jnp.mean(z2, axis=-1, keepdims=True)
    var = jnp.mean(z2 * z2, axis=-1, keepdims=True) - mu * mu
    edge_feat = (z2 - mu) * jax.lax.rsqrt(var + 1e-5) * lng_ref[...] + lnb_ref[...]

    # ---- coord MLP; final [H,1] dot done on the VPU (mult + lane reduce) ------
    c1 = _silu(jnp.dot(edge_feat, wc1_ref[...], preferred_element_type=jnp.float32)
               + bc1_ref[...])
    scale = jnp.sum(c1 * wc2r_ref[...], axis=-1, keepdims=True)      # [TE, 1]
    trans = coord_diff * scale                                       # [TE, 3]

    # ---- fused segment-sum: one scat matmul over [edge_feat | trans] ----------
    sub_n = jax.lax.broadcasted_iota(jnp.int32, (N, TE), 0)
    scat = (sub_n == row_l_ref[...]).astype(jnp.float32)             # [N, TE]
    payload = jnp.concatenate([edge_feat, trans], axis=1)            # [TE, H+3]
    acc_ref[...] += jnp.dot(scat, payload, preferred_element_type=jnp.float32)

    # ---- node / coord updates on the last edge tile ---------------------------
    @pl.when(t == pl.num_programs(0) - 1)
    def _finalize():
        agg = acc_ref[:, 0:H]                                        # [N, H]
        coord_out_ref[...] = coord_ref[...] + acc_ref[:, H:H + 3]    # residual coords
        n1 = _silu(jnp.dot(h_ref[...], wn1h_ref[...], preferred_element_type=jnp.float32)
                   + jnp.dot(agg, wn1a_ref[...], preferred_element_type=jnp.float32)
                   + bn1_ref[...])
        h_out_ref[...] = h_ref[...] + (
            jnp.dot(n1, wn2_ref[...], preferred_element_type=jnp.float32) + bn2_ref[...])


# -------------------------- wrapper (layout plumbing) --------------------------
def _edge_geometry(coord, row, col):
    """Lane-packed per-edge geometric slab [E, 16]:
    [radial, dist, dot, so3(9), coord_diff(3), pad]."""
    eps, thr = 1e-8, 1e-6
    x_i, x_k = coord[row], coord[col]
    coord_diff = x_i - x_k
    radial = jnp.sum(coord_diff * coord_diff, axis=-1, keepdims=True)
    dist = jnp.sqrt(radial)
    dotp = jnp.sum(x_i * x_k, axis=-1, keepdims=True)
    rel_n = coord_diff / (dist + eps)
    cp = jnp.cross(x_i, x_k)
    cp_n = cp / (jnp.linalg.norm(cp, axis=1, keepdims=True) + eps)
    a_ik, b_ik = rel_n, cp_n
    c_ik = jnp.cross(rel_n, cp_n)
    bad = ((jnp.linalg.norm(a_ik, axis=1) < thr)
           | (jnp.linalg.norm(b_ik, axis=1) < thr)
           | (jnp.linalg.norm(c_ik, axis=1) < thr))
    so3 = jnp.stack([a_ik, b_ik, c_ik], axis=2).reshape(-1, 9)
    so3 = jnp.where(bad[:, None], jnp.eye(3, dtype=coord.dtype).reshape(9)[None, :], so3)
    pad = jnp.zeros((coord_diff.shape[0], 1), coord.dtype)
    return jnp.concatenate([radial, dist, dotp, so3, coord_diff, pad], axis=1)


def egcl_forward(params, h, edge_index, coord, edge_attr=None, *, edge_tile=128):
    assert edge_attr is None            # edges_in_d = 0 in this instantiation
    N, F = h.shape
    H = params["w2"].shape[1]
    OUT = params["wn2"].shape[1]
    row, col = edge_index
    E = row.shape[0]

    geo = _edge_geometry(coord, row, col)                      # [E, 16]

    # Pad edge axis to a multiple of the tile; padded edges use node id N so
    # their one-hot rows/columns are all-zero (no gather, no scatter contribution).
    TE = edge_tile
    n_tiles = pl.cdiv(E, TE)
    Ep = n_tiles * TE
    pad = Ep - E
    row_p = jnp.concatenate([row.astype(jnp.int32), jnp.full((pad,), N, jnp.int32)])
    col_p = jnp.concatenate([col.astype(jnp.int32), jnp.full((pad,), N, jnp.int32)])
    geo_p = jnp.concatenate([geo, jnp.zeros((pad, geo.shape[1]), geo.dtype)], axis=0)

    row_s = row_p.reshape(Ep, 1)        # edge ids on sublanes (gather one-hots)
    col_s = col_p.reshape(Ep, 1)
    row_l = row_p.reshape(1, Ep)        # edge ids on lanes    (scatter one-hot)

    # Split concatenation-structured weights so the kernel never lane-concats
    # activations: feats@w1 -> hrow@w1_src + hcol@w1_dst + geo@w1_geo ;
    # [h|agg]@wn1 -> h@wn1_h + agg@wn1_agg.
    w1, wn1 = params["w1"], params["wn1"]
    w1_src, w1_dst, w1_geo = w1[:F], w1[F:2 * F], w1[2 * F:2 * F + 12]
    wn1_h, wn1_agg = wn1[:F], wn1[F:]
    wc2_row = params["wc2"].T                                  # [1, H]

    resident = (h, coord, w1_src, w1_dst, w1_geo, params["b1"], params["w2"],
                params["b2"], params["ln_g"], params["ln_b"], params["wc1"],
                params["bc1"], wc2_row, wn1_h, wn1_agg, params["bn1"],
                params["wn2"], params["bn2"])

    def full_spec(arr):
        return pl.BlockSpec(arr.shape, lambda i: (0,) * arr.ndim)

    grid_spec = pltpu.PrefetchScalarGridSpec(
        num_scalar_prefetch=0,
        grid=(n_tiles,),
        in_specs=[pl.BlockSpec((TE, 1), lambda i: (i, 0)),          # row (sublane)
                  pl.BlockSpec((TE, 1), lambda i: (i, 0)),          # col (sublane)
                  pl.BlockSpec((1, TE), lambda i: (0, i)),          # row (lane)
                  pl.BlockSpec((TE, geo_p.shape[1]), lambda i: (i, 0))]  # geo slab
                 + [full_spec(a) for a in resident],
        out_specs=(pl.BlockSpec((N, OUT), lambda i: (0, 0)),        # resident accum.
                   pl.BlockSpec((N, 3), lambda i: (0, 0))),
        scratch_shapes=[pltpu.VMEM((N, H + 3), jnp.float32)],       # fused agg
    )

    h_out, coord_out = pl.pallas_call(
        egcl_kernel,
        out_shape=(jax.ShapeDtypeStruct((N, OUT), jnp.float32),
                   jax.ShapeDtypeStruct((N, 3), jnp.float32)),
        grid_spec=grid_spec,
        compiler_params=pltpu.CompilerParams(
            dimension_semantics=("arbitrary",),        # edge axis is a reduction
            vmem_limit_bytes=32 * 1024 * 1024),        # fits v7x scoped VMEM w/ headroom
    )(row_s, col_s, row_l, geo_p, *resident)
    return h_out, coord_out, edge_attr


# ---------------------------- pure-JAX reference -------------------------------
def egcl_reference(params, h, edge_index, coord):
    eps, thr, ln_eps = 1e-8, 1e-6, 1e-5
    row, col = edge_index
    N = h.shape[0]
    x_i, x_k = coord[row], coord[col]
    coord_diff = x_i - x_k
    radial = jnp.sum(coord_diff ** 2, -1, keepdims=True)
    dist = jnp.sqrt(radial)
    dotp = jnp.sum(x_i * x_k, -1, keepdims=True)
    rel_n = coord_diff / (dist + eps)
    cp = jnp.cross(x_i, x_k)
    cp_n = cp / (jnp.linalg.norm(cp, axis=1, keepdims=True) + eps)
    a_ik, b_ik = rel_n, cp_n
    c_ik = jnp.cross(rel_n, cp_n)
    bad = ((jnp.linalg.norm(a_ik, axis=1) < thr) |
           (jnp.linalg.norm(b_ik, axis=1) < thr) |
           (jnp.linalg.norm(c_ik, axis=1) < thr))
    so3 = jnp.stack([a_ik, b_ik, c_ik], axis=2).reshape(-1, 9)
    so3 = jnp.where(bad[:, None], jnp.eye(3).reshape(9)[None, :], so3)
    feats = jnp.concatenate([h[row], h[col], radial, dist, dotp, so3], axis=1)
    z1 = jax.nn.silu(feats @ params["w1"] + params["b1"])
    z2 = z1 @ params["w2"] + params["b2"]
    mu = z2.mean(-1, keepdims=True)
    var = ((z2 - mu) ** 2).mean(-1, keepdims=True)
    ef = (z2 - mu) * jax.lax.rsqrt(var + ln_eps) * params["ln_g"] + params["ln_b"]
    c1 = jax.nn.silu(ef @ params["wc1"] + params["bc1"])
    trans = coord_diff * (c1 @ params["wc2"])
    coord_out = coord + jax.ops.segment_sum(trans, row, N)
    agg = jax.ops.segment_sum(ef, row, N)
    n1 = jax.nn.silu(jnp.concatenate([h, agg], 1) @ params["wn1"] + params["bn1"])
    h_out = h + (n1 @ params["wn2"] + params["bn2"])
    return h_out, coord_out


# ------------------------------ parameter init ---------------------------------
def make_params(key, input_nf, output_nf, hidden_nf, num_heads):
    feat_dim = input_nf * 2 + 1 + 1 + 1 + 9   # source+target+radial+dist+dot+so3
    hh = hidden_nf // num_heads
    ks = iter(jax.random.split(key, 32))

    def lin(k, fan_in, fan_out, bound=None):
        b = 1.0 / math.sqrt(fan_in) if bound is None else bound
        return jax.random.uniform(k, (fan_in, fan_out), jnp.float32, -b, b)

    # per-head first linears concatenated, per-head second linears block-diag
    w1 = jnp.concatenate([lin(next(ks), feat_dim, hh) for _ in range(num_heads)], axis=1)
    b1 = jnp.concatenate([jax.random.uniform(next(ks), (1, hh), jnp.float32,
                                             -1 / math.sqrt(feat_dim), 1 / math.sqrt(feat_dim))
                          for _ in range(num_heads)], axis=1)
    w2 = jax.scipy.linalg.block_diag(*[lin(next(ks), hh, hh) for _ in range(num_heads)])
    b2 = jnp.concatenate([jax.random.uniform(next(ks), (1, hh), jnp.float32,
                                             -1 / math.sqrt(hh), 1 / math.sqrt(hh))
                          for _ in range(num_heads)], axis=1)
    wc2_bound = 0.001 * math.sqrt(6.0 / (hidden_nf + 1))
    return dict(
        w1=w1, b1=b1, w2=w2.astype(jnp.float32), b2=b2,
        ln_g=jnp.ones((1, hidden_nf), jnp.float32),
        ln_b=jnp.zeros((1, hidden_nf), jnp.float32),
        wn1=lin(next(ks), hidden_nf + input_nf, hidden_nf),
        bn1=jax.random.uniform(next(ks), (1, hidden_nf), jnp.float32,
                               -1 / math.sqrt(hidden_nf + input_nf),
                               1 / math.sqrt(hidden_nf + input_nf)),
        wn2=lin(next(ks), hidden_nf, output_nf),
        bn2=jax.random.uniform(next(ks), (1, output_nf), jnp.float32,
                               -1 / math.sqrt(hidden_nf), 1 / math.sqrt(hidden_nf)),
        wc1=lin(next(ks), hidden_nf, hidden_nf),
        bc1=jax.random.uniform(next(ks), (1, hidden_nf), jnp.float32,
                               -1 / math.sqrt(hidden_nf), 1 / math.sqrt(hidden_nf)),
        wc2=lin(next(ks), hidden_nf, 1, bound=wc2_bound),
    )


if __name__ == "__main__":
    N, input_nf, output_nf, hidden_nf, num_heads = 12, 16, 16, 32, 4

    key = jax.random.PRNGKey(0)
    k_h, k_c, k_p = jax.random.split(key, 3)
    h = jax.random.normal(k_h, (N, input_nf), jnp.float32)
    coord = jax.random.normal(k_c, (N, 3), jnp.float32)

    # fully connected directed graph without self-loops: E = N*(N-1) = 132
    rows, cols = [], []
    for i in range(N):
        for j in range(N):
            if i != j:
                rows.append(i)
                cols.append(j)
    edge_index = (jnp.array(rows, jnp.int32), jnp.array(cols, jnp.int32))

    params = make_params(k_p, input_nf, output_nf, hidden_nf, num_heads)

    fwd = jax.jit(functools.partial(egcl_forward, edge_tile=128))
    h_out, coord_out, _ = fwd(params, h, edge_index, coord, None)   # 2 edge tiles
    jax.block_until_ready((h_out, coord_out))

    h_ref, coord_ref = egcl_reference(params, h, edge_index, coord)
    np.testing.assert_allclose(np.asarray(h_out), np.asarray(h_ref), rtol=1e-4, atol=1e-4)
    np.testing.assert_allclose(np.asarray(coord_out), np.asarray(coord_ref), rtol=1e-4, atol=1e-4)

    print("KERNEL_OK")
</pallas_src>

<mosaic_0001>
module attributes {stable_mosaic.version = 11 : i64} {
  func.func @egcl_kernel(%arg0: i32, %arg1: memref<128x1xi32, #tpu.memory_space<vmem>>, %arg2: memref<128x1xi32, #tpu.memory_space<vmem>>, %arg3: memref<1x128xi32, #tpu.memory_space<vmem>>, %arg4: memref<128x16xf32, #tpu.memory_space<vmem>>, %arg5: memref<12x16xf32, #tpu.memory_space<vmem>>, %arg6: memref<12x3xf32, #tpu.memory_space<vmem>>, %arg7: memref<16x32xf32, #tpu.memory_space<vmem>>, %arg8: memref<16x32xf32, #tpu.memory_space<vmem>>, %arg9: memref<12x32xf32, #tpu.memory_space<vmem>>, %arg10: memref<1x32xf32, #tpu.memory_space<vmem>>, %arg11: memref<32x32xf32, #tpu.memory_space<vmem>>, %arg12: memref<1x32xf32, #tpu.memory_space<vmem>>, %arg13: memref<1x32xf32, #tpu.memory_space<vmem>>, %arg14: memref<1x32xf32, #tpu.memory_space<vmem>>, %arg15: memref<32x32xf32, #tpu.memory_space<vmem>>, %arg16: memref<1x32xf32, #tpu.memory_space<vmem>>, %arg17: memref<1x32xf32, #tpu.memory_space<vmem>>, %arg18: memref<16x32xf32, #tpu.memory_space<vmem>>, %arg19: memref<32x32xf32, #tpu.memory_space<vmem>>, %arg20: memref<1x32xf32, #tpu.memory_space<vmem>>, %arg21: memref<32x16xf32, #tpu.memory_space<vmem>>, %arg22: memref<1x16xf32, #tpu.memory_space<vmem>>, %arg23: memref<12x16xf32, #tpu.memory_space<vmem>>, %arg24: memref<12x3xf32, #tpu.memory_space<vmem>>, %arg25: memref<12x35xf32, #tpu.memory_space<vmem>>) attributes {dimension_semantics = [#tpu.dimension_semantics<arbitrary>], iteration_bounds = array<i64: 2>, scalar_prefetch = 0 : i64, scratch_operands = 1 : i64, tpu.core_type = #tpu.core_type<tc>, window_params = [{transform_indices = @transform_0, window_bounds = array<i64: 128, 1>}, {transform_indices = @transform_1, window_bounds = array<i64: 128, 1>}, {transform_indices = @transform_2, window_bounds = array<i64: 1, 128>}, {transform_indices = @transform_3, window_bounds = array<i64: 128, 16>}, {pipeline_mode = #tpu.pipeline_mode<synchronous>, transform_indices = @transform_4, window_bounds = array<i64: 12, 16>}, {pipeline_mode = #tpu.pipeline_mode<synchronous>, transform_indices = @transform_5, window_bounds = array<i64: 12, 3>}, {pipeline_mode = #tpu.pipeline_mode<synchronous>, transform_indices = @transform_6, window_bounds = array<i64: 16, 32>}, {pipeline_mode = #tpu.pipeline_mode<synchronous>, transform_indices = @transform_7, window_bounds = array<i64: 16, 32>}, {pipeline_mode = #tpu.pipeline_mode<synchronous>, transform_indices = @transform_8, window_bounds = array<i64: 12, 32>}, {pipeline_mode = #tpu.pipeline_mode<synchronous>, transform_indices = @transform_9, window_bounds = array<i64: 1, 32>}, {pipeline_mode = #tpu.pipeline_mode<synchronous>, transform_indices = @transform_10, window_bounds = array<i64: 32, 32>}, {pipeline_mode = #tpu.pipeline_mode<synchronous>, transform_indices = @transform_11, window_bounds = array<i64: 1, 32>}, {pipeline_mode = #tpu.pipeline_mode<synchronous>, transform_indices = @transform_12, window_bounds = array<i64: 1, 32>}, {pipeline_mode = #tpu.pipeline_mode<synchronous>, transform_indices = @transform_13, window_bounds = array<i64: 1, 32>}, {pipeline_mode = #tpu.pipeline_mode<synchronous>, transform_indices = @transform_14, window_bounds = array<i64: 32, 32>}, {pipeline_mode = #tpu.pipeline_mode<synchronous>, transform_indices = @transform_15, window_bounds = array<i64: 1, 32>}, {pipeline_mode = #tpu.pipeline_mode<synchronous>, transform_indices = @transform_16, window_bounds = array<i64: 1, 32>}, {pipeline_mode = #tpu.pipeline_mode<synchronous>, transform_indices = @transform_17, window_bounds = array<i64: 16, 32>}, {pipeline_mode = #tpu.pipeline_mode<synchronous>, transform_indices = @transform_18, window_bounds = array<i64: 32, 32>}, {pipeline_mode = #tpu.pipeline_mode<synchronous>, transform_indices = @transform_19, window_bounds = array<i64: 1, 32>}, {pipeline_mode = #tpu.pipeline_mode<synchronous>, transform_indices = @transform_20, window_bounds = array<i64: 32, 16>}, {pipeline_mode = #tpu.pipeline_mode<synchronous>, transform_indices = @transform_21, window_bounds = array<i64: 1, 16>}, {pipeline_mode = #tpu.pipeline_mode<synchronous>, transform_indices = @transform_22, window_bounds = array<i64: 12, 16>}, {pipeline_mode = #tpu.pipeline_mode<synchronous>, transform_indices = @transform_23, window_bounds = array<i64: 12, 3>}]} {
    %c0_i32 = arith.constant 0 : i32
    %0 = arith.cmpi eq, %arg0, %c0_i32 : i32
    %1 = arith.extui %0 : i1 to i32
    %c0_i32_0 = arith.constant 0 : i32
    %2 = arith.cmpi ne, %1, %c0_i32_0 : i32
    scf.if %2 {
      %cst_52 = arith.constant 0.000000e+00 : f32
      %98 = vector.broadcast %cst_52 : f32 to vector<12x35xf32>
      %c0_53 = arith.constant 0 : index
      %c0_54 = arith.constant 0 : index
      %99 = vector.load %arg25[%c0_53, %c0_54] : memref<12x35xf32, #tpu.memory_space<vmem>>, vector<12x35xf32>
      tpu.vector_store %arg25[%c0_53, %c0_54], %98 {strides = array<i32>} : memref<12x35xf32, #tpu.memory_space<vmem>>, vector<12x35xf32>,
    } else {
    }
    %3 = tpu.iota {dimensions = array<i32: 1>} : vector<128x12xi32>
    %c0 = arith.constant 0 : index
    %c0_1 = arith.constant 0 : index
    %4 = vector.load %arg1[%c0, %c0_1] : memref<128x1xi32, #tpu.memory_space<vmem>>, vector<128x1xi32>
    %5 = vector.broadcast %4 : vector<128x1xi32> to vector<128x12xi32>
    %6 = arith.cmpi eq, %5, %3 : vector<128x12xi32>
    %7 = arith.extui %6 : vector<128x12xi1> to vector<128x12xi32>
    %8 = arith.sitofp %7 : vector<128x12xi32> to vector<128x12xf32>
    %c0_2 = arith.constant 0 : index
    %c0_3 = arith.constant 0 : index
    %9 = vector.load %arg2[%c0_2, %c0_3] : memref<128x1xi32, #tpu.memory_space<vmem>>, vector<128x1xi32>
    %10 = vector.broadcast %9 : vector<128x1xi32> to vector<128x12xi32>
    %11 = arith.cmpi eq, %10, %3 : vector<128x12xi32>
    %12 = arith.extui %11 : vector<128x12xi1> to vector<128x12xi32>
    %13 = arith.sitofp %12 : vector<128x12xi32> to vector<128x12xf32>
    %c0_4 = arith.constant 0 : index
    %c0_5 = arith.constant 0 : index
    %14 = vector.load %arg5[%c0_4, %c0_5] : memref<12x16xf32, #tpu.memory_space<vmem>>, vector<12x16xf32>
    %cst = arith.constant dense<0.000000e+00> : vector<128x16xf32>
    %15 = tpu.matmul %8, %14, %cst {dimension_numbers = #tpu.dot_dimension_numbers<[1], [0], [0], [1], [0, 0, 1, 1], [], []>} : vector<128x12xf32>, vector<12x16xf32>, vector<128x16xf32> -> vector<128x16xf32>
    %cst_6 = arith.constant dense<0.000000e+00> : vector<128x16xf32>
    %16 = tpu.matmul %13, %14, %cst_6 {dimension_numbers = #tpu.dot_dimension_numbers<[1], [0], [0], [1], [0, 0, 1, 1], [], []>} : vector<128x12xf32>, vector<12x16xf32>, vector<128x16xf32> -> vector<128x16xf32>
    %c0_7 = arith.constant 0 : index
    %c0_8 = arith.constant 0 : index
    %17 = vector.load %arg4[%c0_7, %c0_8] : memref<128x16xf32, #tpu.memory_space<vmem>>, vector<128x16xf32>
    %18 = vector.extract_strided_slice %17 {offsets = [0, 0], sizes = [128, 12], strides = [1, 1]} : vector<128x16xf32> to vector<128x12xf32>
    %19 = vector.extract_strided_slice %17 {offsets = [0, 12], sizes = [128, 3], strides = [1, 1]} : vector<128x16xf32> to vector<128x3xf32>
    %c0_9 = arith.constant 0 : index
    %c0_10 = arith.constant 0 : index
    %20 = vector.load %arg7[%c0_9, %c0_10] : memref<16x32xf32, #tpu.memory_space<vmem>>, vector<16x32xf32>
    %cst_11 = arith.constant dense<0.000000e+00> : vector<128x32xf32>
    %21 = tpu.matmul %15, %20, %cst_11 {dimension_numbers = #tpu.dot_dimension_numbers<[1], [0], [0], [1], [0, 0, 1, 1], [], []>} : vector<128x16xf32>, vector<16x32xf32>, vector<128x32xf32> -> vector<128x32xf32>
    %c0_12 = arith.constant 0 : index
    %c0_13 = arith.constant 0 : index
    %22 = vector.load %arg8[%c0_12, %c0_13] : memref<16x32xf32, #tpu.memory_space<vmem>>, vector<16x32xf32>
    %cst_14 = arith.constant dense<0.000000e+00> : vector<128x32xf32>
    %23 = tpu.matmul %16, %22, %cst_14 {dimension_numbers = #tpu.dot_dimension_numbers<[1], [0], [0], [1], [0, 0, 1, 1], [], []>} : vector<128x16xf32>, vector<16x32xf32>, vector<128x32xf32> -> vector<128x32xf32>
    %24 = arith.addf %21, %23 : vector<128x32xf32>
    %c0_15 = arith.constant 0 : index
    %c0_16 = arith.constant 0 : index
    %25 = vector.load %arg9[%c0_15, %c0_16] : memref<12x32xf32, #tpu.memory_space<vmem>>, vector<12x32xf32>
    %cst_17 = arith.constant dense<0.000000e+00> : vector<128x32xf32>
    %26 = tpu.matmul %18, %25, %cst_17 {dimension_numbers = #tpu.dot_dimension_numbers<[1], [0], [0], [1], [0, 0, 1, 1], [], []>} : vector<128x12xf32>, vector<12x32xf32>, vector<128x32xf32> -> vector<128x32xf32>
    %27 = arith.addf %24, %26 : vector<128x32xf32>
    %c0_18 = arith.constant 0 : index
    %c0_19 = arith.constant 0 : index
    %28 = vector.load %arg10[%c0_18, %c0_19] : memref<1x32xf32, #tpu.memory_space<vmem>>, vector<1x32xf32>
    %29 = vector.broadcast %28 : vector<1x32xf32> to vector<128x32xf32>
    %30 = arith.addf %27, %29 : vector<128x32xf32>
    %31 = arith.negf %30 : vector<128x32xf32>
    %32 = math.exp %31 : vector<128x32xf32>
    %cst_20 = arith.constant 1.000000e+00 : f32
    %33 = vector.broadcast %cst_20 : f32 to vector<128x32xf32>
    %34 = arith.addf %33, %32 : vector<128x32xf32>
    %35 = arith.divf %33, %34 : vector<128x32xf32>
    %36 = arith.mulf %30, %35 : vector<128x32xf32>
    %c0_21 = arith.constant 0 : index
    %c0_22 = arith.constant 0 : index
    %37 = vector.load %arg11[%c0_21, %c0_22] : memref<32x32xf32, #tpu.memory_space<vmem>>, vector<32x32xf32>
    %cst_23 = arith.constant dense<0.000000e+00> : vector<128x32xf32>
    %38 = tpu.matmul %36, %37, %cst_23 {dimension_numbers = #tpu.dot_dimension_numbers<[1], [0], [0], [1], [0, 0, 1, 1], [], []>} : vector<128x32xf32>, vector<32x32xf32>, vector<128x32xf32> -> vector<128x32xf32>
    %c0_24 = arith.constant 0 : index
    %c0_25 = arith.constant 0 : index
    %39 = vector.load %arg12[%c0_24, %c0_25] : memref<1x32xf32, #tpu.memory_space<vmem>>, vector<1x32xf32>
    %40 = vector.broadcast %39 : vector<1x32xf32> to vector<128x32xf32>
    %41 = arith.addf %38, %40 : vector<128x32xf32>
    %cst_26 = arith.constant dense<0.000000e+00> : vector<128xf32>
    %42 = vector.multi_reduction <add>, %41, %cst_26 [1] : vector<128x32xf32> to vector<128xf32>
    %43 = vector.shape_cast %42 : vector<128xf32> to vector<128x1xf32>
    %cst_27 = arith.constant 3.200000e+01 : f32
    %44 = vector.broadcast %cst_27 : f32 to vector<128x1xf32>
    %45 = arith.divf %43, %44 : vector<128x1xf32>
    %46 = arith.mulf %41, %41 : vector<128x32xf32>
    %cst_28 = arith.constant dense<0.000000e+00> : vector<128xf32>
    %47 = vector.multi_reduction <add>, %46, %cst_28 [1] : vector<128x32xf32> to vector<128xf32>
    %48 = vector.shape_cast %47 : vector<128xf32> to vector<128x1xf32>
    %cst_29 = arith.constant 3.200000e+01 : f32
    %49 = vector.broadcast %cst_29 : f32 to vector<128x1xf32>
    %50 = arith.divf %48, %49 : vector<128x1xf32>
    %51 = arith.mulf %45, %45 : vector<128x1xf32>
    %52 = arith.subf %50, %51 : vector<128x1xf32>
    %53 = vector.broadcast %45 : vector<128x1xf32> to vector<128x32xf32>
    %54 = arith.subf %41, %53 : vector<128x32xf32>
    %cst_30 = arith.constant 9.99999974E-6 : f32
    %55 = vector.broadcast %cst_30 : f32 to vector<128x1xf32>
    %56 = arith.addf %52, %55 : vector<128x1xf32>
    %57 = math.rsqrt %56 : vector<128x1xf32>
    %58 = vector.broadcast %57 : vector<128x1xf32> to vector<128x32xf32>
    %59 = arith.mulf %54, %58 : vector<128x32xf32>
    %c0_31 = arith.constant 0 : index
    %c0_32 = arith.constant 0 : index
    %60 = vector.load %arg13[%c0_31, %c0_32] : memref<1x32xf32, #tpu.memory_space<vmem>>, vector<1x32xf32>
    %61 = vector.broadcast %60 : vector<1x32xf32> to vector<128x32xf32>
    %62 = arith.mulf %59, %61 : vector<128x32xf32>
    %c0_33 = arith.constant 0 : index
    %c0_34 = arith.constant 0 : index
    %63 = vector.load %arg14[%c0_33, %c0_34] : memref<1x32xf32, #tpu.memory_space<vmem>>, vector<1x32xf32>
    %64 = vector.broadcast %63 : vector<1x32xf32> to vector<128x32xf32>
    %65 = arith.addf %62, %64 : vector<128x32xf32>
    %c0_35 = arith.constant 0 : index
    %c0_36 = arith.constant 0 : index
    %66 = vector.load %arg15[%c0_35, %c0_36] : memref<32x32xf32, #tpu.memory_space<vmem>>, vector<32x32xf32>
    %cst_37 = arith.constant dense<0.000000e+00> : vector<128x32xf32>
    %67 = tpu.matmul %65, %66, %cst_37 {dimension_numbers = #tpu.dot_dimension_numbers<[1], [0], [0], [1], [0, 0, 1, 1], [], []>} : vector<128x32xf32>, vector<32x32xf32>, vector<128x32xf32> -> vector<128x32xf32>
    %c0_38 = arith.constant 0 : index
    %c0_39 = arith.constant 0 : index
    %68 = vector.load %arg16[%c0_38, %c0_39] : memref<1x32xf32, #tpu.memory_space<vmem>>, vector<1x32xf32>
    %69 = vector.broadcast %68 : vector<1x32xf32> to vector<128x32xf32>
    %70 = arith.addf %67, %69 : vector<128x32xf32>
    %71 = arith.negf %70 : vector<128x32xf32>
    %72 = math.exp %71 : vector<128x32xf32>
    %cst_40 = arith.constant 1.000000e+00 : f32
    %73 = vector.broadcast %cst_40 : f32 to vector<128x32xf32>
    %74 = arith.addf %73, %72 : vector<128x32xf32>
    %75 = arith.divf %73, %74 : vector<128x32xf32>
    %76 = arith.mulf %70, %75 : vector<128x32xf32>
    %c0_41 = arith.constant 0 : index
    %c0_42 = arith.constant 0 : index
    %77 = vector.load %arg17[%c0_41, %c0_42] : memref<1x32xf32, #tpu.memory_space<vmem>>, vector<1x32xf32>
    %78 = vector.broadcast %77 : vector<1x32xf32> to vector<128x32xf32>
    %79 = arith.mulf %76, %78 : vector<128x32xf32>
    %cst_43 = arith.constant dense<0.000000e+00> : vector<128xf32>
    %80 = vector.multi_reduction <add>, %79, %cst_43 [1] : vector<128x32xf32> to vector<128xf32>
    %81 = vector.shape_cast %80 : vector<128xf32> to vector<128x1xf32>
    %82 = vector.broadcast %81 : vector<128x1xf32> to vector<128x3xf32>
    %83 = arith.mulf %19, %82 : vector<128x3xf32>
    %84 = tpu.iota {dimensions = array<i32: 0>} : vector<12x128xi32>
    %c0_44 = arith.constant 0 : index
    %c0_45 = arith.constant 0 : index
    %85 = vector.load %arg3[%c0_44, %c0_45] : memref<1x128xi32, #tpu.memory_space<vmem>>, vector<1x128xi32>
    %86 = vector.broadcast %85 : vector<1x128xi32> to vector<12x128xi32>
    %87 = arith.cmpi eq, %84, %86 : vector<12x128xi32>
    %88 = arith.extui %87 : vector<12x128xi1> to vector<12x128xi32>
    %89 = arith.sitofp %88 : vector<12x128xi32> to vector<12x128xf32>
    %90 = tpu.concatenate %65, %83 in 1 : vector<128x32xf32>, vector<128x3xf32> -> vector<128x35xf32>
    %c0_46 = arith.constant 0 : index
    %c0_47 = arith.constant 0 : index
    %91 = vector.load %arg25[%c0_46, %c0_47] : memref<12x35xf32, #tpu.memory_space<vmem>>, vector<12x35xf32>
    %cst_48 = arith.constant dense<0.000000e+00> : vector<12x35xf32>
    %92 = tpu.matmul %89, %90, %cst_48 {dimension_numbers = #tpu.dot_dimension_numbers<[1], [0], [0], [1], [0, 0, 1, 1], [], []>} : vector<12x128xf32>, vector<128x35xf32>, vector<12x35xf32> -> vector<12x35xf32>
    %93 = arith.addf %91, %92 : vector<12x35xf32>
    %c0_49 = arith.constant 0 : index
    %c0_50 = arith.constant 0 : index
    %94 = vector.load %arg25[%c0_49, %c0_50] : memref<12x35xf32, #tpu.memory_space<vmem>>, vector<12x35xf32>
    tpu.vector_store %arg25[%c0_49, %c0_50], %93 {strides = array<i32>} : memref<12x35xf32, #tpu.memory_space<vmem>>, vector<12x35xf32>,
    %c1_i32 = arith.constant 1 : i32
    %95 = arith.cmpi eq, %arg0, %c1_i32 : i32
    %96 = arith.extui %95 : i1 to i32
    %c0_i32_51 = arith.constant 0 : i32
    %97 = arith.cmpi ne, %96, %c0_i32_51 : i32
    scf.if %97 {
      %c0_52 = arith.constant 0 : index
      %c0_53 = arith.constant 0 : index
      %98 = vector.load %arg25[%c0_52, %c0_53] : memref<12x35xf32, #tpu.memory_space<vmem>>, vector<12x32xf32>
      %c0_54 = arith.constant 0 : index
      %c0_55 = arith.constant 0 : index
      %99 = vector.load %arg6[%c0_54, %c0_55] : memref<12x3xf32, #tpu.memory_space<vmem>>, vector<12x3xf32>
      %c0_56 = arith.constant 0 : index
      %c32 = arith.constant 32 : index
      %100 = vector.load %arg25[%c0_56, %c32] : memref<12x35xf32, #tpu.memory_space<vmem>>, vector<12x3xf32>
      %101 = arith.addf %99, %100 : vector<12x3xf32>
      %c0_57 = arith.constant 0 : index
      %c0_58 = arith.constant 0 : index
      %102 = vector.load %arg24[%c0_57, %c0_58] : memref<12x3xf32, #tpu.memory_space<vmem>>, vector<12x3xf32>
      tpu.vector_store %arg24[%c0_57, %c0_58], %101 {strides = array<i32>} : memref<12x3xf32, #tpu.memory_space<vmem>>, vector<12x3xf32>,
      %c0_59 = arith.constant 0 : index
      %c0_60 = arith.constant 0 : index
      %103 = vector.load %arg5[%c0_59, %c0_60] : memref<12x16xf32, #tpu.memory_space<vmem>>, vector<12x16xf32>
      %c0_61 = arith.constant 0 : index
      %c0_62 = arith.constant 0 : index
      %104 = vector.load %arg18[%c0_61, %c0_62] : memref<16x32xf32, #tpu.memory_space<vmem>>, vector<16x32xf32>
      %cst_63 = arith.constant dense<0.000000e+00> : vector<12x32xf32>
      %105 = tpu.matmul %103, %104, %cst_63 {dimension_numbers = #tpu.dot_dimension_numbers<[1], [0], [0], [1], [0, 0, 1, 1], [], []>} : vector<12x16xf32>, vector<16x32xf32>, vector<12x32xf32> -> vector<12x32xf32>
      %c0_64 = arith.constant 0 : index
      %c0_65 = arith.constant 0 : index
      %106 = vector.load %arg19[%c0_64, %c0_65] : memref<32x32xf32, #tpu.memory_space<vmem>>, vector<32x32xf32>
      %cst_66 = arith.constant dense<0.000000e+00> : vector<12x32xf32>
      %107 = tpu.matmul %98, %106, %cst_66 {dimension_numbers = #tpu.dot_dimension_numbers<[1], [0], [0], [1], [0, 0, 1, 1], [], []>} : vector<12x32xf32>, vector<32x32xf32>, vector<12x32xf32> -> vector<12x32xf32>
      %108 = arith.addf %105, %107 : vector<12x32xf32>
      %c0_67 = arith.constant 0 : index
      %c0_68 = arith.constant 0 : index
      %109 = vector.load %arg20[%c0_67, %c0_68] : memref<1x32xf32, #tpu.memory_space<vmem>>, vector<1x32xf32>
      %110 = vector.broadcast %109 : vector<1x32xf32> to vector<12x32xf32>
      %111 = arith.addf %108, %110 : vector<12x32xf32>
      %112 = arith.negf %111 : vector<12x32xf32>
      %113 = math.exp %112 : vector<12x32xf32>
      %cst_69 = arith.constant 1.000000e+00 : f32
      %114 = vector.broadcast %cst_69 : f32 to vector<12x32xf32>
      %115 = arith.addf %114, %113 : vector<12x32xf32>
      %116 = arith.divf %114, %115 : vector<12x32xf32>
      %117 = arith.mulf %111, %116 : vector<12x32xf32>
      %c0_70 = arith.constant 0 : index
      %c0_71 = arith.constant 0 : index
      %118 = vector.load %arg5[%c0_70, %c0_71] : memref<12x16xf32, #tpu.memory_space<vmem>>, vector<12x16xf32>
      %c0_72 = arith.constant 0 : index
      %c0_73 = arith.constant 0 : index
      %119 = vector.load %arg21[%c0_72, %c0_73] : memref<32x16xf32, #tpu.memory_space<vmem>>, vector<32x16xf32>
      %cst_74 = arith.constant dense<0.000000e+00> : vector<12x16xf32>
      %120 = tpu.matmul %117, %119, %cst_74 {dimension_numbers = #tpu.dot_dimension_numbers<[1], [0], [0], [1], [0, 0, 1, 1], [], []>} : vector<12x32xf32>, vector<32x16xf32>, vector<12x16xf32> -> vector<12x16xf32>
      %c0_75 = arith.constant 0 : index
      %c0_76 = arith.constant 0 : index
      %121 = vector.load %arg22[%c0_75, %c0_76] : memref<1x16xf32, #tpu.memory_space<vmem>>, vector<1x16xf32>
      %122 = vector.broadcast %121 : vector<1x16xf32> to vector<12x16xf32>
      %123 = arith.addf %120, %122 : vector<12x16xf32>
      %124 = arith.addf %118, %123 : vector<12x16xf32>
      %c0_77 = arith.constant 0 : index
      %c0_78 = arith.constant 0 : index
      %125 = vector.load %arg23[%c0_77, %c0_78] : memref<12x16xf32, #tpu.memory_space<vmem>>, vector<12x16xf32>
      tpu.vector_store %arg23[%c0_77, %c0_78], %124 {strides = array<i32>} : memref<12x16xf32, #tpu.memory_space<vmem>>, vector<12x16xf32>,
    } else {
    }
    return
  }
  func.func @transform_0(%arg0: i32) -> (i32, i32) {
    %c0_i32 = arith.constant 0 : i32
    %c0_i32_0 = arith.constant 0 : i32
    return %arg0, %c0_i32 : i32, i32
  }
  func.func @transform_1(%arg0: i32) -> (i32, i32) {
    %c0_i32 = arith.constant 0 : i32
    %c0_i32_0 = arith.constant 0 : i32
    return %arg0, %c0_i32 : i32, i32
  }
  func.func @transform_2(%arg0: i32) -> (i32, i32) {
    %c0_i32 = arith.constant 0 : i32
    %c0_i32_0 = arith.constant 0 : i32
    return %c0_i32, %arg0 : i32, i32
  }
  func.func @transform_3(%arg0: i32) -> (i32, i32) {
    %c0_i32 = arith.constant 0 : i32
    %c0_i32_0 = arith.constant 0 : i32
    return %arg0, %c0_i32 : i32, i32
  }
  func.func @transform_4(%arg0: i32) -> (i32, i32) {
    %c0_i32 = arith.constant 0 : i32
    %c0_i32_0 = arith.constant 0 : i32
    %c0_i32_1 = arith.constant 0 : i32
    return %c0_i32, %c0_i32_0 : i32, i32
  }
  func.func @transform_5(%arg0: i32) -> (i32, i32) {
    %c0_i32 = arith.constant 0 : i32
    %c0_i32_0 = arith.constant 0 : i32
    %c0_i32_1 = arith.constant 0 : i32
    return %c0_i32, %c0_i32_0 : i32, i32
  }
  func.func @transform_6(%arg0: i32) -> (i32, i32) {
    %c0_i32 = arith.constant 0 : i32
    %c0_i32_0 = arith.constant 0 : i32
    %c0_i32_1 = arith.constant 0 : i32
    return %c0_i32, %c0_i32_0 : i32, i32
  }
  func.func @transform_7(%arg0: i32) -> (i32, i32) {
    %c0_i32 = arith.constant 0 : i32
    %c0_i32_0 = arith.constant 0 : i32
    %c0_i32_1 = arith.constant 0 : i32
    return %c0_i32, %c0_i32_0 : i32, i32
  }
  func.func @transform_8(%arg0: i32) -> (i32, i32) {
    %c0_i32 = arith.constant 0 : i32
    %c0_i32_0 = arith.constant 0 : i32
    %c0_i32_1 = arith.constant 0 : i32
    return %c0_i32, %c0_i32_0 : i32, i32
  }
  func.func @transform_9(%arg0: i32) -> (i32, i32) {
    %c0_i32 = arith.constant 0 : i32
    %c0_i32_0 = arith.constant 0 : i32
    %c0_i32_1 = arith.constant 0 : i32
    return %c0_i32, %c0_i32_0 : i32, i32
  }
  func.func @transform_10(%arg0: i32) -> (i32, i32) {
    %c0_i32 = arith.constant 0 : i32
    %c0_i32_0 = arith.constant 0 : i32
    %c0_i32_1 = arith.constant 0 : i32
    return %c0_i32, %c0_i32_0 : i32, i32
  }
  func.func @transform_11(%arg0: i32) -> (i32, i32) {
    %c0_i32 = arith.constant 0 : i32
    %c0_i32_0 = arith.constant 0 : i32
    %c0_i32_1 = arith.constant 0 : i32
    return %c0_i32, %c0_i32_0 : i32, i32
  }
  func.func @transform_12(%arg0: i32) -> (i32, i32) {
    %c0_i32 = arith.constant 0 : i32
    %c0_i32_0 = arith.constant 0 : i32
    %c0_i32_1 = arith.constant 0 : i32
    return %c0_i32, %c0_i32_0 : i32, i32
  }
  func.func @transform_13(%arg0: i32) -> (i32, i32) {
    %c0_i32 = arith.constant 0 : i32
    %c0_i32_0 = arith.constant 0 : i32
    %c0_i32_1 = arith.constant 0 : i32
    return %c0_i32, %c0_i32_0 : i32, i32
  }
  func.func @transform_14(%arg0: i32) -> (i32, i32) {
    %c0_i32 = arith.constant 0 : i32
    %c0_i32_0 = arith.constant 0 : i32
    %c0_i32_1 = arith.constant 0 : i32
    return %c0_i32, %c0_i32_0 : i32, i32
  }
  func.func @transform_15(%arg0: i32) -> (i32, i32) {
    %c0_i32 = arith.constant 0 : i32
    %c0_i32_0 = arith.constant 0 : i32
    %c0_i32_1 = arith.constant 0 : i32
    return %c0_i32, %c0_i32_0 : i32, i32
  }
  func.func @transform_16(%arg0: i32) -> (i32, i32) {
    %c0_i32 = arith.constant 0 : i32
    %c0_i32_0 = arith.constant 0 : i32
    %c0_i32_1 = arith.constant 0 : i32
    return %c0_i32, %c0_i32_0 : i32, i32
  }
  func.func @transform_17(%arg0: i32) -> (i32, i32) {
    %c0_i32 = arith.constant 0 : i32
    %c0_i32_0 = arith.constant 0 : i32
    %c0_i32_1 = arith.constant 0 : i32
    return %c0_i32, %c0_i32_0 : i32, i32
  }
  func.func @transform_18(%arg0: i32) -> (i32, i32) {
    %c0_i32 = arith.constant 0 : i32
    %c0_i32_0 = arith.constant 0 : i32
    %c0_i32_1 = arith.constant 0 : i32
    return %c0_i32, %c0_i32_0 : i32, i32
  }
  func.func @transform_19(%arg0: i32) -> (i32, i32) {
    %c0_i32 = arith.constant 0 : i32
    %c0_i32_0 = arith.constant 0 : i32
    %c0_i32_1 = arith.constant 0 : i32
    return %c0_i32, %c0_i32_0 : i32, i32
  }
  func.func @transform_20(%arg0: i32) -> (i32, i32) {
    %c0_i32 = arith.constant 0 : i32
    %c0_i32_0 = arith.constant 0 : i32
    %c0_i32_1 = arith.constant 0 : i32
    return %c0_i32, %c0_i32_0 : i32, i32
  }
  func.func @transform_21(%arg0: i32) -> (i32, i32) {
    %c0_i32 = arith.constant 0 : i32
    %c0_i32_0 = arith.constant 0 : i32
    %c0_i32_1 = arith.constant 0 : i32
    return %c0_i32, %c0_i32_0 : i32, i32
  }
  func.func @transform_22(%arg0: i32) -> (i32, i32) {
    %c0_i32 = arith.constant 0 : i32
    %c0_i32_0 = arith.constant 0 : i32
    %c0_i32_1 = arith.constant 0 : i32
    return %c0_i32, %c0_i32_0 : i32, i32
  }
  func.func @transform_23(%arg0: i32) -> (i32, i32) {
    %c0_i32 = arith.constant 0 : i32
    %c0_i32_0 = arith.constant 0 : i32
    %c0_i32_1 = arith.constant 0 : i32
    return %c0_i32, %c0_i32_0 : i32, i32
  }
}

</mosaic_0001>

<llo_original>
// kernel: egcl_forward.1
$region0: #{egcl_forward.1}
  #allocation0 [shape = 'u32[]', space=smem, size = 0x4, offset = 0x4, fixed_abs, tag = 'smem constant byte address 0x4 - core index']
  #allocation1 [shape = 'u32[144,128]{1,0:T(1,128)}', space=vmem, size = 0x12000, scoped, tag = 'internal scratch']
  #allocation2 [shape = 'f32[12,35]{1,0:T(8,128)}', space=vmem, size = 0x2000, scoped, tag = 'scratch operand']
  %s0 = inlined_call_operand.vmem [shape: s32[256,1], index: 0, kind: input, shape index: {}]
  %s1 = inlined_call_operand.vmem [shape: s32[256,1], index: 1, kind: input, shape index: {}]
  %s2 = inlined_call_operand.vmem [shape: s32[1,256], index: 2, kind: input, shape index: {}]
  %s3 = inlined_call_operand.vmem [shape: f32[256,16], index: 3, kind: input, shape index: {}]
  %s4 = inlined_call_operand.vmem [shape: f32[12,16], index: 4, kind: input, shape index: {}]
  %s5 = inlined_call_operand.vmem [shape: f32[12,3], index: 5, kind: input, shape index: {}]
  %s6 = inlined_call_operand.vmem [shape: f32[16,32], index: 6, kind: input, shape index: {}]
  %s7 = inlined_call_operand.vmem [shape: f32[16,32], index: 7, kind: input, shape index: {}]
  %s8 = inlined_call_operand.vmem [shape: f32[12,32], index: 8, kind: input, shape index: {}]
  %s9 = inlined_call_operand.vmem [shape: f32[1,32], index: 9, kind: input, shape index: {}]
  %s10 = inlined_call_operand.vmem [shape: f32[32,32], index: 10, kind: input, shape index: {}]
  %s11 = inlined_call_operand.vmem [shape: f32[1,32], index: 11, kind: input, shape index: {}]
  %s12 = inlined_call_operand.vmem [shape: f32[1,32], index: 12, kind: input, shape index: {}]
  %s13 = inlined_call_operand.vmem [shape: f32[1,32], index: 13, kind: input, shape index: {}]
  %s14 = inlined_call_operand.vmem [shape: f32[32,32], index: 14, kind: input, shape index: {}]
  %s15 = inlined_call_operand.vmem [shape: f32[1,32], index: 15, kind: input, shape index: {}]
  %s16 = inlined_call_operand.vmem [shape: f32[1,32], index: 16, kind: input, shape index: {}]
  %s17 = inlined_call_operand.vmem [shape: f32[16,32], index: 17, kind: input, shape index: {}]
  %s18 = inlined_call_operand.vmem [shape: f32[32,32], index: 18, kind: input, shape index: {}]
  %s19 = inlined_call_operand.vmem [shape: f32[1,32], index: 19, kind: input, shape index: {}]
  %s20 = inlined_call_operand.vmem [shape: f32[32,16], index: 20, kind: input, shape index: {}]
  %s21 = inlined_call_operand.vmem [shape: f32[1,16], index: 21, kind: input, shape index: {}]
  %s22 = inlined_call_operand.hbm [shape: f32[12,16], index: 22, kind: output, shape index: {0}]
  %s23 = inlined_call_operand.vmem [shape: f32[12,3], index: 23, kind: output, shape index: {1}]
  %24 = xla_tuple %s22, %s23
  %s25 = sld [smem:[#allocation0]]
  $region137: #{egcl_forward.1} parent=0
    _
  %s27 = ssub.s32 1, %s25
  %s28 = scalar_select 0, %s27, %s25
  $region1: #{egcl_forward.1} parent=0
    #allocation3 [shape = 'u8[8192]{0}', space=vmem, size = 0x2000, scoped, tag = 'output window, operand 0, single buffered']
    #allocation4 [shape = 's32[2]{0}', space=sflag, size = 0x8, scoped, tag = 'scoped memory for egcl_forward.1']
    %29 = vsyncpa [#allocation4], 0
    loop: start=0, step=1, limit=4
    $region2: #{egcl_forward.1} parent=1 // loop_pre_header
      _
    $region3: #{egcl_forward.1} parent=1 // loop_header
      %s31 = sphi 0, %s35
      %p32 = scmp.ge.s32.totalorder %s31, 4
      %s41 = sphi 0, %s43
      %s44 = sphi 0, %s41
      %s45 = sphi 0, %s44
      %s61 = sphi 0, %s45
      %s67 = sphi 0, %s69
      %s70 = sphi 0, %s67
      %s71 = sphi 0, %s70
      %s87 = sphi 0, %s71
      %s93 = sphi 0, %s95
      %s96 = sphi 0, %s93
      %s97 = sphi 0, %s96
      %s113 = sphi 0, %s97
      %s119 = sphi 0, %s121
      %s122 = sphi 0, %s119
      %s123 = sphi 0, %s122
      %s139 = sphi 0, %s123
      %s143 = sphi 0, %s143
      %s145 = sphi 0, %s143
      %s146 = sphi 0, %s145
      %s160 = sphi 0, %s146
      %s164 = sphi 0, %s164
      %s166 = sphi 0, %s164
      %s167 = sphi 0, %s166
      %s181 = sphi 0, %s167
      %s185 = sphi 0, %s185
      %s187 = sphi 0, %s185
      %s188 = sphi 0, %s187
      %s202 = sphi 0, %s188
      %s206 = sphi 0, %s206
      %s208 = sphi 0, %s206
      %s209 = sphi 0, %s208
      %s223 = sphi 0, %s209
      %s227 = sphi 0, %s227
      %s229 = sphi 0, %s227
      %s230 = sphi 0, %s229
      %s244 = sphi 0, %s230
      %s248 = sphi 0, %s248
      %s250 = sphi 0, %s248
      %s251 = sphi 0, %s250
      %s265 = sphi 0, %s251
      %s269 = sphi 0, %s269
      %s271 = sphi 0, %s269
      %s272 = sphi 0, %s271
      %s286 = sphi 0, %s272
      %s290 = sphi 0, %s290
      %s292 = sphi 0, %s290
      %s293 = sphi 0, %s292
      %s307 = sphi 0, %s293
      %s311 = sphi 0, %s311
      %s313 = sphi 0, %s311
      %s314 = sphi 0, %s313
      %s328 = sphi 0, %s314
      %s332 = sphi 0, %s332
      %s334 = sphi 0, %s332
      %s335 = sphi 0, %s334
      %s349 = sphi 0, %s335
      %s353 = sphi 0, %s353
      %s355 = sphi 0, %s353
      %s356 = sphi 0, %s355
      %s370 = sphi 0, %s356
      %s374 = sphi 0, %s374
      %s376 = sphi 0, %s374
      %s377 = sphi 0, %s376
      %s391 = sphi 0, %s377
      %s395 = sphi 0, %s395
      %s397 = sphi 0, %s395
      %s398 = sphi 0, %s397
      %s412 = sphi 0, %s398
      %s416 = sphi 0, %s416
      %s418 = sphi 0, %s416
      %s419 = sphi 0, %s418
      %s433 = sphi 0, %s419
      %s437 = sphi 0, %s437
      %s439 = sphi 0, %s437
      %s440 = sphi 0, %s439
      %s454 = sphi 0, %s440
      %s458 = sphi 0, %s458
      %s460 = sphi 0, %s458
      %s461 = sphi 0, %s460
      %s475 = sphi 0, %s461
      %s479 = sphi 0, %s479
      %s481 = sphi 0, %s479
      %s482 = sphi 0, %s481
      %s496 = sphi 0, %s482
      %s500 = sphi 0, %s500
      %s502 = sphi 0, %s500
      %s503 = sphi 0, %s502
      %s517 = sphi 0, %s503
      %s521 = sphi 0, %s521
      %s523 = sphi 0, %s521
      %s524 = sphi 0, %s523
      %s538 = sphi 0, %s524
      %s542 = sphi 0, %s542
      %s544 = sphi 0, %s542
      %s545 = sphi 0, %s544
      %s559 = sphi 0, %s545
    $region4: #{egcl_forward.1} parent=1 // loop_header_branch
      %34 = sbr.rel (%p32) target = $region8
    $region5: #{egcl_forward.1} parent=1 // loop_body
      %s36 = ssub.s32 %s31, 1
      %s37 = ssub.s32 %s31, 2
      %s38 = sadd.s32 %s31, 1
      %s39 = ssub.s32 %s31, %s38
      %p40 = scmp.eq.s32.totalorder %s39, 0
      %s42 = sadd.s32 %s41, 1
      %s43 = scalar_select %p40, %s41, %s42
      %p46 = pneg %p40
      %p47 = scmp.eq.s32.totalorder %s31, 1
      %p48 = por %p46, %p47
      %p49 = scmp.ne.s32.totalorder %s41, %s44
      %p50 = scmp.eq.s32.totalorder %s31, 0
      %p51 = por %p49, %p50
      %p52 = scmp.ne.s32.totalorder %s41, %s44
      %p53 = scmp.eq.s32.totalorder %s36, 1
      %p54 = por %p52, %p53
      %p55 = scmp.ne.s32.totalorder %s44, %s45
      %p56 = scmp.eq.s32.totalorder %s36, 0
      %p57 = por %p55, %p56
      %p58 = scmp.ne.s32.totalorder %s44, %s45
      %p59 = scmp.eq.s32.totalorder %s37, 1
      %p60 = por %p58, %p59
      %p62 = scmp.ne.s32.totalorder %s45, %s61
      %p63 = scmp.eq.s32.totalorder %s37, 0
      %p64 = por %p62, %p63
      %s65 = ssub.s32 %s31, %s38
      %p66 = scmp.eq.s32.totalorder %s65, 0
      %s68 = sadd.s32 %s67, 1
      %s69 = scalar_select %p66, %s67, %s68
      %p72 = pneg %p66
      %p73 = scmp.eq.s32.totalorder %s31, 1
      %p74 = por %p72, %p73
      %p75 = scmp.ne.s32.totalorder %s67, %s70
      %p76 = scmp.eq.s32.totalorder %s31, 0
      %p77 = por %p75, %p76
      %p78 = scmp.ne.s32.totalorder %s67, %s70
      %p79 = scmp.eq.s32.totalorder %s36, 1
      %p80 = por %p78, %p79
      %p81 = scmp.ne.s32.totalorder %s70, %s71
      %p82 = scmp.eq.s32.totalorder %s36, 0
      %p83 = por %p81, %p82
      %p84 = scmp.ne.s32.totalorder %s70, %s71
      %p85 = scmp.eq.s32.totalorder %s37, 1
      %p86 = por %p84, %p85
      %p88 = scmp.ne.s32.totalorder %s71, %s87
      %p89 = scmp.eq.s32.totalorder %s37, 0
      %p90 = por %p88, %p89
      %s91 = ssub.s32 %s31, %s38
      %p92 = scmp.eq.s32.totalorder %s91, 0
      %s94 = sadd.s32 %s93, 1
      %s95 = scalar_select %p92, %s93, %s94
      %p98 = pneg %p92
      %p99 = scmp.eq.s32.totalorder %s31, 1
      %p100 = por %p98, %p99
      %p101 = scmp.ne.s32.totalorder %s93, %s96
      %p102 = scmp.eq.s32.totalorder %s31, 0
      %p103 = por %p101, %p102
      %p104 = scmp.ne.s32.totalorder %s93, %s96
      %p105 = scmp.eq.s32.totalorder %s36, 1
      %p106 = por %p104, %p105
      %p107 = scmp.ne.s32.totalorder %s96, %s97
      %p108 = scmp.eq.s32.totalorder %s36, 0
      %p109 = por %p107, %p108
      %p110 = scmp.ne.s32.totalorder %s96, %s97
      %p111 = scmp.eq.s32.totalorder %s37, 1
      %p112 = por %p110, %p111
      %p114 = scmp.ne.s32.totalorder %s97, %s113
      %p115 = scmp.eq.s32.totalorder %s37, 0
      %p116 = por %p114, %p115
      %s117 = ssub.s32 %s31, %s38
      %p118 = scmp.eq.s32.totalorder %s117, 0
      %s120 = sadd.s32 %s119, 1
      %s121 = scalar_select %p118, %s119, %s120
      %p124 = pneg %p118
      %p125 = scmp.eq.s32.totalorder %s31, 1
      %p126 = por %p124, %p125
      %p127 = scmp.ne.s32.totalorder %s119, %s122
      %p128 = scmp.eq.s32.totalorder %s31, 0
      %p129 = por %p127, %p128
      %p130 = scmp.ne.s32.totalorder %s119, %s122
      %p131 = scmp.eq.s32.totalorder %s36, 1
      %p132 = por %p130, %p131
      %p133 = scmp.ne.s32.totalorder %s122, %s123
      %p134 = scmp.eq.s32.totalorder %s36, 0
      %p135 = por %p133, %p134
      %p136 = scmp.ne.s32.totalorder %s122, %s123
      %p137 = scmp.eq.s32.totalorder %s37, 1
      %p138 = por %p136, %p137
      %p140 = scmp.ne.s32.totalorder %s123, %s139
      %p141 = scmp.eq.s32.totalorder %s37, 0
      %p142 = por %p140, %p141
      %s144 = sadd.s32 %s143, 1
      %p147 = scmp.eq.s32.totalorder %s31, 1
      %p148 = scmp.ne.s32.totalorder %s143, %s145
      %p149 = scmp.eq.s32.totalorder %s31, 0
      %p150 = por %p148, %p149
      %p151 = scmp.ne.s32.totalorder %s143, %s145
      %p152 = scmp.eq.s32.totalorder %s36, 1
      %p153 = por %p151, %p152
      %p154 = scmp.ne.s32.totalorder %s145, %s146
      %p155 = scmp.eq.s32.totalorder %s36, 0
      %p156 = por %p154, %p155
      %p157 = scmp.ne.s32.totalorder %s145, %s146
      %p158 = scmp.eq.s32.totalorder %s37, 1
      %p159 = por %p157, %p158
      %p161 = scmp.ne.s32.totalorder %s146, %s160
      %p162 = scmp.eq.s32.totalorder %s37, 0
      %p163 = por %p161, %p162
      %s165 = sadd.s32 %s164, 1
      %p168 = scmp.eq.s32.totalorder %s31, 1
      %p169 = scmp.ne.s32.totalorder %s164, %s166
      %p170 = scmp.eq.s32.totalorder %s31, 0
      %p171 = por %p169, %p170
      %p172 = scmp.ne.s32.totalorder %s164, %s166
      %p173 = scmp.eq.s32.totalorder %s36, 1
      %p174 = por %p172, %p173
      %p175 = scmp.ne.s32.totalorder %s166, %s167
      %p176 = scmp.eq.s32.totalorder %s36, 0
      %p177 = por %p175, %p176
      %p178 = scmp.ne.s32.totalorder %s166, %s167
      %p179 = scmp.eq.s32.totalorder %s37, 1
      %p180 = por %p178, %p179
      %p182 = scmp.ne.s32.totalorder %s167, %s181
      %p183 = scmp.eq.s32.totalorder %s37, 0
      %p184 = por %p182, %p183
      %s186 = sadd.s32 %s185, 1
      %p189 = scmp.eq.s32.totalorder %s31, 1
      %p190 = scmp.ne.s32.totalorder %s185, %s187
      %p191 = scmp.eq.s32.totalorder %s31, 0
      %p192 = por %p190, %p191
      %p193 = scmp.ne.s32.totalorder %s185, %s187
      %p194 = scmp.eq.s32.totalorder %s36, 1
      %p195 = por %p193, %p194
      %p196 = scmp.ne.s32.totalorder %s187, %s188
      %p197 = scmp.eq.s32.totalorder %s36, 0
      %p198 = por %p196, %p197
      %p199 = scmp.ne.s32.totalorder %s187, %s188
      %p200 = scmp.eq.s32.totalorder %s37, 1
      %p201 = por %p199, %p200
      %p203 = scmp.ne.s32.totalorder %s188, %s202
      %p204 = scmp.eq.s32.totalorder %s37, 0
      %p205 = por %p203, %p204
      %s207 = sadd.s32 %s206, 1
      %p210 = scmp.eq.s32.totalorder %s31, 1
      %p211 = scmp.ne.s32.totalorder %s206, %s208
      %p212 = scmp.eq.s32.totalorder %s31, 0
      %p213 = por %p211, %p212
      %p214 = scmp.ne.s32.totalorder %s206, %s208
      %p215 = scmp.eq.s32.totalorder %s36, 1
      %p216 = por %p214, %p215
      %p217 = scmp.ne.s32.totalorder %s208, %s209
      %p218 = scmp.eq.s32.totalorder %s36, 0
      %p219 = por %p217, %p218
      %p220 = scmp.ne.s32.totalorder %s208, %s209
      %p221 = scmp.eq.s32.totalorder %s37, 1
      %p222 = por %p220, %p221
      %p224 = scmp.ne.s32.totalorder %s209, %s223
      %p225 = scmp.eq.s32.totalorder %s37, 0
      %p226 = por %p224, %p225
      %s228 = sadd.s32 %s227, 1
      %p231 = scmp.eq.s32.totalorder %s31, 1
      %p232 = scmp.ne.s32.totalorder %s227, %s229
      %p233 = scmp.eq.s32.totalorder %s31, 0
      %p234 = por %p232, %p233
      %p235 = scmp.ne.s32.totalorder %s227, %s229
      %p236 = scmp.eq.s32.totalorder %s36, 1
      %p237 = por %p235, %p236
      %p238 = scmp.ne.s32.totalorder %s229, %s230
      %p239 = scmp.eq.s32.totalorder %s36, 0
      %p240 = por %p238, %p239
      %p241 = scmp.ne.s32.totalorder %s229, %s230
      %p242 = scmp.eq.s32.totalorder %s37, 1
      %p243 = por %p241, %p242
      %p245 = scmp.ne.s32.totalorder %s230, %s244
      %p246 = scmp.eq.s32.totalorder %s37, 0
      %p247 = por %p245, %p246
      %s249 = sadd.s32 %s248, 1
      %p252 = scmp.eq.s32.totalorder %s31, 1
      %p253 = scmp.ne.s32.totalorder %s248, %s250
      %p254 = scmp.eq.s32.totalorder %s31, 0
      %p255 = por %p253, %p254
      %p256 = scmp.ne.s32.totalorder %s248, %s250
      %p257 = scmp.eq.s32.totalorder %s36, 1
      %p258 = por %p256, %p257
      %p259 = scmp.ne.s32.totalorder %s250, %s251
      %p260 = scmp.eq.s32.totalorder %s36, 0
      %p261 = por %p259, %p260
      %p262 = scmp.ne.s32.totalorder %s250, %s251
      %p263 = scmp.eq.s32.totalorder %s37, 1
      %p264 = por %p262, %p263
      %p266 = scmp.ne.s32.totalorder %s251, %s265
      %p267 = scmp.eq.s32.totalorder %s37, 0
      %p268 = por %p266, %p267
      %s270 = sadd.s32 %s269, 1
      %p273 = scmp.eq.s32.totalorder %s31, 1
      %p274 = scmp.ne.s32.totalorder %s269, %s271
      %p275 = scmp.eq.s32.totalorder %s31, 0
      %p276 = por %p274, %p275
      %p277 = scmp.ne.s32.totalorder %s269, %s271
      %p278 = scmp.eq.s32.totalorder %s36, 1
      %p279 = por %p277, %p278
      %p280 = scmp.ne.s32.totalorder %s271, %s272
      %p281 = scmp.eq.s32.totalorder %s36, 0
      %p282 = por %p280, %p281
      %p283 = scmp.ne.s32.totalorder %s271, %s272
      %p284 = scmp.eq.s32.totalorder %s37, 1
      %p285 = por %p283, %p284
      %p287 = scmp.ne.s32.totalorder %s272, %s286
      %p288 = scmp.eq.s32.totalorder %s37, 0
      %p289 = por %p287, %p288
      %s291 = sadd.s32 %s290, 1
      %p294 = scmp.eq.s32.totalorder %s31, 1
      %p295 = scmp.ne.s32.totalorder %s290, %s292
      %p296 = scmp.eq.s32.totalorder %s31, 0
      %p297 = por %p295, %p296
      %p298 = scmp.ne.s32.totalorder %s290, %s292
      %p299 = scmp.eq.s32.totalorder %s36, 1
      %p300 = por %p298, %p299
      %p301 = scmp.ne.s32.totalorder %s292, %s293
      %p302 = scmp.eq.s32.totalorder %s36, 0
      %p303 = por %p301, %p302
      %p304 = scmp.ne.s32.totalorder %s292, %s293
      %p305 = scmp.eq.s32.totalorder %s37, 1
      %p306 = por %p304, %p305
      %p308 = scmp.ne.s32.totalorder %s293, %s307
      %p309 = scmp.eq.s32.totalorder %s37, 0
      %p310 = por %p308, %p309
      %s312 = sadd.s32 %s311, 1
      %p315 = scmp.eq.s32.totalorder %s31, 1
      %p316 = scmp.ne.s32.totalorder %s311, %s313
      %p317 = scmp.eq.s32.totalorder %s31, 0
      %p318 = por %p316, %p317
      %p319 = scmp.ne.s32.totalorder %s311, %s313
      %p320 = scmp.eq.s32.totalorder %s36, 1
      %p321 = por %p319, %p320
      %p322 = scmp.ne.s32.totalorder %s313, %s314
      %p323 = scmp.eq.s32.totalorder %s36, 0
      %p324 = por %p322, %p323
      %p325 = scmp.ne.s32.totalorder %s313, %s314
      %p326 = scmp.eq.s32.totalorder %s37, 1
      %p327 = por %p325, %p326
      %p329 = scmp.ne.s32.totalorder %s314, %s328
      %p330 = scmp.eq.s32.totalorder %s37, 0
      %p331 = por %p329, %p330
      %s333 = sadd.s32 %s332, 1
      %p336 = scmp.eq.s32.totalorder %s31, 1
      %p337 = scmp.ne.s32.totalorder %s332, %s334
      %p338 = scmp.eq.s32.totalorder %s31, 0
      %p339 = por %p337, %p338
      %p340 = scmp.ne.s32.totalorder %s332, %s334
      %p341 = scmp.eq.s32.totalorder %s36, 1
      %p342 = por %p340, %p341
      %p343 = scmp.ne.s32.totalorder %s334, %s335
      %p344 = scmp.eq.s32.totalorder %s36, 0
      %p345 = por %p343, %p344
      %p346 = scmp.ne.s32.totalorder %s334, %s335
      %p347 = scmp.eq.s32.totalorder %s37, 1
      %p348 = por %p346, %p347
      %p350 = scmp.ne.s32.totalorder %s335, %s349
      %p351 = scmp.eq.s32.totalorder %s37, 0
      %p352 = por %p350, %p351
      %s354 = sadd.s32 %s353, 1
      %p357 = scmp.eq.s32.totalorder %s31, 1
      %p358 = scmp.ne.s32.totalorder %s353, %s355
      %p359 = scmp.eq.s32.totalorder %s31, 0
      %p360 = por %p358, %p359
      %p361 = scmp.ne.s32.totalorder %s353, %s355
      %p362 = scmp.eq.s32.totalorder %s36, 1
      %p363 = por %p361, %p362
      %p364 = scmp.ne.s32.totalorder %s355, %s356
      %p365 = scmp.eq.s32.totalorder %s36, 0
      %p366 = por %p364, %p365
      %p367 = scmp.ne.s32.totalorder %s355, %s356
      %p368 = scmp.eq.s32.totalorder %s37, 1
      %p369 = por %p367, %p368
      %p371 = scmp.ne.s32.totalorder %s356, %s370
      %p372 = scmp.eq.s32.totalorder %s37, 0
      %p373 = por %p371, %p372
      %s375 = sadd.s32 %s374, 1
      %p378 = scmp.eq.s32.totalorder %s31, 1
      %p379 = scmp.ne.s32.totalorder %s374, %s376
      %p380 = scmp.eq.s32.totalorder %s31, 0
      %p381 = por %p379, %p380
      %p382 = scmp.ne.s32.totalorder %s374, %s376
      %p383 = scmp.eq.s32.totalorder %s36, 1
      %p384 = por %p382, %p383
      %p385 = scmp.ne.s32.totalorder %s376, %s377
      %p386 = scmp.eq.s32.totalorder %s36, 0
      %p387 = por %p385, %p386
      %p388 = scmp.ne.s32.totalorder %s376, %s377
      %p389 = scmp.eq.s32.totalorder %s37, 1
      %p390 = por %p388, %p389
      %p392 = scmp.ne.s32.totalorder %s377, %s391
      %p393 = scmp.eq.s32.totalorder %s37, 0
      %p394 = por %p392, %p393
      %s396 = sadd.s32 %s395, 1
      %p399 = scmp.eq.s32.totalorder %s31, 1
      %p400 = scmp.ne.s32.totalorder %s395, %s397
      %p401 = scmp.eq.s32.totalorder %s31, 0
      %p402 = por %p400, %p401
      %p403 = scmp.ne.s32.totalorder %s395, %s397
      %p404 = scmp.eq.s32.totalorder %s36, 1
      %p405 = por %p403, %p404
      %p406 = scmp.ne.s32.totalorder %s397, %s398
      %p407 = scmp.eq.s32.totalorder %s36, 0
      %p408 = por %p406, %p407
      %p409 = scmp.ne.s32.totalorder %s397, %s398
      %p410 = scmp.eq.s32.totalorder %s37, 1
      %p411 = por %p409, %p410
      %p413 = scmp.ne.s32.totalorder %s398, %s412
      %p414 = scmp.eq.s32.totalorder %s37, 0
      %p415 = por %p413, %p414
      %s417 = sadd.s32 %s416, 1
      %p420 = scmp.eq.s32.totalorder %s31, 1
      %p421 = scmp.ne.s32.totalorder %s416, %s418
      %p422 = scmp.eq.s32.totalorder %s31, 0
      %p423 = por %p421, %p422
      %p424 = scmp.ne.s32.totalorder %s416, %s418
      %p425 = scmp.eq.s32.totalorder %s36, 1
      %p426 = por %p424, %p425
      %p427 = scmp.ne.s32.totalorder %s418, %s419
      %p428 = scmp.eq.s32.totalorder %s36, 0
      %p429 = por %p427, %p428
      %p430 = scmp.ne.s32.totalorder %s418, %s419
      %p431 = scmp.eq.s32.totalorder %s37, 1
      %p432 = por %p430, %p431
      %p434 = scmp.ne.s32.totalorder %s419, %s433
      %p435 = scmp.eq.s32.totalorder %s37, 0
      %p436 = por %p434, %p435
      %s438 = sadd.s32 %s437, 1
      %p441 = scmp.eq.s32.totalorder %s31, 1
      %p442 = scmp.ne.s32.totalorder %s437, %s439
      %p443 = scmp.eq.s32.totalorder %s31, 0
      %p444 = por %p442, %p443
      %p445 = scmp.ne.s32.totalorder %s437, %s439
      %p446 = scmp.eq.s32.totalorder %s36, 1
      %p447 = por %p445, %p446
      %p448 = scmp.ne.s32.totalorder %s439, %s440
      %p449 = scmp.eq.s32.totalorder %s36, 0
      %p450 = por %p448, %p449
      %p451 = scmp.ne.s32.totalorder %s439, %s440
      %p452 = scmp.eq.s32.totalorder %s37, 1
      %p453 = por %p451, %p452
      %p455 = scmp.ne.s32.totalorder %s440, %s454
      %p456 = scmp.eq.s32.totalorder %s37, 0
      %p457 = por %p455, %p456
      %s459 = sadd.s32 %s458, 1
      %p462 = scmp.eq.s32.totalorder %s31, 1
      %p463 = scmp.ne.s32.totalorder %s458, %s460
      %p464 = scmp.eq.s32.totalorder %s31, 0
      %p465 = por %p463, %p464
      %p466 = scmp.ne.s32.totalorder %s458, %s460
      %p467 = scmp.eq.s32.totalorder %s36, 1
      %p468 = por %p466, %p467
      %p469 = scmp.ne.s32.totalorder %s460, %s461
      %p470 = scmp.eq.s32.totalorder %s36, 0
      %p471 = por %p469, %p470
      %p472 = scmp.ne.s32.totalorder %s460, %s461
      %p473 = scmp.eq.s32.totalorder %s37, 1
      %p474 = por %p472, %p473
      %p476 = scmp.ne.s32.totalorder %s461, %s475
      %p477 = scmp.eq.s32.totalorder %s37, 0
      %p478 = por %p476, %p477
      %s480 = sadd.s32 %s479, 1
      %p483 = scmp.eq.s32.totalorder %s31, 1
      %p484 = scmp.ne.s32.totalorder %s479, %s481
      %p485 = scmp.eq.s32.totalorder %s31, 0
      %p486 = por %p484, %p485
      %p487 = scmp.ne.s32.totalorder %s479, %s481
      %p488 = scmp.eq.s32.totalorder %s36, 1
      %p489 = por %p487, %p488
      %p490 = scmp.ne.s32.totalorder %s481, %s482
      %p491 = scmp.eq.s32.totalorder %s36, 0
      %p492 = por %p490, %p491
      %p493 = scmp.ne.s32.totalorder %s481, %s482
      %p494 = scmp.eq.s32.totalorder %s37, 1
      %p495 = por %p493, %p494
      %p497 = scmp.ne.s32.totalorder %s482, %s496
      %p498 = scmp.eq.s32.totalorder %s37, 0
      %p499 = por %p497, %p498
      %s501 = sadd.s32 %s500, 1
      %p504 = scmp.eq.s32.totalorder %s31, 1
      %p505 = scmp.ne.s32.totalorder %s500, %s502
      %p506 = scmp.eq.s32.totalorder %s31, 0
      %p507 = por %p505, %p506
      %p508 = scmp.ne.s32.totalorder %s500, %s502
      %p509 = scmp.eq.s32.totalorder %s36, 1
      %p510 = por %p508, %p509
      %p511 = scmp.ne.s32.totalorder %s502, %s503
      %p512 = scmp.eq.s32.totalorder %s36, 0
      %p513 = por %p511, %p512
      %p514 = scmp.ne.s32.totalorder %s502, %s503
      %p515 = scmp.eq.s32.totalorder %s37, 1
      %p516 = por %p514, %p515
      %p518 = scmp.ne.s32.totalorder %s503, %s517
      %p519 = scmp.eq.s32.totalorder %s37, 0
      %p520 = por %p518, %p519
      %s522 = sadd.s32 %s521, 1
      %p525 = scmp.eq.s32.totalorder %s31, 1
      %p526 = scmp.ne.s32.totalorder %s521, %s523
      %p527 = scmp.eq.s32.totalorder %s31, 0
      %p528 = por %p526, %p527
      %p529 = scmp.ne.s32.totalorder %s521, %s523
      %p530 = scmp.eq.s32.totalorder %s36, 1
      %p531 = por %p529, %p530
      %p532 = scmp.ne.s32.totalorder %s523, %s524
      %p533 = scmp.eq.s32.totalorder %s36, 0
      %p534 = por %p532, %p533
      %p535 = scmp.ne.s32.totalorder %s523, %s524
      %p536 = scmp.eq.s32.totalorder %s37, 1
      %p537 = por %p535, %p536
      %p539 = scmp.ne.s32.totalorder %s524, %s538
      %p540 = scmp.eq.s32.totalorder %s37, 0
      %p541 = por %p539, %p540
      %s543 = sadd.s32 %s542, 1
      %p546 = scmp.eq.s32.totalorder %s31, 1
      %p547 = scmp.ne.s32.totalorder %s542, %s544
      %p548 = scmp.eq.s32.totalorder %s31, 0
      %p549 = por %p547, %p548
      %p550 = scmp.ne.s32.totalorder %s542, %s544
      %p551 = scmp.eq.s32.totalorder %s36, 1
      %p552 = por %p550, %p551
      %p553 = scmp.ne.s32.totalorder %s544, %s545
      %p554 = scmp.eq.s32.totalorder %s36, 0
      %p555 = por %p553, %p554
      %p556 = scmp.ne.s32.totalorder %s544, %s545
      %p557 = scmp.eq.s32.totalorder %s37, 1
      %p558 = por %p556, %p557
      %p560 = scmp.ne.s32.totalorder %s545, %s559
      %p561 = scmp.eq.s32.totalorder %s37, 0
      %p562 = por %p560, %p561
      %p563 = scmp.le.s32.totalorder 1, %s31
      %p564 = scmp.lt.s32.totalorder %s31, 3
      %p565 = pnand %p563, %p564
      %p566 = pneg %p565
      // Predicated region
      $region9: #{egcl_forward.1} parent=5 // pred_check
        _
      $region10: #{egcl_forward.1} parent=5 // pred_check_branch
        %568 = sbr.rel (%p565) target = $region12
      $region11: #{egcl_forward.1} parent=5 // pred_region
        %s569 = ssub.s32 %s31, 1
        // Predicated region
        $region13: #{egcl_forward.1} parent=11 // pred_check
          %p570 = pneg %p156
        $region14: #{egcl_forward.1} parent=11 // pred_check_branch
          %572 = sbr.rel (%p570) target = $region16
        $region15: #{egcl_forward.1} parent=11 // pred_region
          _
        $region16: #{egcl_forward.1} parent=11 // pred_fallthru
          _
        // Predicated region
        $region17: #{egcl_forward.1} parent=11 // pred_check
          %p573 = pneg %p177
        $region18: #{egcl_forward.1} parent=11 // pred_check_branch
          %575 = sbr.rel (%p573) target = $region20
        $region19: #{egcl_forward.1} parent=11 // pred_region
          _
        $region20: #{egcl_forward.1} parent=11 // pred_fallthru
          _
        // Predicated region
        $region21: #{egcl_forward.1} parent=11 // pred_check
          %p576 = pneg %p198
        $region22: #{egcl_forward.1} parent=11 // pred_check_branch
          %578 = sbr.rel (%p576) target = $region24
        $region23: #{egcl_forward.1} parent=11 // pred_region
          _
        $region24: #{egcl_forward.1} parent=11 // pred_fallthru
          _
        // Predicated region
        $region25: #{egcl_forward.1} parent=11 // pred_check
          %p579 = pneg %p219
        $region26: #{egcl_forward.1} parent=11 // pred_check_branch
          %581 = sbr.rel (%p579) target = $region28
        $region27: #{egcl_forward.1} parent=11 // pred_region
          _
        $region28: #{egcl_forward.1} parent=11 // pred_fallthru
          _
        // Predicated region
        $region29: #{egcl_forward.1} parent=11 // pred_check
          %p582 = pneg %p240
        $region30: #{egcl_forward.1} parent=11 // pred_check_branch
          %584 = sbr.rel (%p582) target = $region32
        $region31: #{egcl_forward.1} parent=11 // pred_region
          _
        $region32: #{egcl_forward.1} parent=11 // pred_fallthru
          _
        // Predicated region
        $region33: #{egcl_forward.1} parent=11 // pred_check
          %p585 = pneg %p261
        $region34: #{egcl_forward.1} parent=11 // pred_check_branch
          %587 = sbr.rel (%p585) target = $region36
        $region35: #{egcl_forward.1} parent=11 // pred_region
          _
        $region36: #{egcl_forward.1} parent=11 // pred_fallthru
          _
        // Predicated region
        $region37: #{egcl_forward.1} parent=11 // pred_check
          %p588 = pneg %p282
        $region38: #{egcl_forward.1} parent=11 // pred_check_branch
          %590 = sbr.rel (%p588) target = $region40
        $region39: #{egcl_forward.1} parent=11 // pred_region
          _
        $region40: #{egcl_forward.1} parent=11 // pred_fallthru
          _
        // Predicated region
        $region41: #{egcl_forward.1} parent=11 // pred_check
          %p591 = pneg %p303
        $region42: #{egcl_forward.1} parent=11 // pred_check_branch
          %593 = sbr.rel (%p591) target = $region44
        $region43: #{egcl_forward.1} parent=11 // pred_region
          _
        $region44: #{egcl_forward.1} parent=11 // pred_fallthru
          _
        // Predicated region
        $region45: #{egcl_forward.1} parent=11 // pred_check
          %p594 = pneg %p324
        $region46: #{egcl_forward.1} parent=11 // pred_check_branch
          %596 = sbr.rel (%p594) target = $region48
        $region47: #{egcl_forward.1} parent=11 // pred_region
          _
        $region48: #{egcl_forward.1} parent=11 // pred_fallthru
          _
        // Predicated region
        $region49: #{egcl_forward.1} parent=11 // pred_check
          %p597 = pneg %p345
        $region50: #{egcl_forward.1} parent=11 // pred_check_branch
          %599 = sbr.rel (%p597) target = $region52
        $region51: #{egcl_forward.1} parent=11 // pred_region
          _
        $region52: #{egcl_forward.1} parent=11 // pred_fallthru
          _
        // Predicated region
        $region53: #{egcl_forward.1} parent=11 // pred_check
          %p600 = pneg %p366
        $region54: #{egcl_forward.1} parent=11 // pred_check_branch
          %602 = sbr.rel (%p600) target = $region56
        $region55: #{egcl_forward.1} parent=11 // pred_region
          _
        $region56: #{egcl_forward.1} parent=11 // pred_fallthru
          _
        // Predicated region
        $region57: #{egcl_forward.1} parent=11 // pred_check
          %p603 = pneg %p387
        $region58: #{egcl_forward.1} parent=11 // pred_check_branch
          %605 = sbr.rel (%p603) target = $region60
        $region59: #{egcl_forward.1} parent=11 // pred_region
          _
        $region60: #{egcl_forward.1} parent=11 // pred_fallthru
          _
        // Predicated region
        $region61: #{egcl_forward.1} parent=11 // pred_check
          %p606 = pneg %p408
        $region62: #{egcl_forward.1} parent=11 // pred_check_branch
          %608 = sbr.rel (%p606) target = $region64
        $region63: #{egcl_forward.1} parent=11 // pred_region
          _
        $region64: #{egcl_forward.1} parent=11 // pred_fallthru
          _
        // Predicated region
        $region65: #{egcl_forward.1} parent=11 // pred_check
          %p609 = pneg %p429
        $region66: #{egcl_forward.1} parent=11 // pred_check_branch
          %611 = sbr.rel (%p609) target = $region68
        $region67: #{egcl_forward.1} parent=11 // pred_region
          _
        $region68: #{egcl_forward.1} parent=11 // pred_fallthru
          _
        // Predicated region
        $region69: #{egcl_forward.1} parent=11 // pred_check
          %p612 = pneg %p450
        $region70: #{egcl_forward.1} parent=11 // pred_check_branch
          %614 = sbr.rel (%p612) target = $region72
        $region71: #{egcl_forward.1} parent=11 // pred_region
          _
        $region72: #{egcl_forward.1} parent=11 // pred_fallthru
          _
        // Predicated region
        $region73: #{egcl_forward.1} parent=11 // pred_check
          %p615 = pneg %p471
        $region74: #{egcl_forward.1} parent=11 // pred_check_branch
          %617 = sbr.rel (%p615) target = $region76
        $region75: #{egcl_forward.1} parent=11 // pred_region
          _
        $region76: #{egcl_forward.1} parent=11 // pred_fallthru
          _
        // Predicated region
        $region77: #{egcl_forward.1} parent=11 // pred_check
          %p618 = pneg %p492
        $region78: #{egcl_forward.1} parent=11 // pred_check_branch
          %620 = sbr.rel (%p618) target = $region80
        $region79: #{egcl_forward.1} parent=11 // pred_region
          _
        $region80: #{egcl_forward.1} parent=11 // pred_fallthru
          _
        // Predicated region
        $region81: #{egcl_forward.1} parent=11 // pred_check
          %p621 = pneg %p513
        $region82: #{egcl_forward.1} parent=11 // pred_check_branch
          %623 = sbr.rel (%p621) target = $region84
        $region83: #{egcl_forward.1} parent=11 // pred_region
          _
        $region84: #{egcl_forward.1} parent=11 // pred_fallthru
          _
      $region12: #{egcl_forward.1} parent=5 // pred_fallthru
        _
      %p624 = scmp.lt.s32.totalorder %s31, 2
      // Predicated region
      $region85: #{egcl_forward.1} parent=5 // pred_check
        %p625 = pneg %p624
      $region86: #{egcl_forward.1} parent=5 // pred_check_branch
        %627 = sbr.rel (%p625) target = $region88
      $region87: #{egcl_forward.1} parent=5 // pred_region
        // Predicated region
        $region89: #{egcl_forward.1} parent=87 // pred_check
          %p628 = pneg %p51
        $region90: #{egcl_forward.1} parent=87 // pred_check_branch
          %630 = sbr.rel (%p628) target = $region92
        $region91: #{egcl_forward.1} parent=87 // pred_region
          %s631 = smul.u32 16, %s31
          %p632 = scmp.lt.s32.totalorder %s631, 31
          %s633 = scalar_select %p632, %s631, 31
          %s634 = smul.addr %s633, 8
          %s635 = scalar_lea.vmem %s0, %s634
          %s636 = smul.u32 16, %s31
        $region92: #{egcl_forward.1} parent=87 // pred_fallthru
          _
        // Predicated region
        $region93: #{egcl_forward.1} parent=87 // pred_check
          %p637 = pneg %p77
        $region94: #{egcl_forward.1} parent=87 // pred_check_branch
          %639 = sbr.rel (%p637) target = $region96
        $region95: #{egcl_forward.1} parent=87 // pred_region
          %s640 = smul.u32 16, %s31
          %p641 = scmp.lt.s32.totalorder %s640, 31
          %s642 = scalar_select %p641, %s640, 31
          %s643 = smul.addr %s642, 8
          %s644 = scalar_lea.vmem %s1, %s643
          %s645 = smul.u32 16, %s31
        $region96: #{egcl_forward.1} parent=87 // pred_fallthru
          _
        // Predicated region
        $region97: #{egcl_forward.1} parent=87 // pred_check
          %p646 = pneg %p103
        $region98: #{egcl_forward.1} parent=87 // pred_check_branch
          %648 = sbr.rel (%p646) target = $region100
        $region99: #{egcl_forward.1} parent=87 // pred_region
          %p649 = scmp.lt.s32.totalorder %s31, 1
          %s650 = scalar_select %p649, %s31, 1
          %s651 = scalar_lea.vmem %s2, %s650
        $region100: #{egcl_forward.1} parent=87 // pred_fallthru
          _
        // Predicated region
        $region101: #{egcl_forward.1} parent=87 // pred_check
          %p652 = pneg %p129
        $region102: #{egcl_forward.1} parent=87 // pred_check_branch
          %654 = sbr.rel (%p652) target = $region104
        $region103: #{egcl_forward.1} parent=87 // pred_region
          %s655 = smul.u32 16, %s31
          %p656 = scmp.lt.s32.totalorder %s655, 31
          %s657 = scalar_select %p656, %s655, 31
          %s658 = smul.addr %s657, 8
          %s659 = scalar_lea.vmem %s3, %s658
          %s660 = smul.u32 16, %s31
        $region104: #{egcl_forward.1} parent=87 // pred_fallthru
          _
      $region88: #{egcl_forward.1} parent=5 // pred_fallthru
        _
      %p661 = scmp.le.s32.totalorder 1, %s31
      %p662 = scmp.lt.s32.totalorder %s31, 3
      %p663 = pnand %p661, %p662
      %p664 = pneg %p663
      // Predicated region
      $region105: #{egcl_forward.1} parent=5 // pred_check
        _
      $region106: #{egcl_forward.1} parent=5 // pred_check_branch
        %666 = sbr.rel (%p663) target = $region108
      $region107: #{egcl_forward.1} parent=5 // pred_region
        %s667 = ssub.s32 %s31, 1
        %s668 = smul.u32 16, %s36
        %p669 = scmp.lt.s32.totalorder %s668, 31
        %s670 = scalar_select %p669, %s668, 31
        %s671 = smul.addr %s670, 8
        %s672 = scalar_lea.vmem %s0, %s671
        %p673 = pneg %p57
        %p674 = pneg %p54
        %s675 = smul.u32 16, %s36
        %p676 = scmp.lt.s32.totalorder %s675, 31
        %s677 = scalar_select %p676, %s675, 31
        %s678 = smul.addr %s677, 8
        %s679 = scalar_lea.vmem %s1, %s678
        %p680 = pneg %p83
        %p681 = pneg %p80
        %p682 = scmp.lt.s32.totalorder %s36, 1
        %s683 = scalar_select %p682, %s36, 1
        %s684 = scalar_lea.vmem %s2, %s683
        %p685 = pneg %p109
        %p686 = pneg %p106
        %s687 = smul.u32 16, %s36
        %p688 = scmp.lt.s32.totalorder %s687, 31
        %s689 = scalar_select %p688, %s687, 31
        %s690 = smul.addr %s689, 8
        %s691 = scalar_lea.vmem %s3, %s690
        %p692 = pneg %p135
        %p693 = pneg %p132
        %p694 = pneg %p156
        %p695 = pneg %p153
        %p696 = pneg %p177
        %p697 = pneg %p174
        %p698 = pneg %p198
        %p699 = pneg %p195
        %p700 = pneg %p219
        %p701 = pneg %p216
        %p702 = pneg %p240
        %p703 = pneg %p237
        %p704 = pneg %p261
        %p705 = pneg %p258
        %p706 = pneg %p282
        %p707 = pneg %p279
        %p708 = pneg %p303
        %p709 = pneg %p300
        %p710 = pneg %p324
        %p711 = pneg %p321
        %p712 = pneg %p345
        %p713 = pneg %p342
        %p714 = pneg %p366
        %p715 = pneg %p363
        %p716 = pneg %p387
        %p717 = pneg %p384
        %p718 = pneg %p408
        %p719 = pneg %p405
        %p720 = pneg %p429
        %p721 = pneg %p426
        %p722 = pneg %p450
        %p723 = pneg %p447
        %p724 = pneg %p471
        %p725 = pneg %p468
        %p726 = pneg %p492
        %p727 = pneg %p489
        %p728 = pneg %p513
        %p729 = pneg %p510
        %p730 = pneg %p534
        %p731 = pneg %p531
        %p732 = pneg %p555
        %p733 = pneg %p552
        %s734 = smul.u32 16, %s36
        %p735 = scmp.lt.s32.totalorder %s734, 31
        %s736 = scalar_select %p735, %s734, 31
        %s737 = smul.addr %s736, 8
        %s738 = scalar_lea.vmem %s0, %s737
        %s739 = smul.u32 16, %s36
        %s740 = smul.u32 16, %s36
        %p741 = scmp.lt.s32.totalorder %s740, 31
        %s742 = scalar_select %p741, %s740, 31
        %s743 = smul.addr %s742, 8
        %s744 = scalar_lea.vmem %s1, %s743
        %s745 = smul.u32 16, %s36
        %p746 = scmp.lt.s32.totalorder %s36, 1
        %s747 = scalar_select %p746, %s36, 1
        %s748 = scalar_lea.vmem %s2, %s747
        %s749 = smul.u32 16, %s36
        %p750 = scmp.lt.s32.totalorder %s749, 31
        %s751 = scalar_select %p750, %s749, 31
        %s752 = smul.addr %s751, 8
        %s753 = scalar_lea.vmem %s3, %s752
        %s754 = smul.u32 16, %s36
        %p755 = scmp.eq.s32.totalorder %s36, 0
        // Predicated region
        $region109: #{egcl_forward.1} parent=107 // pred_check
          %p756 = pneg %p755
        $region110: #{egcl_forward.1} parent=107 // pred_check_branch
          %758 = sbr.rel (%p756) target = $region112
        $region111: #{egcl_forward.1} parent=107 // pred_region
          %vm759 = vcmask 285696
          %760 = vst.msk [vmem:[#allocation2] sm:$0xff] %vm759, 0.0
          %vm761 = vcmask 281600
          %762 = vst.msk [vmem:[#allocation2 + $0x8] sm:$0xf] %vm761, 0.0
        $region112: #{egcl_forward.1} parent=107 // pred_fallthru
          _
        %v763 = vlaneseq
        %v764 = vand.u32 %v763, 127
        %v765 = vld [vmem:[%s738] sm:$0xff]
        %v766 = vld [vmem:[%s738 + $0x8] sm:$0xff]
        %v767 = vld [vmem:[%s738 + $0x10] sm:$0xff]
        %v768 = vld [vmem:[%s738 + $0x18] sm:$0xff]
        %v769 = vld [vmem:[%s738 + $0x20] sm:$0xff]
        %v770 = vld [vmem:[%s738 + $0x28] sm:$0xff]
        %v771 = vld [vmem:[%s738 + $0x30] sm:$0xff]
        %v772 = vld [vmem:[%s738 + $0x38] sm:$0xff]
        %v773 = vld [vmem:[%s738 + $0x40] sm:$0xff]
        %v774 = vld [vmem:[%s738 + $0x48] sm:$0xff]
        %v775 = vld [vmem:[%s738 + $0x50] sm:$0xff]
        %v776 = vld [vmem:[%s738 + $0x58] sm:$0xff]
        %v777 = vld [vmem:[%s738 + $0x60] sm:$0xff]
        %v778 = vld [vmem:[%s738 + $0x68] sm:$0xff]
        %v779 = vld [vmem:[%s738 + $0x70] sm:$0xff]
        %v780 = vld [vmem:[%s738 + $0x78] sm:$0xff]
        %781 = vset.pattern.permute.xlu0 0
        %782 = vperm.xlu0 %781, %v765
        %v783 = vpop.permute.xlu0 %782
        %784 = vset.pattern.permute.xlu0 0
        %785 = vperm.xlu0 %784, %v766
        %v786 = vpop.permute.xlu0 %785
        %787 = vset.pattern.permute.xlu0 0
        %788 = vperm.xlu0 %787, %v767
        %v789 = vpop.permute.xlu0 %788
        %790 = vset.pattern.permute.xlu0 0
        %791 = vperm.xlu0 %790, %v768
        %v792 = vpop.permute.xlu0 %791
        %793 = vset.pattern.permute.xlu0 0
        %794 = vperm.xlu0 %793, %v769
        %v795 = vpop.permute.xlu0 %794
        %796 = vset.pattern.permute.xlu0 0
        %797 = vperm.xlu0 %796, %v770
        %v798 = vpop.permute.xlu0 %797
        %799 = vset.pattern.permute.xlu0 0
        %800 = vperm.xlu0 %799, %v771
        %v801 = vpop.permute.xlu0 %800
        %802 = vset.pattern.permute.xlu0 0
        %803 = vperm.xlu0 %802, %v772
        %v804 = vpop.permute.xlu0 %803
        %805 = vset.pattern.permute.xlu0 0
        %806 = vperm.xlu0 %805, %v773
        %v807 = vpop.permute.xlu0 %806
        %808 = vset.pattern.permute.xlu0 0
        %809 = vperm.xlu0 %808, %v774
        %v810 = vpop.permute.xlu0 %809
        %811 = vset.pattern.permute.xlu0 0
        %812 = vperm.xlu0 %811, %v775
        %v813 = vpop.permute.xlu0 %812
        %814 = vset.pattern.permute.xlu0 0
        %815 = vperm.xlu0 %814, %v776
        %v816 = vpop.permute.xlu0 %815
        %817 = vset.pattern.permute.xlu0 0
        %818 = vperm.xlu0 %817, %v777
        %v819 = vpop.permute.xlu0 %818
        %820 = vset.pattern.permute.xlu0 0
        %821 = vperm.xlu0 %820, %v778
        %v822 = vpop.permute.xlu0 %821
        %823 = vset.pattern.permute.xlu0 0
        %824 = vperm.xlu0 %823, %v779
        %v825 = vpop.permute.xlu0 %824
        %826 = vset.pattern.permute.xlu0 0
        %827 = vperm.xlu0 %826, %v780
        %v828 = vpop.permute.xlu0 %827
        %vm829 = vcmp.eq.s32.totalorder %v783, %v764
        %vm830 = vcmp.eq.s32.totalorder %v786, %v764
        %vm831 = vcmp.eq.s32.totalorder %v789, %v764
        %vm832 = vcmp.eq.s32.totalorder %v792, %v764
        %vm833 = vcmp.eq.s32.totalorder %v795, %v764
        %vm834 = vcmp.eq.s32.totalorder %v798, %v764
        %vm835 = vcmp.eq.s32.totalorder %v801, %v764
        %vm836 = vcmp.eq.s32.totalorder %v804, %v764
        %vm837 = vcmp.eq.s32.totalorder %v807, %v764
        %vm838 = vcmp.eq.s32.totalorder %v810, %v764
        %vm839 = vcmp.eq.s32.totalorder %v813, %v764
        %vm840 = vcmp.eq.s32.totalorder %v816, %v764
        %vm841 = vcmp.eq.s32.totalorder %v819, %v764
        %vm842 = vcmp.eq.s32.totalorder %v822, %v764
        %vm843 = vcmp.eq.s32.totalorder %v825, %v764
        %vm844 = vcmp.eq.s32.totalorder %v828, %v764
        %v845 = vsel %vm829, 1, 0
        %v846 = vsel %vm830, 1, 0
        %v847 = vsel %vm831, 1, 0
        %v848 = vsel %vm832, 1, 0
        %v849 = vsel %vm833, 1, 0
        %v850 = vsel %vm834, 1, 0
        %v851 = vsel %vm835, 1, 0
        %v852 = vsel %vm836, 1, 0
        %v853 = vsel %vm837, 1, 0
        %v854 = vsel %vm838, 1, 0
        %v855 = vsel %vm839, 1, 0
        %v856 = vsel %vm840, 1, 0
        %v857 = vsel %vm841, 1, 0
        %v858 = vsel %vm842, 1, 0
        %v859 = vsel %vm843, 1, 0
        %v860 = vsel %vm844, 1, 0
        %v861 = vcvt.s32.f32 %v845
        %v862 = vcvt.s32.f32 %v846
        %v863 = vcvt.s32.f32 %v847
        %v864 = vcvt.s32.f32 %v848
        %v865 = vcvt.s32.f32 %v849
        %v866 = vcvt.s32.f32 %v850
        %v867 = vcvt.s32.f32 %v851
        %v868 = vcvt.s32.f32 %v852
        %v869 = vcvt.s32.f32 %v853
        %v870 = vcvt.s32.f32 %v854
        %v871 = vcvt.s32.f32 %v855
        %v872 = vcvt.s32.f32 %v856
        %v873 = vcvt.s32.f32 %v857
        %v874 = vcvt.s32.f32 %v858
        %v875 = vcvt.s32.f32 %v859
        %v876 = vcvt.s32.f32 %v860
        %v877 = vld [vmem:[%s744] sm:$0xff]
        %v878 = vld [vmem:[%s744 + $0x8] sm:$0xff]
        %v879 = vld [vmem:[%s744 + $0x10] sm:$0xff]
        %v880 = vld [vmem:[%s744 + $0x18] sm:$0xff]
        %v881 = vld [vmem:[%s744 + $0x20] sm:$0xff]
        %v882 = vld [vmem:[%s744 + $0x28] sm:$0xff]
        %v883 = vld [vmem:[%s744 + $0x30] sm:$0xff]
        %v884 = vld [vmem:[%s744 + $0x38] sm:$0xff]
        %v885 = vld [vmem:[%s744 + $0x40] sm:$0xff]
        %v886 = vld [vmem:[%s744 + $0x48] sm:$0xff]
        %v887 = vld [vmem:[%s744 + $0x50] sm:$0xff]
        %v888 = vld [vmem:[%s744 + $0x58] sm:$0xff]
        %v889 = vld [vmem:[%s744 + $0x60] sm:$0xff]
        %v890 = vld [vmem:[%s744 + $0x68] sm:$0xff]
        %v891 = vld [vmem:[%s744 + $0x70] sm:$0xff]
        %v892 = vld [vmem:[%s744 + $0x78] sm:$0xff]
        %893 = vset.pattern.permute.xlu0 0
        %894 = vperm.xlu0 %893, %v877
        %v895 = vpop.permute.xlu0 %894
        %896 = vset.pattern.permute.xlu0 0
        %897 = vperm.xlu0 %896, %v878
        %v898 = vpop.permute.xlu0 %897
        %899 = vset.pattern.permute.xlu0 0
        %900 = vperm.xlu0 %899, %v879
        %v901 = vpop.permute.xlu0 %900
        %902 = vset.pattern.permute.xlu0 0
        %903 = vperm.xlu0 %902, %v880
        %v904 = vpop.permute.xlu0 %903
        %905 = vset.pattern.permute.xlu0 0
        %906 = vperm.xlu0 %905, %v881
        %v907 = vpop.permute.xlu0 %906
        %908 = vset.pattern.permute.xlu0 0
        %909 = vperm.xlu0 %908, %v882
        %v910 = vpop.permute.xlu0 %909
        %911 = vset.pattern.permute.xlu0 0
        %912 = vperm.xlu0 %911, %v883
        %v913 = vpop.permute.xlu0 %912
        %914 = vset.pattern.permute.xlu0 0
        %915 = vperm.xlu0 %914, %v884
        %v916 = vpop.permute.xlu0 %915
        %917 = vset.pattern.permute.xlu0 0
        %918 = vperm.xlu0 %917, %v885
        %v919 = vpop.permute.xlu0 %918
        %920 = vset.pattern.permute.xlu0 0
        %921 = vperm.xlu0 %920, %v886
        %v922 = vpop.permute.xlu0 %921
        %923 = vset.pattern.permute.xlu0 0
        %924 = vperm.xlu0 %923, %v887
        %v925 = vpop.permute.xlu0 %924
        %926 = vset.pattern.permute.xlu0 0
        %927 = vperm.xlu0 %926, %v888
        %v928 = vpop.permute.xlu0 %927
        %929 = vset.pattern.permute.xlu0 0
        %930 = vperm.xlu0 %929, %v889
        %v931 = vpop.permute.xlu0 %930
        %932 = vset.pattern.permute.xlu0 0
        %933 = vperm.xlu0 %932, %v890
        %v934 = vpop.permute.xlu0 %933
        %935 = vset.pattern.permute.xlu0 0
        %936 = vperm.xlu0 %935, %v891
        %v937 = vpop.permute.xlu0 %936
        %938 = vset.pattern.permute.xlu0 0
        %939 = vperm.xlu0 %938, %v892
        %v940 = vpop.permute.xlu0 %939
        %vm941 = vcmp.eq.s32.totalorder %v895, %v764
        %vm942 = vcmp.eq.s32.totalorder %v898, %v764
        %vm943 = vcmp.eq.s32.totalorder %v901, %v764
        %vm944 = vcmp.eq.s32.totalorder %v904, %v764
        %vm945 = vcmp.eq.s32.totalorder %v907, %v764
        %vm946 = vcmp.eq.s32.totalorder %v910, %v764
        %vm947 = vcmp.eq.s32.totalorder %v913, %v764
        %vm948 = vcmp.eq.s32.totalorder %v916, %v764
        %vm949 = vcmp.eq.s32.totalorder %v919, %v764
        %vm950 = vcmp.eq.s32.totalorder %v922, %v764
        %vm951 = vcmp.eq.s32.totalorder %v925, %v764
        %vm952 = vcmp.eq.s32.totalorder %v928, %v764
        %vm953 = vcmp.eq.s32.totalorder %v931, %v764
        %vm954 = vcmp.eq.s32.totalorder %v934, %v764
        %vm955 = vcmp.eq.s32.totalorder %v937, %v764
        %vm956 = vcmp.eq.s32.totalorder %v940, %v764
        %v957 = vsel %vm941, 1, 0
        %v958 = vsel %vm942, 1, 0
        %v959 = vsel %vm943, 1, 0
        %v960 = vsel %vm944, 1, 0
        %v961 = vsel %vm945, 1, 0
        %v962 = vsel %vm946, 1, 0
        %v963 = vsel %vm947, 1, 0
        %v964 = vsel %vm948, 1, 0
        %v965 = vsel %vm949, 1, 0
        %v966 = vsel %vm950, 1, 0
        %v967 = vsel %vm951, 1, 0
        %v968 = vsel %vm952, 1, 0
        %v969 = vsel %vm953, 1, 0
        %v970 = vsel %vm954, 1, 0
        %v971 = vsel %vm955, 1, 0
        %v972 = vsel %vm956, 1, 0
        %v973 = vcvt.s32.f32 %v957
        %v974 = vcvt.s32.f32 %v958
        %v975 = vcvt.s32.f32 %v959
        %v976 = vcvt.s32.f32 %v960
        %v977 = vcvt.s32.f32 %v961
        %v978 = vcvt.s32.f32 %v962
        %v979 = vcvt.s32.f32 %v963
        %v980 = vcvt.s32.f32 %v964
        %v981 = vcvt.s32.f32 %v965
        %v982 = vcvt.s32.f32 %v966
        %v983 = vcvt.s32.f32 %v967
        %v984 = vcvt.s32.f32 %v968
        %v985 = vcvt.s32.f32 %v969
        %v986 = vcvt.s32.f32 %v970
        %v987 = vcvt.s32.f32 %v971
        %v988 = vcvt.s32.f32 %v972
        %v989 = vld [vmem:[%s4] sm:$0xff]
        %v990 = vld [vmem:[%s4 + $0x8] sm:$0xf]
        %vm991 = vcmask 97280
        %v993 = vsel %vm991, %v861, 0
        %v996 = vsel %vm991, %v862, 0
        %v999 = vsel %vm991, %v863, 0
        %v1002 = vsel %vm991, %v864, 0
        %v1005 = vsel %vm991, %v865, 0
        %v1008 = vsel %vm991, %v866, 0
        %v1011 = vsel %vm991, %v867, 0
        %v1014 = vsel %vm991, %v868, 0
        %v1017 = vsel %vm991, %v869, 0
        %v1020 = vsel %vm991, %v870, 0
        %v1023 = vsel %vm991, %v871, 0
        %v1026 = vsel %vm991, %v872, 0
        %v1029 = vsel %vm991, %v873, 0
        %v1032 = vsel %vm991, %v874, 0
        %v1035 = vsel %vm991, %v875, 0
        %v1038 = vsel %vm991, %v876, 0
        %vm1040 = vcmask 1043456
        %v1042 = vsel %vm1040, %v990, 0
        %1044 = vmatprep.subr.mxu0 0.0
        %1045 = vmatpush1.msra.mxu0 0.0
        %1046 = vmatprep.subr.mxu0 0.0
        %1047 = vmatpush1.msra.mxu0 0.0
        %1048 = vmatprep.subr.mxu0 0.0
        %1049 = vmatpush1.msra.mxu0 0.0
        %1050 = vmatprep.subr.mxu0 0.0
        %1051 = vmatpush1.msra.mxu0 0.0
        %1052 = vmatprep.subr.mxu0 0.0
        %1053 = vmatpush1.msra.mxu0 0.0
        %1054 = vmatprep.subr.mxu0 0.0
        %1055 = vmatpush1.msra.mxu0 0.0
        %1056 = vmatprep.subr.mxu0 0.0
        %1057 = vmatpush1.msra.mxu0 0.0
        %1058 = vmatprep.subr.mxu0 0.0
        %1059 = vmatpush1.msra.mxu0 0.0
        %1060 = vmatprep.subr.mxu0 0.0
        %1061 = vmatpush1.msra.mxu0 0.0
        %1062 = vmatprep.subr.mxu0 0.0
        %1063 = vmatpush1.msra.mxu0 0.0
        %1064 = vmatprep.subr.mxu0 0.0
        %1065 = vmatpush1.msra.mxu0 0.0
        %1066 = vmatprep.subr.mxu0 0.0
        %1067 = vmatpush1.msra.mxu0 0.0
        %1068 = vmatprep.subr.mxu0 0.0
        %1069 = vmatpush1.msra.mxu0 0.0
        %1070 = vmatprep.subr.mxu0 0.0
        %1071 = vmatpush1.msra.mxu0 0.0
        %1072 = vmatprep.subr.mxu0 0.0
        %1073 = vmatpush1.msra.mxu0 %v1042
        %1074 = vmatprep.subr.mxu0 0.0
        %1075 = vmatpush1.msra.mxu0 %v989
        %1076 = vmatprep.subr.mxu0 0.0
        %1077 = vmatpush2.msra.mxu0 0.0
        %1078 = vmatprep.subr.mxu0 0.0
        %1079 = vmatpush2.msra.mxu0 0.0
        %1080 = vmatprep.subr.mxu0 0.0
        %1081 = vmatpush2.msra.mxu0 0.0
        %1082 = vmatprep.subr.mxu0 0.0
        %1083 = vmatpush2.msra.mxu0 0.0
        %1084 = vmatprep.subr.mxu0 0.0
        %1085 = vmatpush2.msra.mxu0 0.0
        %1086 = vmatprep.subr.mxu0 0.0
        %1087 = vmatpush2.msra.mxu0 0.0
        %1088 = vmatprep.subr.mxu0 0.0
        %1089 = vmatpush2.msra.mxu0 0.0
        %1090 = vmatprep.subr.mxu0 0.0
        %1091 = vmatpush2.msra.mxu0 0.0
        %1092 = vmatprep.subr.mxu0 0.0
        %1093 = vmatpush2.msra.mxu0 0.0
        %1094 = vmatprep.subr.mxu0 0.0
        %1095 = vmatpush2.msra.mxu0 0.0
        %1096 = vmatprep.subr.mxu0 0.0
        %1097 = vmatpush2.msra.mxu0 0.0
        %1098 = vmatprep.subr.mxu0 0.0
        %1099 = vmatpush2.msra.mxu0 0.0
        %1100 = vmatprep.subr.mxu0 0.0
        %1101 = vmatpush2.msra.mxu0 0.0
        %1102 = vmatprep.subr.mxu0 0.0
        %1103 = vmatpush2.msra.mxu0 0.0
        %1104 = vmatprep.subr.mxu0 0.0
        %1105 = vmatpush2.msra.mxu0 0.0
        %1106 = vmatprep.subr.mxu0 0.0
        %1107 = vmatpush2.msra.mxu0 0.0
        %1108 = vmatprep.mubr.f32.mxu0 0.0
        %1109 = vmatmul.mubr.f32.gmra.mxu0 %v993
        %v1110 = vpop.f32.mrf.mxu0
        %v1111 = vadd.f32 0.0, %v1110
        %v1112 = vpop.f32.mrf.mxu0
        %1113 = vmatprep.mubr.f32.mxu0 0.0
        %1114 = vmatmul.mubr.f32.gmra.mxu0 %v996
        %v1115 = vpop.f32.mrf.mxu0
        %v1116 = vadd.f32 0.0, %v1115
        %v1117 = vpop.f32.mrf.mxu0
        %1118 = vmatprep.mubr.f32.mxu0 0.0
        %1119 = vmatmul.mubr.f32.gmra.mxu0 %v999
        %v1120 = vpop.f32.mrf.mxu0
        %v1121 = vadd.f32 0.0, %v1120
        %v1122 = vpop.f32.mrf.mxu0
        %1123 = vmatprep.mubr.f32.mxu0 0.0
        %1124 = vmatmul.mubr.f32.gmra.mxu0 %v1002
        %v1125 = vpop.f32.mrf.mxu0
        %v1126 = vadd.f32 0.0, %v1125
        %v1127 = vpop.f32.mrf.mxu0
        %1128 = vmatprep.mubr.f32.mxu0 0.0
        %1129 = vmatmul.mubr.f32.gmra.mxu0 %v1005
        %v1130 = vpop.f32.mrf.mxu0
        %v1131 = vadd.f32 0.0, %v1130
        %v1132 = vpop.f32.mrf.mxu0
        %1133 = vmatprep.mubr.f32.mxu0 0.0
        %1134 = vmatmul.mubr.f32.gmra.mxu0 %v1008
        %v1135 = vpop.f32.mrf.mxu0
        %v1136 = vadd.f32 0.0, %v1135
        %v1137 = vpop.f32.mrf.mxu0
        %1138 = vmatprep.mubr.f32.mxu0 0.0
        %1139 = vmatmul.mubr.f32.gmra.mxu0 %v1011
        %v1140 = vpop.f32.mrf.mxu0
        %v1141 = vadd.f32 0.0, %v1140
        %v1142 = vpop.f32.mrf.mxu0
        %1143 = vmatprep.mubr.f32.mxu0 0.0
        %1144 = vmatmul.mubr.f32.gmra.mxu0 %v1014
        %v1145 = vpop.f32.mrf.mxu0
        %v1146 = vadd.f32 0.0, %v1145
        %v1147 = vpop.f32.mrf.mxu0
        %1148 = vmatprep.mubr.f32.mxu0 0.0
        %1149 = vmatmul.mubr.f32.gmra.mxu0 %v1017
        %v1150 = vpop.f32.mrf.mxu0
        %v1151 = vadd.f32 0.0, %v1150
        %v1152 = vpop.f32.mrf.mxu0
        %1153 = vmatprep.mubr.f32.mxu0 0.0
        %1154 = vmatmul.mubr.f32.gmra.mxu0 %v1020
        %v1155 = vpop.f32.mrf.mxu0
        %v1156 = vadd.f32 0.0, %v1155
        %v1157 = vpop.f32.mrf.mxu0
        %1158 = vmatprep.mubr.f32.mxu0 0.0
        %1159 = vmatmul.mubr.f32.gmra.mxu0 %v1023
        %v1160 = vpop.f32.mrf.mxu0
        %v1161 = vadd.f32 0.0, %v1160
        %v1162 = vpop.f32.mrf.mxu0
        %1163 = vmatprep.mubr.f32.mxu0 0.0
        %1164 = vmatmul.mubr.f32.gmra.mxu0 %v1026
        %v1165 = vpop.f32.mrf.mxu0
        %v1166 = vadd.f32 0.0, %v1165
        %v1167 = vpop.f32.mrf.mxu0
        %1168 = vmatprep.mubr.f32.mxu0 0.0
        %1169 = vmatmul.mubr.f32.gmra.mxu0 %v1029
        %v1170 = vpop.f32.mrf.mxu0
        %v1171 = vadd.f32 0.0, %v1170
        %v1172 = vpop.f32.mrf.mxu0
        %1173 = vmatprep.mubr.f32.mxu0 0.0
        %1174 = vmatmul.mubr.f32.gmra.mxu0 %v1032
        %v1175 = vpop.f32.mrf.mxu0
        %v1176 = vadd.f32 0.0, %v1175
        %v1177 = vpop.f32.mrf.mxu0
        %1178 = vmatprep.mubr.f32.mxu0 0.0
        %1179 = vmatmul.mubr.f32.gmra.mxu0 %v1035
        %v1180 = vpop.f32.mrf.mxu0
        %v1181 = vadd.f32 0.0, %v1180
        %v1182 = vpop.f32.mrf.mxu0
        %1183 = vmatprep.mubr.f32.mxu0 0.0
        %1184 = vmatmul.mubr.f32.gmra.mxu0 %v1038
        %v1185 = vpop.f32.mrf.mxu0
        %v1186 = vadd.f32 0.0, %v1185
        %v1187 = vpop.f32.mrf.mxu0
        %1188 = vdwg.mxu0
        %v1190 = vsel %vm991, %v973, 0
        %v1193 = vsel %vm991, %v974, 0
        %v1196 = vsel %vm991, %v975, 0
        %v1199 = vsel %vm991, %v976, 0
        %v1202 = vsel %vm991, %v977, 0
        %v1205 = vsel %vm991, %v978, 0
        %v1208 = vsel %vm991, %v979, 0
        %v1211 = vsel %vm991, %v980, 0
        %v1214 = vsel %vm991, %v981, 0
        %v1217 = vsel %vm991, %v982, 0
        %v1220 = vsel %vm991, %v983, 0
        %v1223 = vsel %vm991, %v984, 0
        %v1226 = vsel %vm991, %v985, 0
        %v1229 = vsel %vm991, %v986, 0
        %v1232 = vsel %vm991, %v987, 0
        %v1235 = vsel %vm991, %v988, 0
        %1237 = vmatprep.subr.mxu0 0.0
        %1238 = vmatpush1.msra.mxu0 0.0
        %1239 = vmatprep.subr.mxu0 0.0
        %1240 = vmatpush1.msra.mxu0 0.0
        %1241 = vmatprep.subr.mxu0 0.0
        %1242 = vmatpush1.msra.mxu0 0.0
        %1243 = vmatprep.subr.mxu0 0.0
        %1244 = vmatpush1.msra.mxu0 0.0
        %1245 = vmatprep.subr.mxu0 0.0
        %1246 = vmatpush1.msra.mxu0 0.0
        %1247 = vmatprep.subr.mxu0 0.0
        %1248 = vmatpush1.msra.mxu0 0.0
        %1249 = vmatprep.subr.mxu0 0.0
        %1250 = vmatpush1.msra.mxu0 0.0
        %1251 = vmatprep.subr.mxu0 0.0
        %1252 = vmatpush1.msra.mxu0 0.0
        %1253 = vmatprep.subr.mxu0 0.0
        %1254 = vmatpush1.msra.mxu0 0.0
        %1255 = vmatprep.subr.mxu0 0.0
        %1256 = vmatpush1.msra.mxu0 0.0
        %1257 = vmatprep.subr.mxu0 0.0
        %1258 = vmatpush1.msra.mxu0 0.0
        %1259 = vmatprep.subr.mxu0 0.0
        %1260 = vmatpush1.msra.mxu0 0.0
        %1261 = vmatprep.subr.mxu0 0.0
        %1262 = vmatpush1.msra.mxu0 0.0
        %1263 = vmatprep.subr.mxu0 0.0
        %1264 = vmatpush1.msra.mxu0 0.0
        %1265 = vmatprep.subr.mxu0 0.0
        %1266 = vmatpush1.msra.mxu0 %v1042
        %1267 = vmatprep.subr.mxu0 0.0
        %1268 = vmatpush1.msra.mxu0 %v989
        %1269 = vmatprep.subr.mxu0 0.0
        %1270 = vmatpush2.msra.mxu0 0.0
        %1271 = vmatprep.subr.mxu0 0.0
        %1272 = vmatpush2.msra.mxu0 0.0
        %1273 = vmatprep.subr.mxu0 0.0
        %1274 = vmatpush2.msra.mxu0 0.0
        %1275 = vmatprep.subr.mxu0 0.0
        %1276 = vmatpush2.msra.mxu0 0.0
        %1277 = vmatprep.subr.mxu0 0.0
        %1278 = vmatpush2.msra.mxu0 0.0
        %1279 = vmatprep.subr.mxu0 0.0
        %1280 = vmatpush2.msra.mxu0 0.0
        %1281 = vmatprep.subr.mxu0 0.0
        %1282 = vmatpush2.msra.mxu0 0.0
        %1283 = vmatprep.subr.mxu0 0.0
        %1284 = vmatpush2.msra.mxu0 0.0
        %1285 = vmatprep.subr.mxu0 0.0
        %1286 = vmatpush2.msra.mxu0 0.0
        %1287 = vmatprep.subr.mxu0 0.0
        %1288 = vmatpush2.msra.mxu0 0.0
        %1289 = vmatprep.subr.mxu0 0.0
        %1290 = vmatpush2.msra.mxu0 0.0
        %1291 = vmatprep.subr.mxu0 0.0
        %1292 = vmatpush2.msra.mxu0 0.0
        %1293 = vmatprep.subr.mxu0 0.0
        %1294 = vmatpush2.msra.mxu0 0.0
        %1295 = vmatprep.subr.mxu0 0.0
        %1296 = vmatpush2.msra.mxu0 0.0
        %1297 = vmatprep.subr.mxu0 0.0
        %1298 = vmatpush2.msra.mxu0 0.0
        %1299 = vmatprep.subr.mxu0 0.0
        %1300 = vmatpush2.msra.mxu0 0.0
        %1301 = vmatprep.mubr.f32.mxu0 0.0
        %1302 = vmatmul.mubr.f32.gmra.mxu0 %v1190
        %v1303 = vpop.f32.mrf.mxu0
        %v1304 = vadd.f32 0.0, %v1303
        %v1305 = vpop.f32.mrf.mxu0
        %1306 = vmatprep.mubr.f32.mxu0 0.0
        %1307 = vmatmul.mubr.f32.gmra.mxu0 %v1193
        %v1308 = vpop.f32.mrf.mxu0
        %v1309 = vadd.f32 0.0, %v1308
        %v1310 = vpop.f32.mrf.mxu0
        %1311 = vmatprep.mubr.f32.mxu0 0.0
        %1312 = vmatmul.mubr.f32.gmra.mxu0 %v1196
        %v1313 = vpop.f32.mrf.mxu0
        %v1314 = vadd.f32 0.0, %v1313
        %v1315 = vpop.f32.mrf.mxu0
        %1316 = vmatprep.mubr.f32.mxu0 0.0
        %1317 = vmatmul.mubr.f32.gmra.mxu0 %v1199
        %v1318 = vpop.f32.mrf.mxu0
        %v1319 = vadd.f32 0.0, %v1318
        %v1320 = vpop.f32.mrf.mxu0
        %1321 = vmatprep.mubr.f32.mxu0 0.0
        %1322 = vmatmul.mubr.f32.gmra.mxu0 %v1202
        %v1323 = vpop.f32.mrf.mxu0
        %v1324 = vadd.f32 0.0, %v1323
        %v1325 = vpop.f32.mrf.mxu0
        %1326 = vmatprep.mubr.f32.mxu0 0.0
        %1327 = vmatmul.mubr.f32.gmra.mxu0 %v1205
        %v1328 = vpop.f32.mrf.mxu0
        %v1329 = vadd.f32 0.0, %v1328
        %v1330 = vpop.f32.mrf.mxu0
        %1331 = vmatprep.mubr.f32.mxu0 0.0
        %1332 = vmatmul.mubr.f32.gmra.mxu0 %v1208
        %v1333 = vpop.f32.mrf.mxu0
        %v1334 = vadd.f32 0.0, %v1333
        %v1335 = vpop.f32.mrf.mxu0
        %1336 = vmatprep.mubr.f32.mxu0 0.0
        %1337 = vmatmul.mubr.f32.gmra.mxu0 %v1211
        %v1338 = vpop.f32.mrf.mxu0
        %v1339 = vadd.f32 0.0, %v1338
        %v1340 = vpop.f32.mrf.mxu0
        %1341 = vmatprep.mubr.f32.mxu0 0.0
        %1342 = vmatmul.mubr.f32.gmra.mxu0 %v1214
        %v1343 = vpop.f32.mrf.mxu0
        %v1344 = vadd.f32 0.0, %v1343
        %v1345 = vpop.f32.mrf.mxu0
        %1346 = vmatprep.mubr.f32.mxu0 0.0
        %1347 = vmatmul.mubr.f32.gmra.mxu0 %v1217
        %v1348 = vpop.f32.mrf.mxu0
        %v1349 = vadd.f32 0.0, %v1348
        %v1350 = vpop.f32.mrf.mxu0
        %1351 = vmatprep.mubr.f32.mxu0 0.0
        %1352 = vmatmul.mubr.f32.gmra.mxu0 %v1220
        %v1353 = vpop.f32.mrf.mxu0
        %v1354 = vadd.f32 0.0, %v1353
        %v1355 = vpop.f32.mrf.mxu0
        %1356 = vmatprep.mubr.f32.mxu0 0.0
        %1357 = vmatmul.mubr.f32.gmra.mxu0 %v1223
        %v1358 = vpop.f32.mrf.mxu0
        %v1359 = vadd.f32 0.0, %v1358
        %v1360 = vpop.f32.mrf.mxu0
        %1361 = vmatprep.mubr.f32.mxu0 0.0
        %1362 = vmatmul.mubr.f32.gmra.mxu0 %v1226
        %v1363 = vpop.f32.mrf.mxu0
        %v1364 = vadd.f32 0.0, %v1363
        %v1365 = vpop.f32.mrf.mxu0
        %1366 = vmatprep.mubr.f32.mxu0 0.0
        %1367 = vmatmul.mubr.f32.gmra.mxu0 %v1229
        %v1368 = vpop.f32.mrf.mxu0
        %v1369 = vadd.f32 0.0, %v1368
        %v1370 = vpop.f32.mrf.mxu0
        %1371 = vmatprep.mubr.f32.mxu0 0.0
        %1372 = vmatmul.mubr.f32.gmra.mxu0 %v1232
        %v1373 = vpop.f32.mrf.mxu0
        %v1374 = vadd.f32 0.0, %v1373
        %v1375 = vpop.f32.mrf.mxu0
        %1376 = vmatprep.mubr.f32.mxu0 0.0
        %1377 = vmatmul.mubr.f32.gmra.mxu0 %v1235
        %v1378 = vpop.f32.mrf.mxu0
        %v1379 = vadd.f32 0.0, %v1378
        %v1380 = vpop.f32.mrf.mxu0
        %1381 = vdwg.mxu0
        %v1382 = vld [vmem:[%s753] sm:$0xff]
        %v1383 = vld [vmem:[%s753 + $0x8] sm:$0xff]
        %v1384 = vld [vmem:[%s753 + $0x10] sm:$0xff]
        %v1385 = vld [vmem:[%s753 + $0x18] sm:$0xff]
        %v1386 = vld [vmem:[%s753 + $0x20] sm:$0xff]
        %v1387 = vld [vmem:[%s753 + $0x28] sm:$0xff]
        %v1388 = vld [vmem:[%s753 + $0x30] sm:$0xff]
        %v1389 = vld [vmem:[%s753 + $0x38] sm:$0xff]
        %v1390 = vld [vmem:[%s753 + $0x40] sm:$0xff]
        %v1391 = vld [vmem:[%s753 + $0x48] sm:$0xff]
        %v1392 = vld [vmem:[%s753 + $0x50] sm:$0xff]
        %v1393 = vld [vmem:[%s753 + $0x58] sm:$0xff]
        %v1394 = vld [vmem:[%s753 + $0x60] sm:$0xff]
        %v1395 = vld [vmem:[%s753 + $0x68] sm:$0xff]
        %v1396 = vld [vmem:[%s753 + $0x70] sm:$0xff]
        %v1397 = vld [vmem:[%s753 + $0x78] sm:$0xff]
        %v1398 = vld [vmem:[%s6] sm:$0xff]
        %v1399 = vld [vmem:[%s6 + $0x8] sm:$0xff]
        %v1400 = vld [vmem:[%s7] sm:$0xff]
        %v1401 = vld [vmem:[%s7 + $0x8] sm:$0xff]
        %vm1402 = vcmask 130048
        %v1404 = vsel %vm1402, %v1304, 0
        %v1407 = vsel %vm1402, %v1309, 0
        %v1410 = vsel %vm1402, %v1314, 0
        %v1413 = vsel %vm1402, %v1319, 0
        %v1416 = vsel %vm1402, %v1324, 0
        %v1419 = vsel %vm1402, %v1329, 0
        %v1422 = vsel %vm1402, %v1334, 0
        %v1425 = vsel %vm1402, %v1339, 0
        %v1428 = vsel %vm1402, %v1344, 0
        %v1431 = vsel %vm1402, %v1349, 0
        %v1434 = vsel %vm1402, %v1354, 0
        %v1437 = vsel %vm1402, %v1359, 0
        %v1440 = vsel %vm1402, %v1364, 0
        %v1443 = vsel %vm1402, %v1369, 0
        %v1446 = vsel %vm1402, %v1374, 0
        %v1449 = vsel %vm1402, %v1379, 0
        %1451 = vmatprep.subr.mxu0 0.0
        %1452 = vmatpush1.msra.mxu0 0.0
        %1453 = vmatprep.subr.mxu0 0.0
        %1454 = vmatpush1.msra.mxu0 0.0
        %1455 = vmatprep.subr.mxu0 0.0
        %1456 = vmatpush1.msra.mxu0 0.0
        %1457 = vmatprep.subr.mxu0 0.0
        %1458 = vmatpush1.msra.mxu0 0.0
        %1459 = vmatprep.subr.mxu0 0.0
        %1460 = vmatpush1.msra.mxu0 0.0
        %1461 = vmatprep.subr.mxu0 0.0
        %1462 = vmatpush1.msra.mxu0 0.0
        %1463 = vmatprep.subr.mxu0 0.0
        %1464 = vmatpush1.msra.mxu0 0.0
        %1465 = vmatprep.subr.mxu0 0.0
        %1466 = vmatpush1.msra.mxu0 0.0
        %1467 = vmatprep.subr.mxu0 0.0
        %1468 = vmatpush1.msra.mxu0 0.0
        %1469 = vmatprep.subr.mxu0 0.0
        %1470 = vmatpush1.msra.mxu0 0.0
        %1471 = vmatprep.subr.mxu0 0.0
        %1472 = vmatpush1.msra.mxu0 0.0
        %1473 = vmatprep.subr.mxu0 0.0
        %1474 = vmatpush1.msra.mxu0 0.0
        %1475 = vmatprep.subr.mxu0 0.0
        %1476 = vmatpush1.msra.mxu0 0.0
        %1477 = vmatprep.subr.mxu0 0.0
        %1478 = vmatpush1.msra.mxu0 0.0
        %1479 = vmatprep.subr.mxu0 0.0
        %1480 = vmatpush1.msra.mxu0 %v1401
        %1481 = vmatprep.subr.mxu0 0.0
        %1482 = vmatpush1.msra.mxu0 %v1400
        %1483 = vmatprep.subr.mxu0 0.0
        %1484 = vmatpush2.msra.mxu0 0.0
        %1485 = vmatprep.subr.mxu0 0.0
        %1486 = vmatpush2.msra.mxu0 0.0
        %1487 = vmatprep.subr.mxu0 0.0
        %1488 = vmatpush2.msra.mxu0 0.0
        %1489 = vmatprep.subr.mxu0 0.0
        %1490 = vmatpush2.msra.mxu0 0.0
        %1491 = vmatprep.subr.mxu0 0.0
        %1492 = vmatpush2.msra.mxu0 0.0
        %1493 = vmatprep.subr.mxu0 0.0
        %1494 = vmatpush2.msra.mxu0 0.0
        %1495 = vmatprep.subr.mxu0 0.0
        %1496 = vmatpush2.msra.mxu0 0.0
        %1497 = vmatprep.subr.mxu0 0.0
        %1498 = vmatpush2.msra.mxu0 0.0
        %1499 = vmatprep.subr.mxu0 0.0
        %1500 = vmatpush2.msra.mxu0 0.0
        %1501 = vmatprep.subr.mxu0 0.0
        %1502 = vmatpush2.msra.mxu0 0.0
        %1503 = vmatprep.subr.mxu0 0.0
        %1504 = vmatpush2.msra.mxu0 0.0
        %1505 = vmatprep.subr.mxu0 0.0
        %1506 = vmatpush2.msra.mxu0 0.0
        %1507 = vmatprep.subr.mxu0 0.0
        %1508 = vmatpush2.msra.mxu0 0.0
        %1509 = vmatprep.subr.mxu0 0.0
        %1510 = vmatpush2.msra.mxu0 0.0
        %1511 = vmatprep.subr.mxu0 0.0
        %1512 = vmatpush2.msra.mxu0 0.0
        %1513 = vmatprep.subr.mxu0 0.0
        %1514 = vmatpush2.msra.mxu0 0.0
        %1515 = vmatprep.mubr.f32.mxu0 0.0
        %1516 = vmatmul.mubr.f32.gmra.mxu0 %v1404
        %v1517 = vpop.f32.mrf.mxu0
        %v1518 = vadd.f32 0.0, %v1517
        %v1519 = vpop.f32.mrf.mxu0
        %1520 = vmatprep.mubr.f32.mxu0 0.0
        %1521 = vmatmul.mubr.f32.gmra.mxu0 %v1407
        %v1522 = vpop.f32.mrf.mxu0
        %v1523 = vadd.f32 0.0, %v1522
        %v1524 = vpop.f32.mrf.mxu0
        %1525 = vmatprep.mubr.f32.mxu0 0.0
        %1526 = vmatmul.mubr.f32.gmra.mxu0 %v1410
        %v1527 = vpop.f32.mrf.mxu0
        %v1528 = vadd.f32 0.0, %v1527
        %v1529 = vpop.f32.mrf.mxu0
        %1530 = vmatprep.mubr.f32.mxu0 0.0
        %1531 = vmatmul.mubr.f32.gmra.mxu0 %v1413
        %v1532 = vpop.f32.mrf.mxu0
        %v1533 = vadd.f32 0.0, %v1532
        %v1534 = vpop.f32.mrf.mxu0
        %1535 = vmatprep.mubr.f32.mxu0 0.0
        %1536 = vmatmul.mubr.f32.gmra.mxu0 %v1416
        %v1537 = vpop.f32.mrf.mxu0
        %v1538 = vadd.f32 0.0, %v1537
        %v1539 = vpop.f32.mrf.mxu0
        %1540 = vmatprep.mubr.f32.mxu0 0.0
        %1541 = vmatmul.mubr.f32.gmra.mxu0 %v1419
        %v1542 = vpop.f32.mrf.mxu0
        %v1543 = vadd.f32 0.0, %v1542
        %v1544 = vpop.f32.mrf.mxu0
        %1545 = vmatprep.mubr.f32.mxu0 0.0
        %1546 = vmatmul.mubr.f32.gmra.mxu0 %v1422
        %v1547 = vpop.f32.mrf.mxu0
        %v1548 = vadd.f32 0.0, %v1547
        %v1549 = vpop.f32.mrf.mxu0
        %1550 = vmatprep.mubr.f32.mxu0 0.0
        %1551 = vmatmul.mubr.f32.gmra.mxu0 %v1425
        %v1552 = vpop.f32.mrf.mxu0
        %v1553 = vadd.f32 0.0, %v1552
        %v1554 = vpop.f32.mrf.mxu0
        %1555 = vmatprep.mubr.f32.mxu0 0.0
        %1556 = vmatmul.mubr.f32.gmra.mxu0 %v1428
        %v1557 = vpop.f32.mrf.mxu0
        %v1558 = vadd.f32 0.0, %v1557
        %v1559 = vpop.f32.mrf.mxu0
        %1560 = vmatprep.mubr.f32.mxu0 0.0
        %1561 = vmatmul.mubr.f32.gmra.mxu0 %v1431
        %v1562 = vpop.f32.mrf.mxu0
        %v1563 = vadd.f32 0.0, %v1562
        %v1564 = vpop.f32.mrf.mxu0
        %1565 = vmatprep.mubr.f32.mxu0 0.0
        %1566 = vmatmul.mubr.f32.gmra.mxu0 %v1434
        %v1567 = vpop.f32.mrf.mxu0
        %v1568 = vadd.f32 0.0, %v1567
        %v1569 = vpop.f32.mrf.mxu0
        %1570 = vmatprep.mubr.f32.mxu0 0.0
        %1571 = vmatmul.mubr.f32.gmra.mxu0 %v1437
        %v1572 = vpop.f32.mrf.mxu0
        %v1573 = vadd.f32 0.0, %v1572
        %v1574 = vpop.f32.mrf.mxu0
        %1575 = vmatprep.mubr.f32.mxu0 0.0
        %1576 = vmatmul.mubr.f32.gmra.mxu0 %v1440
        %v1577 = vpop.f32.mrf.mxu0
        %v1578 = vadd.f32 0.0, %v1577
        %v1579 = vpop.f32.mrf.mxu0
        %1580 = vmatprep.mubr.f32.mxu0 0.0
        %1581 = vmatmul.mubr.f32.gmra.mxu0 %v1443
        %v1582 = vpop.f32.mrf.mxu0
        %v1583 = vadd.f32 0.0, %v1582
        %v1584 = vpop.f32.mrf.mxu0
        %1585 = vmatprep.mubr.f32.mxu0 0.0
        %1586 = vmatmul.mubr.f32.gmra.mxu0 %v1446
        %v1587 = vpop.f32.mrf.mxu0
        %v1588 = vadd.f32 0.0, %v1587
        %v1589 = vpop.f32.mrf.mxu0
        %1590 = vmatprep.mubr.f32.mxu0 0.0
        %1591 = vmatmul.mubr.f32.gmra.mxu0 %v1449
        %v1592 = vpop.f32.mrf.mxu0
        %v1593 = vadd.f32 0.0, %v1592
        %v1594 = vpop.f32.mrf.mxu0
        %1595 = vdwg.mxu0
        %v1597 = vsel %vm1402, %v1111, 0
        %v1600 = vsel %vm1402, %v1116, 0
        %v1603 = vsel %vm1402, %v1121, 0
        %v1606 = vsel %vm1402, %v1126, 0
        %v1609 = vsel %vm1402, %v1131, 0
        %v1612 = vsel %vm1402, %v1136, 0
        %v1615 = vsel %vm1402, %v1141, 0
        %v1618 = vsel %vm1402, %v1146, 0
        %v1621 = vsel %vm1402, %v1151, 0
        %v1624 = vsel %vm1402, %v1156, 0
        %v1627 = vsel %vm1402, %v1161, 0
        %v1630 = vsel %vm1402, %v1166, 0
        %v1633 = vsel %vm1402, %v1171, 0
        %v1636 = vsel %vm1402, %v1176, 0
        %v1639 = vsel %vm1402, %v1181, 0
        %v1642 = vsel %vm1402, %v1186, 0
        %1644 = vmatprep.subr.mxu0 0.0
        %1645 = vmatpush1.msra.mxu0 0.0
        %1646 = vmatprep.subr.mxu0 0.0
        %1647 = vmatpush1.msra.mxu0 0.0
        %1648 = vmatprep.subr.mxu0 0.0
        %1649 = vmatpush1.msra.mxu0 0.0
        %1650 = vmatprep.subr.mxu0 0.0
        %1651 = vmatpush1.msra.mxu0 0.0
        %1652 = vmatprep.subr.mxu0 0.0
        %1653 = vmatpush1.msra.mxu0 0.0
        %1654 = vmatprep.subr.mxu0 0.0
        %1655 = vmatpush1.msra.mxu0 0.0
        %1656 = vmatprep.subr.mxu0 0.0
        %1657 = vmatpush1.msra.mxu0 0.0
        %1658 = vmatprep.subr.mxu0 0.0
        %1659 = vmatpush1.msra.mxu0 0.0
        %1660 = vmatprep.subr.mxu0 0.0
        %1661 = vmatpush1.msra.mxu0 0.0
        %1662 = vmatprep.subr.mxu0 0.0
        %1663 = vmatpush1.msra.mxu0 0.0
        %1664 = vmatprep.subr.mxu0 0.0
        %1665 = vmatpush1.msra.mxu0 0.0
        %1666 = vmatprep.subr.mxu0 0.0
        %1667 = vmatpush1.msra.mxu0 0.0
        %1668 = vmatprep.subr.mxu0 0.0
        %1669 = vmatpush1.msra.mxu0 0.0
        %1670 = vmatprep.subr.mxu0 0.0
        %1671 = vmatpush1.msra.mxu0 0.0
        %1672 = vmatprep.subr.mxu0 0.0
        %1673 = vmatpush1.msra.mxu0 %v1399
        %1674 = vmatprep.subr.mxu0 0.0
        %1675 = vmatpush1.msra.mxu0 %v1398
        %1676 = vmatprep.subr.mxu0 0.0
        %1677 = vmatpush2.msra.mxu0 0.0
        %1678 = vmatprep.subr.mxu0 0.0
        %1679 = vmatpush2.msra.mxu0 0.0
        %1680 = vmatprep.subr.mxu0 0.0
        %1681 = vmatpush2.msra.mxu0 0.0
        %1682 = vmatprep.subr.mxu0 0.0
        %1683 = vmatpush2.msra.mxu0 0.0
        %1684 = vmatprep.subr.mxu0 0.0
        %1685 = vmatpush2.msra.mxu0 0.0
        %1686 = vmatprep.subr.mxu0 0.0
        %1687 = vmatpush2.msra.mxu0 0.0
        %1688 = vmatprep.subr.mxu0 0.0
        %1689 = vmatpush2.msra.mxu0 0.0
        %1690 = vmatprep.subr.mxu0 0.0
        %1691 = vmatpush2.msra.mxu0 0.0
        %1692 = vmatprep.subr.mxu0 0.0
        %1693 = vmatpush2.msra.mxu0 0.0
        %1694 = vmatprep.subr.mxu0 0.0
        %1695 = vmatpush2.msra.mxu0 0.0
        %1696 = vmatprep.subr.mxu0 0.0
        %1697 = vmatpush2.msra.mxu0 0.0
        %1698 = vmatprep.subr.mxu0 0.0
        %1699 = vmatpush2.msra.mxu0 0.0
        %1700 = vmatprep.subr.mxu0 0.0
        %1701 = vmatpush2.msra.mxu0 0.0
        %1702 = vmatprep.subr.mxu0 0.0
        %1703 = vmatpush2.msra.mxu0 0.0
        %1704 = vmatprep.subr.mxu0 0.0
        %1705 = vmatpush2.msra.mxu0 0.0
        %1706 = vmatprep.subr.mxu0 0.0
        %1707 = vmatpush2.msra.mxu0 0.0
        %1708 = vmatprep.mubr.f32.mxu0 0.0
        %1709 = vmatmul.mubr.f32.gmra.mxu0 %v1597
        %v1710 = vpop.f32.mrf.mxu0
        %v1711 = vadd.f32 %v1518, %v1710
        %v1712 = vpop.f32.mrf.mxu0
        %1713 = vmatprep.mubr.f32.mxu0 0.0
        %1714 = vmatmul.mubr.f32.gmra.mxu0 %v1600
        %v1715 = vpop.f32.mrf.mxu0
        %v1716 = vadd.f32 %v1523, %v1715
        %v1717 = vpop.f32.mrf.mxu0
        %1718 = vmatprep.mubr.f32.mxu0 0.0
        %1719 = vmatmul.mubr.f32.gmra.mxu0 %v1603
        %v1720 = vpop.f32.mrf.mxu0
        %v1721 = vadd.f32 %v1528, %v1720
        %v1722 = vpop.f32.mrf.mxu0
        %1723 = vmatprep.mubr.f32.mxu0 0.0
        %1724 = vmatmul.mubr.f32.gmra.mxu0 %v1606
        %v1725 = vpop.f32.mrf.mxu0
        %v1726 = vadd.f32 %v1533, %v1725
        %v1727 = vpop.f32.mrf.mxu0
        %1728 = vmatprep.mubr.f32.mxu0 0.0
        %1729 = vmatmul.mubr.f32.gmra.mxu0 %v1609
        %v1730 = vpop.f32.mrf.mxu0
        %v1731 = vadd.f32 %v1538, %v1730
        %v1732 = vpop.f32.mrf.mxu0
        %1733 = vmatprep.mubr.f32.mxu0 0.0
        %1734 = vmatmul.mubr.f32.gmra.mxu0 %v1612
        %v1735 = vpop.f32.mrf.mxu0
        %v1736 = vadd.f32 %v1543, %v1735
        %v1737 = vpop.f32.mrf.mxu0
        %1738 = vmatprep.mubr.f32.mxu0 0.0
        %1739 = vmatmul.mubr.f32.gmra.mxu0 %v1615
        %v1740 = vpop.f32.mrf.mxu0
        %v1741 = vadd.f32 %v1548, %v1740
        %v1742 = vpop.f32.mrf.mxu0
        %1743 = vmatprep.mubr.f32.mxu0 0.0
        %1744 = vmatmul.mubr.f32.gmra.mxu0 %v1618
        %v1745 = vpop.f32.mrf.mxu0
        %v1746 = vadd.f32 %v1553, %v1745
        %v1747 = vpop.f32.mrf.mxu0
        %1748 = vmatprep.mubr.f32.mxu0 0.0
        %1749 = vmatmul.mubr.f32.gmra.mxu0 %v1621
        %v1750 = vpop.f32.mrf.mxu0
        %v1751 = vadd.f32 %v1558, %v1750
        %v1752 = vpop.f32.mrf.mxu0
        %1753 = vmatprep.mubr.f32.mxu0 0.0
        %1754 = vmatmul.mubr.f32.gmra.mxu0 %v1624
        %v1755 = vpop.f32.mrf.mxu0
        %v1756 = vadd.f32 %v1563, %v1755
        %v1757 = vpop.f32.mrf.mxu0
        %1758 = vmatprep.mubr.f32.mxu0 0.0
        %1759 = vmatmul.mubr.f32.gmra.mxu0 %v1627
        %v1760 = vpop.f32.mrf.mxu0
        %v1761 = vadd.f32 %v1568, %v1760
        %v1762 = vpop.f32.mrf.mxu0
        %1763 = vmatprep.mubr.f32.mxu0 0.0
        %1764 = vmatmul.mubr.f32.gmra.mxu0 %v1630
        %v1765 = vpop.f32.mrf.mxu0
        %v1766 = vadd.f32 %v1573, %v1765
        %v1767 = vpop.f32.mrf.mxu0
        %1768 = vmatprep.mubr.f32.mxu0 0.0
        %1769 = vmatmul.mubr.f32.gmra.mxu0 %v1633
        %v1770 = vpop.f32.mrf.mxu0
        %v1771 = vadd.f32 %v1578, %v1770
        %v1772 = vpop.f32.mrf.mxu0
        %1773 = vmatprep.mubr.f32.mxu0 0.0
        %1774 = vmatmul.mubr.f32.gmra.mxu0 %v1636
        %v1775 = vpop.f32.mrf.mxu0
        %v1776 = vadd.f32 %v1583, %v1775
        %v1777 = vpop.f32.mrf.mxu0
        %1778 = vmatprep.mubr.f32.mxu0 0.0
        %1779 = vmatmul.mubr.f32.gmra.mxu0 %v1639
        %v1780 = vpop.f32.mrf.mxu0
        %v1781 = vadd.f32 %v1588, %v1780
        %v1782 = vpop.f32.mrf.mxu0
        %1783 = vmatprep.mubr.f32.mxu0 0.0
        %1784 = vmatmul.mubr.f32.gmra.mxu0 %v1642
        %v1785 = vpop.f32.mrf.mxu0
        %v1786 = vadd.f32 %v1593, %v1785
        %v1787 = vpop.f32.mrf.mxu0
        %1788 = vdwg.mxu0
        %v1789 = vld [vmem:[%s8] sm:$0xff]
        %v1790 = vld [vmem:[%s8 + $0x8] sm:$0xf]
        %v1792 = vsel %vm991, %v1382, 0
        %v1795 = vsel %vm991, %v1383, 0
        %v1798 = vsel %vm991, %v1384, 0
        %v1801 = vsel %vm991, %v1385, 0
        %v1804 = vsel %vm991, %v1386, 0
        %v1807 = vsel %vm991, %v1387, 0
        %v1810 = vsel %vm991, %v1388, 0
        %v1813 = vsel %vm991, %v1389, 0
        %v1816 = vsel %vm991, %v1390, 0
        %v1819 = vsel %vm991, %v1391, 0
        %v1822 = vsel %vm991, %v1392, 0
        %v1825 = vsel %vm991, %v1393, 0
        %v1828 = vsel %vm991, %v1394, 0
        %v1831 = vsel %vm991, %v1395, 0
        %v1834 = vsel %vm991, %v1396, 0
        %v1837 = vsel %vm991, %v1397, 0
        %v1840 = vsel %vm1040, %v1790, 0
        %1842 = vmatprep.subr.mxu0 0.0
        %1843 = vmatpush1.msra.mxu0 0.0
        %1844 = vmatprep.subr.mxu0 0.0
        %1845 = vmatpush1.msra.mxu0 0.0
        %1846 = vmatprep.subr.mxu0 0.0
        %1847 = vmatpush1.msra.mxu0 0.0
        %1848 = vmatprep.subr.mxu0 0.0
        %1849 = vmatpush1.msra.mxu0 0.0
        %1850 = vmatprep.subr.mxu0 0.0
        %1851 = vmatpush1.msra.mxu0 0.0
        %1852 = vmatprep.subr.mxu0 0.0
        %1853 = vmatpush1.msra.mxu0 0.0
        %1854 = vmatprep.subr.mxu0 0.0
        %1855 = vmatpush1.msra.mxu0 0.0
        %1856 = vmatprep.subr.mxu0 0.0
        %1857 = vmatpush1.msra.mxu0 0.0
        %1858 = vmatprep.subr.mxu0 0.0
        %1859 = vmatpush1.msra.mxu0 0.0
        %1860 = vmatprep.subr.mxu0 0.0
        %1861 = vmatpush1.msra.mxu0 0.0
        %1862 = vmatprep.subr.mxu0 0.0
        %1863 = vmatpush1.msra.mxu0 0.0
        %1864 = vmatprep.subr.mxu0 0.0
        %1865 = vmatpush1.msra.mxu0 0.0
        %1866 = vmatprep.subr.mxu0 0.0
        %1867 = vmatpush1.msra.mxu0 0.0
        %1868 = vmatprep.subr.mxu0 0.0
        %1869 = vmatpush1.msra.mxu0 0.0
        %1870 = vmatprep.subr.mxu0 0.0
        %1871 = vmatpush1.msra.mxu0 %v1840
        %1872 = vmatprep.subr.mxu0 0.0
        %1873 = vmatpush1.msra.mxu0 %v1789
        %1874 = vmatprep.subr.mxu0 0.0
        %1875 = vmatpush2.msra.mxu0 0.0
        %1876 = vmatprep.subr.mxu0 0.0
        %1877 = vmatpush2.msra.mxu0 0.0
        %1878 = vmatprep.subr.mxu0 0.0
        %1879 = vmatpush2.msra.mxu0 0.0
        %1880 = vmatprep.subr.mxu0 0.0
        %1881 = vmatpush2.msra.mxu0 0.0
        %1882 = vmatprep.subr.mxu0 0.0
        %1883 = vmatpush2.msra.mxu0 0.0
        %1884 = vmatprep.subr.mxu0 0.0
        %1885 = vmatpush2.msra.mxu0 0.0
        %1886 = vmatprep.subr.mxu0 0.0
        %1887 = vmatpush2.msra.mxu0 0.0
        %1888 = vmatprep.subr.mxu0 0.0
        %1889 = vmatpush2.msra.mxu0 0.0
        %1890 = vmatprep.subr.mxu0 0.0
        %1891 = vmatpush2.msra.mxu0 0.0
        %1892 = vmatprep.subr.mxu0 0.0
        %1893 = vmatpush2.msra.mxu0 0.0
        %1894 = vmatprep.subr.mxu0 0.0
        %1895 = vmatpush2.msra.mxu0 0.0
        %1896 = vmatprep.subr.mxu0 0.0
        %1897 = vmatpush2.msra.mxu0 0.0
        %1898 = vmatprep.subr.mxu0 0.0
        %1899 = vmatpush2.msra.mxu0 0.0
        %1900 = vmatprep.subr.mxu0 0.0
        %1901 = vmatpush2.msra.mxu0 0.0
        %1902 = vmatprep.subr.mxu0 0.0
        %1903 = vmatpush2.msra.mxu0 0.0
        %1904 = vmatprep.subr.mxu0 0.0
        %1905 = vmatpush2.msra.mxu0 0.0
        %1906 = vmatprep.mubr.f32.mxu0 0.0
        %1907 = vmatmul.mubr.f32.gmra.mxu0 %v1792
        %v1908 = vpop.f32.mrf.mxu0
        %v1909 = vadd.f32 0.0, %v1908
        %v1910 = vpop.f32.mrf.mxu0
        %1911 = vmatprep.mubr.f32.mxu0 0.0
        %1912 = vmatmul.mubr.f32.gmra.mxu0 %v1795
        %v1913 = vpop.f32.mrf.mxu0
        %v1914 = vadd.f32 0.0, %v1913
        %v1915 = vpop.f32.mrf.mxu0
        %1916 = vmatprep.mubr.f32.mxu0 0.0
        %1917 = vmatmul.mubr.f32.gmra.mxu0 %v1798
        %v1918 = vpop.f32.mrf.mxu0
        %v1919 = vadd.f32 0.0, %v1918
        %v1920 = vpop.f32.mrf.mxu0
        %1921 = vmatprep.mubr.f32.mxu0 0.0
        %1922 = vmatmul.mubr.f32.gmra.mxu0 %v1801
        %v1923 = vpop.f32.mrf.mxu0
        %v1924 = vadd.f32 0.0, %v1923
        %v1925 = vpop.f32.mrf.mxu0
        %1926 = vmatprep.mubr.f32.mxu0 0.0
        %1927 = vmatmul.mubr.f32.gmra.mxu0 %v1804
        %v1928 = vpop.f32.mrf.mxu0
        %v1929 = vadd.f32 0.0, %v1928
        %v1930 = vpop.f32.mrf.mxu0
        %1931 = vmatprep.mubr.f32.mxu0 0.0
        %1932 = vmatmul.mubr.f32.gmra.mxu0 %v1807
        %v1933 = vpop.f32.mrf.mxu0
        %v1934 = vadd.f32 0.0, %v1933
        %v1935 = vpop.f32.mrf.mxu0
        %1936 = vmatprep.mubr.f32.mxu0 0.0
        %1937 = vmatmul.mubr.f32.gmra.mxu0 %v1810
        %v1938 = vpop.f32.mrf.mxu0
        %v1939 = vadd.f32 0.0, %v1938
        %v1940 = vpop.f32.mrf.mxu0
        %1941 = vmatprep.mubr.f32.mxu0 0.0
        %1942 = vmatmul.mubr.f32.gmra.mxu0 %v1813
        %v1943 = vpop.f32.mrf.mxu0
        %v1944 = vadd.f32 0.0, %v1943
        %v1945 = vpop.f32.mrf.mxu0
        %1946 = vmatprep.mubr.f32.mxu0 0.0
        %1947 = vmatmul.mubr.f32.gmra.mxu0 %v1816
        %v1948 = vpop.f32.mrf.mxu0
        %v1949 = vadd.f32 0.0, %v1948
        %v1950 = vpop.f32.mrf.mxu0
        %1951 = vmatprep.mubr.f32.mxu0 0.0
        %1952 = vmatmul.mubr.f32.gmra.mxu0 %v1819
        %v1953 = vpop.f32.mrf.mxu0
        %v1954 = vadd.f32 0.0, %v1953
        %v1955 = vpop.f32.mrf.mxu0
        %1956 = vmatprep.mubr.f32.mxu0 0.0
        %1957 = vmatmul.mubr.f32.gmra.mxu0 %v1822
        %v1958 = vpop.f32.mrf.mxu0
        %v1959 = vadd.f32 0.0, %v1958
        %v1960 = vpop.f32.mrf.mxu0
        %1961 = vmatprep.mubr.f32.mxu0 0.0
        %1962 = vmatmul.mubr.f32.gmra.mxu0 %v1825
        %v1963 = vpop.f32.mrf.mxu0
        %v1964 = vadd.f32 0.0, %v1963
        %v1965 = vpop.f32.mrf.mxu0
        %1966 = vmatprep.mubr.f32.mxu0 0.0
        %1967 = vmatmul.mubr.f32.gmra.mxu0 %v1828
        %v1968 = vpop.f32.mrf.mxu0
        %v1969 = vadd.f32 0.0, %v1968
        %v1970 = vpop.f32.mrf.mxu0
        %1971 = vmatprep.mubr.f32.mxu0 0.0
        %1972 = vmatmul.mubr.f32.gmra.mxu0 %v1831
        %v1973 = vpop.f32.mrf.mxu0
        %v1974 = vadd.f32 0.0, %v1973
        %v1975 = vpop.f32.mrf.mxu0
        %1976 = vmatprep.mubr.f32.mxu0 0.0
        %1977 = vmatmul.mubr.f32.gmra.mxu0 %v1834
        %v1978 = vpop.f32.mrf.mxu0
        %v1979 = vadd.f32 0.0, %v1978
        %v1980 = vpop.f32.mrf.mxu0
        %1981 = vmatprep.mubr.f32.mxu0 0.0
        %1982 = vmatmul.mubr.f32.gmra.mxu0 %v1837
        %v1983 = vpop.f32.mrf.mxu0
        %v1984 = vadd.f32 0.0, %v1983
        %v1985 = vpop.f32.mrf.mxu0
        %1986 = vdwg.mxu0
        %v1987 = vadd.f32 %v1711, %v1909
        %v1988 = vadd.f32 %v1716, %v1914
        %v1989 = vadd.f32 %v1721, %v1919
        %v1990 = vadd.f32 %v1726, %v1924
        %v1991 = vadd.f32 %v1731, %v1929
        %v1992 = vadd.f32 %v1736, %v1934
        %v1993 = vadd.f32 %v1741, %v1939
        %v1994 = vadd.f32 %v1746, %v1944
        %v1995 = vadd.f32 %v1751, %v1949
        %v1996 = vadd.f32 %v1756, %v1954
        %v1997 = vadd.f32 %v1761, %v1959
        %v1998 = vadd.f32 %v1766, %v1964
        %v1999 = vadd.f32 %v1771, %v1969
        %v2000 = vadd.f32 %v1776, %v1974
        %v2001 = vadd.f32 %v1781, %v1979
        %v2002 = vadd.f32 %v1786, %v1984
        %v2003 = vld [vmem:[%s9] sm:$0x1]
        %v2005 = vlaneseq
        %v2006 = vshrl.u32 %v2005, 7
        %v2007 = vsub.s32 0, %v2006
        %v2008 = vrot.slane %v2003, %v2007
        %v2010 = vadd.f32 %v1987, %v2008
        %v2011 = vadd.f32 %v1988, %v2008
        %v2012 = vadd.f32 %v1989, %v2008
        %v2013 = vadd.f32 %v1990, %v2008
        %v2014 = vadd.f32 %v1991, %v2008
        %v2015 = vadd.f32 %v1992, %v2008
        %v2016 = vadd.f32 %v1993, %v2008
        %v2017 = vadd.f32 %v1994, %v2008
        %v2018 = vadd.f32 %v1995, %v2008
        %v2019 = vadd.f32 %v1996, %v2008
        %v2020 = vadd.f32 %v1997, %v2008
        %v2021 = vadd.f32 %v1998, %v2008
        %v2022 = vadd.f32 %v1999, %v2008
        %v2023 = vadd.f32 %v2000, %v2008
        %v2024 = vadd.f32 %v2001, %v2008
        %v2025 = vadd.f32 %v2002, %v2008
        %v2026 = vxor.u32 %v2010, 2147483648
        %v2027 = vxor.u32 %v2011, 2147483648
        %v2028 = vxor.u32 %v2012, 2147483648
        %v2029 = vxor.u32 %v2013, 2147483648
        %v2030 = vxor.u32 %v2014, 2147483648
        %v2031 = vxor.u32 %v2015, 2147483648
        %v2032 = vxor.u32 %v2016, 2147483648
        %v2033 = vxor.u32 %v2017, 2147483648
        %v2034 = vxor.u32 %v2018, 2147483648
        %v2035 = vxor.u32 %v2019, 2147483648
        %v2036 = vxor.u32 %v2020, 2147483648
        %v2037 = vxor.u32 %v2021, 2147483648
        %v2038 = vxor.u32 %v2022, 2147483648
        %v2039 = vxor.u32 %v2023, 2147483648
        %v2040 = vxor.u32 %v2024, 2147483648
        %v2041 = vxor.u32 %v2025, 2147483648
        %v2042 = vmul.f32 %v2026, 1.442695
        %v2043 = vpow.pop %v2042
        %v2044 = vmul.f32 %v2027, 1.442695
        %v2045 = vpow.pop %v2044
        %v2046 = vmul.f32 %v2028, 1.442695
        %v2047 = vpow.pop %v2046
        %v2048 = vmul.f32 %v2029, 1.442695
        %v2049 = vpow.pop %v2048
        %v2050 = vmul.f32 %v2030, 1.442695
        %v2051 = vpow.pop %v2050
        %v2052 = vmul.f32 %v2031, 1.442695
        %v2053 = vpow.pop %v2052
        %v2054 = vmul.f32 %v2032, 1.442695
        %v2055 = vpow.pop %v2054
        %v2056 = vmul.f32 %v2033, 1.442695
        %v2057 = vpow.pop %v2056
        %v2058 = vmul.f32 %v2034, 1.442695
        %v2059 = vpow.pop %v2058
        %v2060 = vmul.f32 %v2035, 1.442695
        %v2061 = vpow.pop %v2060
        %v2062 = vmul.f32 %v2036, 1.442695
        %v2063 = vpow.pop %v2062
        %v2064 = vmul.f32 %v2037, 1.442695
        %v2065 = vpow.pop %v2064
        %v2066 = vmul.f32 %v2038, 1.442695
        %v2067 = vpow.pop %v2066
        %v2068 = vmul.f32 %v2039, 1.442695
        %v2069 = vpow.pop %v2068
        %v2070 = vmul.f32 %v2040, 1.442695
        %v2071 = vpow.pop %v2070
        %v2072 = vmul.f32 %v2041, 1.442695
        %v2073 = vpow.pop %v2072
        %v2074 = vadd.f32 %v2043, 1.0
        %v2075 = vadd.f32 %v2045, 1.0
        %v2076 = vadd.f32 %v2047, 1.0
        %v2077 = vadd.f32 %v2049, 1.0
        %v2078 = vadd.f32 %v2051, 1.0
        %v2079 = vadd.f32 %v2053, 1.0
        %v2080 = vadd.f32 %v2055, 1.0
        %v2081 = vadd.f32 %v2057, 1.0
        %v2082 = vadd.f32 %v2059, 1.0
        %v2083 = vadd.f32 %v2061, 1.0
        %v2084 = vadd.f32 %v2063, 1.0
        %v2085 = vadd.f32 %v2065, 1.0
        %v2086 = vadd.f32 %v2067, 1.0
        %v2087 = vadd.f32 %v2069, 1.0
        %v2088 = vadd.f32 %v2071, 1.0
        %v2089 = vadd.f32 %v2073, 1.0
        %v2090 = vrcp.pop %v2074
        %v2091 = vmul.f32 1.0, %v2090
        %v2092 = vrcp.pop %v2075
        %v2093 = vmul.f32 1.0, %v2092
        %v2094 = vrcp.pop %v2076
        %v2095 = vmul.f32 1.0, %v2094
        %v2096 = vrcp.pop %v2077
        %v2097 = vmul.f32 1.0, %v2096
        %v2098 = vrcp.pop %v2078
        %v2099 = vmul.f32 1.0, %v2098
        %v2100 = vrcp.pop %v2079
        %v2101 = vmul.f32 1.0, %v2100
        %v2102 = vrcp.pop %v2080
        %v2103 = vmul.f32 1.0, %v2102
        %v2104 = vrcp.pop %v2081
        %v2105 = vmul.f32 1.0, %v2104
        %v2106 = vrcp.pop %v2082
        %v2107 = vmul.f32 1.0, %v2106
        %v2108 = vrcp.pop %v2083
        %v2109 = vmul.f32 1.0, %v2108
        %v2110 = vrcp.pop %v2084
        %v2111 = vmul.f32 1.0, %v2110
        %v2112 = vrcp.pop %v2085
        %v2113 = vmul.f32 1.0, %v2112
        %v2114 = vrcp.pop %v2086
        %v2115 = vmul.f32 1.0, %v2114
        %v2116 = vrcp.pop %v2087
        %v2117 = vmul.f32 1.0, %v2116
        %v2118 = vrcp.pop %v2088
        %v2119 = vmul.f32 1.0, %v2118
        %v2120 = vrcp.pop %v2089
        %v2121 = vmul.f32 1.0, %v2120
        %v2122 = vmul.f32 %v2010, %v2091
        %v2123 = vmul.f32 %v2011, %v2093
        %v2124 = vmul.f32 %v2012, %v2095
        %v2125 = vmul.f32 %v2013, %v2097
        %v2126 = vmul.f32 %v2014, %v2099
        %v2127 = vmul.f32 %v2015, %v2101
        %v2128 = vmul.f32 %v2016, %v2103
        %v2129 = vmul.f32 %v2017, %v2105
        %v2130 = vmul.f32 %v2018, %v2107
        %v2131 = vmul.f32 %v2019, %v2109
        %v2132 = vmul.f32 %v2020, %v2111
        %v2133 = vmul.f32 %v2021, %v2113
        %v2134 = vmul.f32 %v2022, %v2115
        %v2135 = vmul.f32 %v2023, %v2117
        %v2136 = vmul.f32 %v2024, %v2119
        %v2137 = vmul.f32 %v2025, %v2121
        %v2138 = vld [vmem:[%s10] sm:$0xff]
        %v2139 = vld [vmem:[%s10 + $0x8] sm:$0xff]
        %v2140 = vld [vmem:[%s10 + $0x10] sm:$0xff]
        %v2141 = vld [vmem:[%s10 + $0x18] sm:$0xff]
        %v2142 = vld [vmem:[%s11] sm:$0x1]
        %v2144 = vlaneseq
        %v2145 = vshrl.u32 %v2144, 7
        %v2146 = vsub.s32 0, %v2145
        %v2147 = vrot.slane %v2142, %v2146
        %vm2149 = vcmask 261120
        %v2151 = vsel %vm2149, %v2122, 0
        %v2154 = vsel %vm2149, %v2123, 0
        %v2157 = vsel %vm2149, %v2124, 0
        %v2160 = vsel %vm2149, %v2125, 0
        %v2163 = vsel %vm2149, %v2126, 0
        %v2166 = vsel %vm2149, %v2127, 0
        %v2169 = vsel %vm2149, %v2128, 0
        %v2172 = vsel %vm2149, %v2129, 0
        %v2175 = vsel %vm2149, %v2130, 0
        %v2178 = vsel %vm2149, %v2131, 0
        %v2181 = vsel %vm2149, %v2132, 0
        %v2184 = vsel %vm2149, %v2133, 0
        %v2187 = vsel %vm2149, %v2134, 0
        %v2190 = vsel %vm2149, %v2135, 0
        %v2193 = vsel %vm2149, %v2136, 0
        %v2196 = vsel %vm2149, %v2137, 0
        %2198 = vmatprep.subr.mxu0 0.0
        %2199 = vmatpush1.msra.mxu0 0.0
        %2200 = vmatprep.subr.mxu0 0.0
        %2201 = vmatpush1.msra.mxu0 0.0
        %2202 = vmatprep.subr.mxu0 0.0
        %2203 = vmatpush1.msra.mxu0 0.0
        %2204 = vmatprep.subr.mxu0 0.0
        %2205 = vmatpush1.msra.mxu0 0.0
        %2206 = vmatprep.subr.mxu0 0.0
        %2207 = vmatpush1.msra.mxu0 0.0
        %2208 = vmatprep.subr.mxu0 0.0
        %2209 = vmatpush1.msra.mxu0 0.0
        %2210 = vmatprep.subr.mxu0 0.0
        %2211 = vmatpush1.msra.mxu0 0.0
        %2212 = vmatprep.subr.mxu0 0.0
        %2213 = vmatpush1.msra.mxu0 0.0
        %2214 = vmatprep.subr.mxu0 0.0
        %2215 = vmatpush1.msra.mxu0 0.0
        %2216 = vmatprep.subr.mxu0 0.0
        %2217 = vmatpush1.msra.mxu0 0.0
        %2218 = vmatprep.subr.mxu0 0.0
        %2219 = vmatpush1.msra.mxu0 0.0
        %2220 = vmatprep.subr.mxu0 0.0
        %2221 = vmatpush1.msra.mxu0 0.0
        %2222 = vmatprep.subr.mxu0 0.0
        %2223 = vmatpush1.msra.mxu0 %v2141
        %2224 = vmatprep.subr.mxu0 0.0
        %2225 = vmatpush1.msra.mxu0 %v2140
        %2226 = vmatprep.subr.mxu0 0.0
        %2227 = vmatpush1.msra.mxu0 %v2139
        %2228 = vmatprep.subr.mxu0 0.0
        %2229 = vmatpush1.msra.mxu0 %v2138
        %2230 = vmatprep.subr.mxu0 0.0
        %2231 = vmatpush2.msra.mxu0 0.0
        %2232 = vmatprep.subr.mxu0 0.0
        %2233 = vmatpush2.msra.mxu0 0.0
        %2234 = vmatprep.subr.mxu0 0.0
        %2235 = vmatpush2.msra.mxu0 0.0
        %2236 = vmatprep.subr.mxu0 0.0
        %2237 = vmatpush2.msra.mxu0 0.0
        %2238 = vmatprep.subr.mxu0 0.0
        %2239 = vmatpush2.msra.mxu0 0.0
        %2240 = vmatprep.subr.mxu0 0.0
        %2241 = vmatpush2.msra.mxu0 0.0
        %2242 = vmatprep.subr.mxu0 0.0
        %2243 = vmatpush2.msra.mxu0 0.0
        %2244 = vmatprep.subr.mxu0 0.0
        %2245 = vmatpush2.msra.mxu0 0.0
        %2246 = vmatprep.subr.mxu0 0.0
        %2247 = vmatpush2.msra.mxu0 0.0
        %2248 = vmatprep.subr.mxu0 0.0
        %2249 = vmatpush2.msra.mxu0 0.0
        %2250 = vmatprep.subr.mxu0 0.0
        %2251 = vmatpush2.msra.mxu0 0.0
        %2252 = vmatprep.subr.mxu0 0.0
        %2253 = vmatpush2.msra.mxu0 0.0
        %2254 = vmatprep.subr.mxu0 0.0
        %2255 = vmatpush2.msra.mxu0 0.0
        %2256 = vmatprep.subr.mxu0 0.0
        %2257 = vmatpush2.msra.mxu0 0.0
        %2258 = vmatprep.subr.mxu0 0.0
        %2259 = vmatpush2.msra.mxu0 0.0
        %2260 = vmatprep.subr.mxu0 0.0
        %2261 = vmatpush2.msra.mxu0 0.0
        %2262 = vmatprep.mubr.f32.mxu0 0.0
        %2263 = vmatmul.mubr.f32.gmra.mxu0 %v2151
        %v2264 = vpop.f32.mrf.mxu0
        %v2265 = vadd.f32 %v2147, %v2264
        %v2266 = vpop.f32.mrf.mxu0
        %2267 = vmatprep.mubr.f32.mxu0 0.0
        %2268 = vmatmul.mubr.f32.gmra.mxu0 %v2154
        %v2269 = vpop.f32.mrf.mxu0
        %v2270 = vadd.f32 %v2147, %v2269
        %v2271 = vpop.f32.mrf.mxu0
        %2272 = vmatprep.mubr.f32.mxu0 0.0
        %2273 = vmatmul.mubr.f32.gmra.mxu0 %v2157
        %v2274 = vpop.f32.mrf.mxu0
        %v2275 = vadd.f32 %v2147, %v2274
        %v2276 = vpop.f32.mrf.mxu0
        %2277 = vmatprep.mubr.f32.mxu0 0.0
        %2278 = vmatmul.mubr.f32.gmra.mxu0 %v2160
        %v2279 = vpop.f32.mrf.mxu0
        %v2280 = vadd.f32 %v2147, %v2279
        %v2281 = vpop.f32.mrf.mxu0
        %2282 = vmatprep.mubr.f32.mxu0 0.0
        %2283 = vmatmul.mubr.f32.gmra.mxu0 %v2163
        %v2284 = vpop.f32.mrf.mxu0
        %v2285 = vadd.f32 %v2147, %v2284
        %v2286 = vpop.f32.mrf.mxu0
        %2287 = vmatprep.mubr.f32.mxu0 0.0
        %2288 = vmatmul.mubr.f32.gmra.mxu0 %v2166
        %v2289 = vpop.f32.mrf.mxu0
        %v2290 = vadd.f32 %v2147, %v2289
        %v2291 = vpop.f32.mrf.mxu0
        %2292 = vmatprep.mubr.f32.mxu0 0.0
        %2293 = vmatmul.mubr.f32.gmra.mxu0 %v2169
        %v2294 = vpop.f32.mrf.mxu0
        %v2295 = vadd.f32 %v2147, %v2294
        %v2296 = vpop.f32.mrf.mxu0
        %2297 = vmatprep.mubr.f32.mxu0 0.0
        %2298 = vmatmul.mubr.f32.gmra.mxu0 %v2172
        %v2299 = vpop.f32.mrf.mxu0
        %v2300 = vadd.f32 %v2147, %v2299
        %v2301 = vpop.f32.mrf.mxu0
        %2302 = vmatprep.mubr.f32.mxu0 0.0
        %2303 = vmatmul.mubr.f32.gmra.mxu0 %v2175
        %v2304 = vpop.f32.mrf.mxu0
        %v2305 = vadd.f32 %v2147, %v2304
        %v2306 = vpop.f32.mrf.mxu0
        %2307 = vmatprep.mubr.f32.mxu0 0.0
        %2308 = vmatmul.mubr.f32.gmra.mxu0 %v2178
        %v2309 = vpop.f32.mrf.mxu0
        %v2310 = vadd.f32 %v2147, %v2309
        %v2311 = vpop.f32.mrf.mxu0
        %2312 = vmatprep.mubr.f32.mxu0 0.0
        %2313 = vmatmul.mubr.f32.gmra.mxu0 %v2181
        %v2314 = vpop.f32.mrf.mxu0
        %v2315 = vadd.f32 %v2147, %v2314
        %v2316 = vpop.f32.mrf.mxu0
        %2317 = vmatprep.mubr.f32.mxu0 0.0
        %2318 = vmatmul.mubr.f32.gmra.mxu0 %v2184
        %v2319 = vpop.f32.mrf.mxu0
        %v2320 = vadd.f32 %v2147, %v2319
        %v2321 = vpop.f32.mrf.mxu0
        %2322 = vmatprep.mubr.f32.mxu0 0.0
        %2323 = vmatmul.mubr.f32.gmra.mxu0 %v2187
        %v2324 = vpop.f32.mrf.mxu0
        %v2325 = vadd.f32 %v2147, %v2324
        %v2326 = vpop.f32.mrf.mxu0
        %2327 = vmatprep.mubr.f32.mxu0 0.0
        %2328 = vmatmul.mubr.f32.gmra.mxu0 %v2190
        %v2329 = vpop.f32.mrf.mxu0
        %v2330 = vadd.f32 %v2147, %v2329
        %v2331 = vpop.f32.mrf.mxu0
        %2332 = vmatprep.mubr.f32.mxu0 0.0
        %2333 = vmatmul.mubr.f32.gmra.mxu0 %v2193
        %v2334 = vpop.f32.mrf.mxu0
        %v2335 = vadd.f32 %v2147, %v2334
        %v2336 = vpop.f32.mrf.mxu0
        %2337 = vmatprep.mubr.f32.mxu0 0.0
        %2338 = vmatmul.mubr.f32.gmra.mxu0 %v2196
        %v2339 = vpop.f32.mrf.mxu0
        %v2340 = vadd.f32 %v2147, %v2339
        %v2341 = vpop.f32.mrf.mxu0
        %2342 = vdwg.mxu0
        %v2343 = vsel %vm2149, %v2265, 0.0
        %2344 = vadd.xlane.f32.xlu0 %v2343
        %v2345 = vpop.xlane.xlu0 %2344
        %v2346 = vsel %vm2149, %v2270, 0.0
        %2347 = vadd.xlane.f32.xlu0 %v2346
        %v2348 = vpop.xlane.xlu0 %2347
        %v2349 = vsel %vm2149, %v2275, 0.0
        %2350 = vadd.xlane.f32.xlu0 %v2349
        %v2351 = vpop.xlane.xlu0 %2350
        %v2352 = vsel %vm2149, %v2280, 0.0
        %2353 = vadd.xlane.f32.xlu0 %v2352
        %v2354 = vpop.xlane.xlu0 %2353
        %v2355 = vsel %vm2149, %v2285, 0.0
        %2356 = vadd.xlane.f32.xlu0 %v2355
        %v2357 = vpop.xlane.xlu0 %2356
        %v2358 = vsel %vm2149, %v2290, 0.0
        %2359 = vadd.xlane.f32.xlu0 %v2358
        %v2360 = vpop.xlane.xlu0 %2359
        %v2361 = vsel %vm2149, %v2295, 0.0
        %2362 = vadd.xlane.f32.xlu0 %v2361
        %v2363 = vpop.xlane.xlu0 %2362
        %v2364 = vsel %vm2149, %v2300, 0.0
        %2365 = vadd.xlane.f32.xlu0 %v2364
        %v2366 = vpop.xlane.xlu0 %2365
        %v2367 = vsel %vm2149, %v2305, 0.0
        %2368 = vadd.xlane.f32.xlu0 %v2367
        %v2369 = vpop.xlane.xlu0 %2368
        %v2370 = vsel %vm2149, %v2310, 0.0
        %2371 = vadd.xlane.f32.xlu0 %v2370
        %v2372 = vpop.xlane.xlu0 %2371
        %v2373 = vsel %vm2149, %v2315, 0.0
        %2374 = vadd.xlane.f32.xlu0 %v2373
        %v2375 = vpop.xlane.xlu0 %2374
        %v2376 = vsel %vm2149, %v2320, 0.0
        %2377 = vadd.xlane.f32.xlu0 %v2376
        %v2378 = vpop.xlane.xlu0 %2377
        %v2379 = vsel %vm2149, %v2325, 0.0
        %2380 = vadd.xlane.f32.xlu0 %v2379
        %v2381 = vpop.xlane.xlu0 %2380
        %v2382 = vsel %vm2149, %v2330, 0.0
        %2383 = vadd.xlane.f32.xlu0 %v2382
        %v2384 = vpop.xlane.xlu0 %2383
        %v2385 = vsel %vm2149, %v2335, 0.0
        %2386 = vadd.xlane.f32.xlu0 %v2385
        %v2387 = vpop.xlane.xlu0 %2386
        %v2388 = vsel %vm2149, %v2340, 0.0
        %2389 = vadd.xlane.f32.xlu0 %v2388
        %v2390 = vpop.xlane.xlu0 %2389
        %v2391 = vrcp.pop 32.0
        %v2392 = vmul.f32 %v2345, %v2391
        %v2393 = vmul.f32 %v2348, %v2391
        %v2394 = vmul.f32 %v2351, %v2391
        %v2395 = vmul.f32 %v2354, %v2391
        %v2396 = vmul.f32 %v2357, %v2391
        %v2397 = vmul.f32 %v2360, %v2391
        %v2398 = vmul.f32 %v2363, %v2391
        %v2399 = vmul.f32 %v2366, %v2391
        %v2400 = vmul.f32 %v2369, %v2391
        %v2401 = vmul.f32 %v2372, %v2391
        %v2402 = vmul.f32 %v2375, %v2391
        %v2403 = vmul.f32 %v2378, %v2391
        %v2404 = vmul.f32 %v2381, %v2391
        %v2405 = vmul.f32 %v2384, %v2391
        %v2406 = vmul.f32 %v2387, %v2391
        %v2407 = vmul.f32 %v2390, %v2391
        %v2408 = vmul.f32 %v2265, %v2265
        %v2409 = vmul.f32 %v2270, %v2270
        %v2410 = vmul.f32 %v2275, %v2275
        %v2411 = vmul.f32 %v2280, %v2280
        %v2412 = vmul.f32 %v2285, %v2285
        %v2413 = vmul.f32 %v2290, %v2290
        %v2414 = vmul.f32 %v2295, %v2295
        %v2415 = vmul.f32 %v2300, %v2300
        %v2416 = vmul.f32 %v2305, %v2305
        %v2417 = vmul.f32 %v2310, %v2310
        %v2418 = vmul.f32 %v2315, %v2315
        %v2419 = vmul.f32 %v2320, %v2320
        %v2420 = vmul.f32 %v2325, %v2325
        %v2421 = vmul.f32 %v2330, %v2330
        %v2422 = vmul.f32 %v2335, %v2335
        %v2423 = vmul.f32 %v2340, %v2340
        %v2424 = vsel %vm2149, %v2408, 0.0
        %2425 = vadd.xlane.f32.xlu0 %v2424
        %v2426 = vpop.xlane.xlu0 %2425
        %v2427 = vsel %vm2149, %v2409, 0.0
        %2428 = vadd.xlane.f32.xlu0 %v2427
        %v2429 = vpop.xlane.xlu0 %2428
        %v2430 = vsel %vm2149, %v2410, 0.0
        %2431 = vadd.xlane.f32.xlu0 %v2430
        %v2432 = vpop.xlane.xlu0 %2431
        %v2433 = vsel %vm2149, %v2411, 0.0
        %2434 = vadd.xlane.f32.xlu0 %v2433
        %v2435 = vpop.xlane.xlu0 %2434
        %v2436 = vsel %vm2149, %v2412, 0.0
        %2437 = vadd.xlane.f32.xlu0 %v2436
        %v2438 = vpop.xlane.xlu0 %2437
        %v2439 = vsel %vm2149, %v2413, 0.0
        %2440 = vadd.xlane.f32.xlu0 %v2439
        %v2441 = vpop.xlane.xlu0 %2440
        %v2442 = vsel %vm2149, %v2414, 0.0
        %2443 = vadd.xlane.f32.xlu0 %v2442
        %v2444 = vpop.xlane.xlu0 %2443
        %v2445 = vsel %vm2149, %v2415, 0.0
        %2446 = vadd.xlane.f32.xlu0 %v2445
        %v2447 = vpop.xlane.xlu0 %2446
        %v2448 = vsel %vm2149, %v2416, 0.0
        %2449 = vadd.xlane.f32.xlu0 %v2448
        %v2450 = vpop.xlane.xlu0 %2449
        %v2451 = vsel %vm2149, %v2417, 0.0
        %2452 = vadd.xlane.f32.xlu0 %v2451
        %v2453 = vpop.xlane.xlu0 %2452
        %v2454 = vsel %vm2149, %v2418, 0.0
        %2455 = vadd.xlane.f32.xlu0 %v2454
        %v2456 = vpop.xlane.xlu0 %2455
        %v2457 = vsel %vm2149, %v2419, 0.0
        %2458 = vadd.xlane.f32.xlu0 %v2457
        %v2459 = vpop.xlane.xlu0 %2458
        %v2460 = vsel %vm2149, %v2420, 0.0
        %2461 = vadd.xlane.f32.xlu0 %v2460
        %v2462 = vpop.xlane.xlu0 %2461
        %v2463 = vsel %vm2149, %v2421, 0.0
        %2464 = vadd.xlane.f32.xlu0 %v2463
        %v2465 = vpop.xlane.xlu0 %2464
        %v2466 = vsel %vm2149, %v2422, 0.0
        %2467 = vadd.xlane.f32.xlu0 %v2466
        %v2468 = vpop.xlane.xlu0 %2467
        %v2469 = vsel %vm2149, %v2423, 0.0
        %2470 = vadd.xlane.f32.xlu0 %v2469
        %v2471 = vpop.xlane.xlu0 %2470
        %v2472 = vmul.f32 %v2426, %v2391
        %v2473 = vmul.f32 %v2429, %v2391
        %v2474 = vmul.f32 %v2432, %v2391
        %v2475 = vmul.f32 %v2435, %v2391
        %v2476 = vmul.f32 %v2438, %v2391
        %v2477 = vmul.f32 %v2441, %v2391
        %v2478 = vmul.f32 %v2444, %v2391
        %v2479 = vmul.f32 %v2447, %v2391
        %v2480 = vmul.f32 %v2450, %v2391
        %v2481 = vmul.f32 %v2453, %v2391
        %v2482 = vmul.f32 %v2456, %v2391
        %v2483 = vmul.f32 %v2459, %v2391
        %v2484 = vmul.f32 %v2462, %v2391
        %v2485 = vmul.f32 %v2465, %v2391
        %v2486 = vmul.f32 %v2468, %v2391
        %v2487 = vmul.f32 %v2471, %v2391
        %v2488 = vmul.f32 %v2392, %v2392
        %v2489 = vmul.f32 %v2393, %v2393
        %v2490 = vmul.f32 %v2394, %v2394
        %v2491 = vmul.f32 %v2395, %v2395
        %v2492 = vmul.f32 %v2396, %v2396
        %v2493 = vmul.f32 %v2397, %v2397
        %v2494 = vmul.f32 %v2398, %v2398
        %v2495 = vmul.f32 %v2399, %v2399
        %v2496 = vmul.f32 %v2400, %v2400
        %v2497 = vmul.f32 %v2401, %v2401
        %v2498 = vmul.f32 %v2402, %v2402
        %v2499 = vmul.f32 %v2403, %v2403
        %v2500 = vmul.f32 %v2404, %v2404
        %v2501 = vmul.f32 %v2405, %v2405
        %v2502 = vmul.f32 %v2406, %v2406
        %v2503 = vmul.f32 %v2407, %v2407
        %v2504 = vsub.f32 %v2472, %v2488
        %v2505 = vsub.f32 %v2473, %v2489
        %v2506 = vsub.f32 %v2474, %v2490
        %v2507 = vsub.f32 %v2475, %v2491
        %v2508 = vsub.f32 %v2476, %v2492
        %v2509 = vsub.f32 %v2477, %v2493
        %v2510 = vsub.f32 %v2478, %v2494
        %v2511 = vsub.f32 %v2479, %v2495
        %v2512 = vsub.f32 %v2480, %v2496
        %v2513 = vsub.f32 %v2481, %v2497
        %v2514 = vsub.f32 %v2482, %v2498
        %v2515 = vsub.f32 %v2483, %v2499
        %v2516 = vsub.f32 %v2484, %v2500
        %v2517 = vsub.f32 %v2485, %v2501
        %v2518 = vsub.f32 %v2486, %v2502
        %v2519 = vsub.f32 %v2487, %v2503
        %v2520 = vsub.f32 %v2265, %v2392
        %v2521 = vsub.f32 %v2270, %v2393
        %v2522 = vsub.f32 %v2275, %v2394
        %v2523 = vsub.f32 %v2280, %v2395
        %v2524 = vsub.f32 %v2285, %v2396
        %v2525 = vsub.f32 %v2290, %v2397
        %v2526 = vsub.f32 %v2295, %v2398
        %v2527 = vsub.f32 %v2300, %v2399
        %v2528 = vsub.f32 %v2305, %v2400
        %v2529 = vsub.f32 %v2310, %v2401
        %v2530 = vsub.f32 %v2315, %v2402
        %v2531 = vsub.f32 %v2320, %v2403
        %v2532 = vsub.f32 %v2325, %v2404
        %v2533 = vsub.f32 %v2330, %v2405
        %v2534 = vsub.f32 %v2335, %v2406
        %v2535 = vsub.f32 %v2340, %v2407
        %v2536 = vadd.f32 %v2504, 1e-05
        %v2537 = vadd.f32 %v2505, 1e-05
        %v2538 = vadd.f32 %v2506, 1e-05
        %v2539 = vadd.f32 %v2507, 1e-05
        %v2540 = vadd.f32 %v2508, 1e-05
        %v2541 = vadd.f32 %v2509, 1e-05
        %v2542 = vadd.f32 %v2510, 1e-05
        %v2543 = vadd.f32 %v2511, 1e-05
        %v2544 = vadd.f32 %v2512, 1e-05
        %v2545 = vadd.f32 %v2513, 1e-05
        %v2546 = vadd.f32 %v2514, 1e-05
        %v2547 = vadd.f32 %v2515, 1e-05
        %v2548 = vadd.f32 %v2516, 1e-05
        %v2549 = vadd.f32 %v2517, 1e-05
        %v2550 = vadd.f32 %v2518, 1e-05
        %v2551 = vadd.f32 %v2519, 1e-05
        %v2552 = vrsqrt.pop %v2536
        %v2553 = vrsqrt.pop %v2537
        %v2554 = vrsqrt.pop %v2538
        %v2555 = vrsqrt.pop %v2539
        %v2556 = vrsqrt.pop %v2540
        %v2557 = vrsqrt.pop %v2541
        %v2558 = vrsqrt.pop %v2542
        %v2559 = vrsqrt.pop %v2543
        %v2560 = vrsqrt.pop %v2544
        %v2561 = vrsqrt.pop %v2545
        %v2562 = vrsqrt.pop %v2546
        %v2563 = vrsqrt.pop %v2547
        %v2564 = vrsqrt.pop %v2548
        %v2565 = vrsqrt.pop %v2549
        %v2566 = vrsqrt.pop %v2550
        %v2567 = vrsqrt.pop %v2551
        %v2568 = vmul.f32 %v2520, %v2552
        %v2569 = vmul.f32 %v2521, %v2553
        %v2570 = vmul.f32 %v2522, %v2554
        %v2571 = vmul.f32 %v2523, %v2555
        %v2572 = vmul.f32 %v2524, %v2556
        %v2573 = vmul.f32 %v2525, %v2557
        %v2574 = vmul.f32 %v2526, %v2558
        %v2575 = vmul.f32 %v2527, %v2559
        %v2576 = vmul.f32 %v2528, %v2560
        %v2577 = vmul.f32 %v2529, %v2561
        %v2578 = vmul.f32 %v2530, %v2562
        %v2579 = vmul.f32 %v2531, %v2563
        %v2580 = vmul.f32 %v2532, %v2564
        %v2581 = vmul.f32 %v2533, %v2565
        %v2582 = vmul.f32 %v2534, %v2566
        %v2583 = vmul.f32 %v2535, %v2567
        %v2584 = vld [vmem:[%s12] sm:$0x1]
        %v2586 = vlaneseq
        %v2587 = vshrl.u32 %v2586, 7
        %v2588 = vsub.s32 0, %v2587
        %v2589 = vrot.slane %v2584, %v2588
        %v2591 = vmul.f32 %v2568, %v2589
        %v2592 = vmul.f32 %v2569, %v2589
        %v2593 = vmul.f32 %v2570, %v2589
        %v2594 = vmul.f32 %v2571, %v2589
        %v2595 = vmul.f32 %v2572, %v2589
        %v2596 = vmul.f32 %v2573, %v2589
        %v2597 = vmul.f32 %v2574, %v2589
        %v2598 = vmul.f32 %v2575, %v2589
        %v2599 = vmul.f32 %v2576, %v2589
        %v2600 = vmul.f32 %v2577, %v2589
        %v2601 = vmul.f32 %v2578, %v2589
        %v2602 = vmul.f32 %v2579, %v2589
        %v2603 = vmul.f32 %v2580, %v2589
        %v2604 = vmul.f32 %v2581, %v2589
        %v2605 = vmul.f32 %v2582, %v2589
        %v2606 = vmul.f32 %v2583, %v2589
        %v2607 = vld [vmem:[%s13] sm:$0x1]
        %v2609 = vlaneseq
        %v2610 = vshrl.u32 %v2609, 7
        %v2611 = vsub.s32 0, %v2610
        %v2612 = vrot.slane %v2607, %v2611
        %v2614 = vadd.f32 %v2591, %v2612
        %v2615 = vadd.f32 %v2592, %v2612
        %v2616 = vadd.f32 %v2593, %v2612
        %v2617 = vadd.f32 %v2594, %v2612
        %v2618 = vadd.f32 %v2595, %v2612
        %v2619 = vadd.f32 %v2596, %v2612
        %v2620 = vadd.f32 %v2597, %v2612
        %v2621 = vadd.f32 %v2598, %v2612
        %v2622 = vadd.f32 %v2599, %v2612
        %v2623 = vadd.f32 %v2600, %v2612
        %v2624 = vadd.f32 %v2601, %v2612
        %v2625 = vadd.f32 %v2602, %v2612
        %v2626 = vadd.f32 %v2603, %v2612
        %v2627 = vadd.f32 %v2604, %v2612
        %v2628 = vadd.f32 %v2605, %v2612
        %v2629 = vadd.f32 %v2606, %v2612
        %v2630 = vld [vmem:[%s14] sm:$0xff]
        %v2631 = vld [vmem:[%s14 + $0x8] sm:$0xff]
        %v2632 = vld [vmem:[%s14 + $0x10] sm:$0xff]
        %v2633 = vld [vmem:[%s14 + $0x18] sm:$0xff]
        %v2634 = vld [vmem:[%s15] sm:$0x1]
        %v2636 = vlaneseq
        %v2637 = vshrl.u32 %v2636, 7
        %v2638 = vsub.s32 0, %v2637
        %v2639 = vrot.slane %v2634, %v2638
        %v2642 = vsel %vm2149, %v2614, 0
        %v2645 = vsel %vm2149, %v2615, 0
        %v2648 = vsel %vm2149, %v2616, 0
        %v2651 = vsel %vm2149, %v2617, 0
        %v2654 = vsel %vm2149, %v2618, 0
        %v2657 = vsel %vm2149, %v2619, 0
        %v2660 = vsel %vm2149, %v2620, 0
        %v2663 = vsel %vm2149, %v2621, 0
        %v2666 = vsel %vm2149, %v2622, 0
        %v2669 = vsel %vm2149, %v2623, 0
        %v2672 = vsel %vm2149, %v2624, 0
        %v2675 = vsel %vm2149, %v2625, 0
        %v2678 = vsel %vm2149, %v2626, 0
        %v2681 = vsel %vm2149, %v2627, 0
        %v2684 = vsel %vm2149, %v2628, 0
        %v2687 = vsel %vm2149, %v2629, 0
        %2689 = vmatprep.subr.mxu0 0.0
        %2690 = vmatpush1.msra.mxu0 0.0
        %2691 = vmatprep.subr.mxu0 0.0
        %2692 = vmatpush1.msra.mxu0 0.0
        %2693 = vmatprep.subr.mxu0 0.0
        %2694 = vmatpush1.msra.mxu0 0.0
        %2695 = vmatprep.subr.mxu0 0.0
        %2696 = vmatpush1.msra.mxu0 0.0
        %2697 = vmatprep.subr.mxu0 0.0
        %2698 = vmatpush1.msra.mxu0 0.0
        %2699 = vmatprep.subr.mxu0 0.0
        %2700 = vmatpush1.msra.mxu0 0.0
        %2701 = vmatprep.subr.mxu0 0.0
        %2702 = vmatpush1.msra.mxu0 0.0
        %2703 = vmatprep.subr.mxu0 0.0
        %2704 = vmatpush1.msra.mxu0 0.0
        %2705 = vmatprep.subr.mxu0 0.0
        %2706 = vmatpush1.msra.mxu0 0.0
        %2707 = vmatprep.subr.mxu0 0.0
        %2708 = vmatpush1.msra.mxu0 0.0
        %2709 = vmatprep.subr.mxu0 0.0
        %2710 = vmatpush1.msra.mxu0 0.0
        %2711 = vmatprep.subr.mxu0 0.0
        %2712 = vmatpush1.msra.mxu0 0.0
        %2713 = vmatprep.subr.mxu0 0.0
        %2714 = vmatpush1.msra.mxu0 %v2633
        %2715 = vmatprep.subr.mxu0 0.0
        %2716 = vmatpush1.msra.mxu0 %v2632
        %2717 = vmatprep.subr.mxu0 0.0
        %2718 = vmatpush1.msra.mxu0 %v2631
        %2719 = vmatprep.subr.mxu0 0.0
        %2720 = vmatpush1.msra.mxu0 %v2630
        %2721 = vmatprep.subr.mxu0 0.0
        %2722 = vmatpush2.msra.mxu0 0.0
        %2723 = vmatprep.subr.mxu0 0.0
        %2724 = vmatpush2.msra.mxu0 0.0
        %2725 = vmatprep.subr.mxu0 0.0
        %2726 = vmatpush2.msra.mxu0 0.0
        %2727 = vmatprep.subr.mxu0 0.0
        %2728 = vmatpush2.msra.mxu0 0.0
        %2729 = vmatprep.subr.mxu0 0.0
        %2730 = vmatpush2.msra.mxu0 0.0
        %2731 = vmatprep.subr.mxu0 0.0
        %2732 = vmatpush2.msra.mxu0 0.0
        %2733 = vmatprep.subr.mxu0 0.0
        %2734 = vmatpush2.msra.mxu0 0.0
        %2735 = vmatprep.subr.mxu0 0.0
        %2736 = vmatpush2.msra.mxu0 0.0
        %2737 = vmatprep.subr.mxu0 0.0
        %2738 = vmatpush2.msra.mxu0 0.0
        %2739 = vmatprep.subr.mxu0 0.0
        %2740 = vmatpush2.msra.mxu0 0.0
        %2741 = vmatprep.subr.mxu0 0.0
        %2742 = vmatpush2.msra.mxu0 0.0
        %2743 = vmatprep.subr.mxu0 0.0
        %2744 = vmatpush2.msra.mxu0 0.0
        %2745 = vmatprep.subr.mxu0 0.0
        %2746 = vmatpush2.msra.mxu0 0.0
        %2747 = vmatprep.subr.mxu0 0.0
        %2748 = vmatpush2.msra.mxu0 0.0
        %2749 = vmatprep.subr.mxu0 0.0
        %2750 = vmatpush2.msra.mxu0 0.0
        %2751 = vmatprep.subr.mxu0 0.0
        %2752 = vmatpush2.msra.mxu0 0.0
        %2753 = vmatprep.mubr.f32.mxu0 0.0
        %2754 = vmatmul.mubr.f32.gmra.mxu0 %v2642
        %v2755 = vpop.f32.mrf.mxu0
        %v2756 = vadd.f32 %v2639, %v2755
        %v2757 = vpop.f32.mrf.mxu0
        %2758 = vmatprep.mubr.f32.mxu0 0.0
        %2759 = vmatmul.mubr.f32.gmra.mxu0 %v2645
        %v2760 = vpop.f32.mrf.mxu0
        %v2761 = vadd.f32 %v2639, %v2760
        %v2762 = vpop.f32.mrf.mxu0
        %2763 = vmatprep.mubr.f32.mxu0 0.0
        %2764 = vmatmul.mubr.f32.gmra.mxu0 %v2648
        %v2765 = vpop.f32.mrf.mxu0
        %v2766 = vadd.f32 %v2639, %v2765
        %v2767 = vpop.f32.mrf.mxu0
        %2768 = vmatprep.mubr.f32.mxu0 0.0
        %2769 = vmatmul.mubr.f32.gmra.mxu0 %v2651
        %v2770 = vpop.f32.mrf.mxu0
        %v2771 = vadd.f32 %v2639, %v2770
        %v2772 = vpop.f32.mrf.mxu0
        %2773 = vmatprep.mubr.f32.mxu0 0.0
        %2774 = vmatmul.mubr.f32.gmra.mxu0 %v2654
        %v2775 = vpop.f32.mrf.mxu0
        %v2776 = vadd.f32 %v2639, %v2775
        %v2777 = vpop.f32.mrf.mxu0
        %2778 = vmatprep.mubr.f32.mxu0 0.0
        %2779 = vmatmul.mubr.f32.gmra.mxu0 %v2657
        %v2780 = vpop.f32.mrf.mxu0
        %v2781 = vadd.f32 %v2639, %v2780
        %v2782 = vpop.f32.mrf.mxu0
        %2783 = vmatprep.mubr.f32.mxu0 0.0
        %2784 = vmatmul.mubr.f32.gmra.mxu0 %v2660
        %v2785 = vpop.f32.mrf.mxu0
        %v2786 = vadd.f32 %v2639, %v2785
        %v2787 = vpop.f32.mrf.mxu0
        %2788 = vmatprep.mubr.f32.mxu0 0.0
        %2789 = vmatmul.mubr.f32.gmra.mxu0 %v2663
        %v2790 = vpop.f32.mrf.mxu0
        %v2791 = vadd.f32 %v2639, %v2790
        %v2792 = vpop.f32.mrf.mxu0
        %2793 = vmatprep.mubr.f32.mxu0 0.0
        %2794 = vmatmul.mubr.f32.gmra.mxu0 %v2666
        %v2795 = vpop.f32.mrf.mxu0
        %v2796 = vadd.f32 %v2639, %v2795
        %v2797 = vpop.f32.mrf.mxu0
        %2798 = vmatprep.mubr.f32.mxu0 0.0
        %2799 = vmatmul.mubr.f32.gmra.mxu0 %v2669
        %v2800 = vpop.f32.mrf.mxu0
        %v2801 = vadd.f32 %v2639, %v2800
        %v2802 = vpop.f32.mrf.mxu0
        %2803 = vmatprep.mubr.f32.mxu0 0.0
        %2804 = vmatmul.mubr.f32.gmra.mxu0 %v2672
        %v2805 = vpop.f32.mrf.mxu0
        %v2806 = vadd.f32 %v2639, %v2805
        %v2807 = vpop.f32.mrf.mxu0
        %2808 = vmatprep.mubr.f32.mxu0 0.0
        %2809 = vmatmul.mubr.f32.gmra.mxu0 %v2675
        %v2810 = vpop.f32.mrf.mxu0
        %v2811 = vadd.f32 %v2639, %v2810
        %v2812 = vpop.f32.mrf.mxu0
        %2813 = vmatprep.mubr.f32.mxu0 0.0
        %2814 = vmatmul.mubr.f32.gmra.mxu0 %v2678
        %v2815 = vpop.f32.mrf.mxu0
        %v2816 = vadd.f32 %v2639, %v2815
        %v2817 = vpop.f32.mrf.mxu0
        %2818 = vmatprep.mubr.f32.mxu0 0.0
        %2819 = vmatmul.mubr.f32.gmra.mxu0 %v2681
        %v2820 = vpop.f32.mrf.mxu0
        %v2821 = vadd.f32 %v2639, %v2820
        %v2822 = vpop.f32.mrf.mxu0
        %2823 = vmatprep.mubr.f32.mxu0 0.0
        %2824 = vmatmul.mubr.f32.gmra.mxu0 %v2684
        %v2825 = vpop.f32.mrf.mxu0
        %v2826 = vadd.f32 %v2639, %v2825
        %v2827 = vpop.f32.mrf.mxu0
        %2828 = vmatprep.mubr.f32.mxu0 0.0
        %2829 = vmatmul.mubr.f32.gmra.mxu0 %v2687
        %v2830 = vpop.f32.mrf.mxu0
        %v2831 = vadd.f32 %v2639, %v2830
        %v2832 = vpop.f32.mrf.mxu0
        %2833 = vdwg.mxu0
        %v2834 = vxor.u32 %v2756, 2147483648
        %v2835 = vxor.u32 %v2761, 2147483648
        %v2836 = vxor.u32 %v2766, 2147483648
        %v2837 = vxor.u32 %v2771, 2147483648
        %v2838 = vxor.u32 %v2776, 2147483648
        %v2839 = vxor.u32 %v2781, 2147483648
        %v2840 = vxor.u32 %v2786, 2147483648
        %v2841 = vxor.u32 %v2791, 2147483648
        %v2842 = vxor.u32 %v2796, 2147483648
        %v2843 = vxor.u32 %v2801, 2147483648
        %v2844 = vxor.u32 %v2806, 2147483648
        %v2845 = vxor.u32 %v2811, 2147483648
        %v2846 = vxor.u32 %v2816, 2147483648
        %v2847 = vxor.u32 %v2821, 2147483648
        %v2848 = vxor.u32 %v2826, 2147483648
        %v2849 = vxor.u32 %v2831, 2147483648
        %v2850 = vmul.f32 %v2834, 1.442695
        %v2851 = vpow.pop %v2850
        %v2852 = vmul.f32 %v2835, 1.442695
        %v2853 = vpow.pop %v2852
        %v2854 = vmul.f32 %v2836, 1.442695
        %v2855 = vpow.pop %v2854
        %v2856 = vmul.f32 %v2837, 1.442695
        %v2857 = vpow.pop %v2856
        %v2858 = vmul.f32 %v2838, 1.442695
        %v2859 = vpow.pop %v2858
        %v2860 = vmul.f32 %v2839, 1.442695
        %v2861 = vpow.pop %v2860
        %v2862 = vmul.f32 %v2840, 1.442695
        %v2863 = vpow.pop %v2862
        %v2864 = vmul.f32 %v2841, 1.442695
        %v2865 = vpow.pop %v2864
        %v2866 = vmul.f32 %v2842, 1.442695
        %v2867 = vpow.pop %v2866
        %v2868 = vmul.f32 %v2843, 1.442695
        %v2869 = vpow.pop %v2868
        %v2870 = vmul.f32 %v2844, 1.442695
        %v2871 = vpow.pop %v2870
        %v2872 = vmul.f32 %v2845, 1.442695
        %v2873 = vpow.pop %v2872
        %v2874 = vmul.f32 %v2846, 1.442695
        %v2875 = vpow.pop %v2874
        %v2876 = vmul.f32 %v2847, 1.442695
        %v2877 = vpow.pop %v2876
        %v2878 = vmul.f32 %v2848, 1.442695
        %v2879 = vpow.pop %v2878
        %v2880 = vmul.f32 %v2849, 1.442695
        %v2881 = vpow.pop %v2880
        %v2882 = vadd.f32 %v2851, 1.0
        %v2883 = vadd.f32 %v2853, 1.0
        %v2884 = vadd.f32 %v2855, 1.0
        %v2885 = vadd.f32 %v2857, 1.0
        %v2886 = vadd.f32 %v2859, 1.0
        %v2887 = vadd.f32 %v2861, 1.0
        %v2888 = vadd.f32 %v2863, 1.0
        %v2889 = vadd.f32 %v2865, 1.0
        %v2890 = vadd.f32 %v2867, 1.0
        %v2891 = vadd.f32 %v2869, 1.0
        %v2892 = vadd.f32 %v2871, 1.0
        %v2893 = vadd.f32 %v2873, 1.0
        %v2894 = vadd.f32 %v2875, 1.0
        %v2895 = vadd.f32 %v2877, 1.0
        %v2896 = vadd.f32 %v2879, 1.0
        %v2897 = vadd.f32 %v2881, 1.0
        %v2898 = vrcp.pop %v2882
        %v2899 = vmul.f32 1.0, %v2898
        %v2900 = vrcp.pop %v2883
        %v2901 = vmul.f32 1.0, %v2900
        %v2902 = vrcp.pop %v2884
        %v2903 = vmul.f32 1.0, %v2902
        %v2904 = vrcp.pop %v2885
        %v2905 = vmul.f32 1.0, %v2904
        %v2906 = vrcp.pop %v2886
        %v2907 = vmul.f32 1.0, %v2906
        %v2908 = vrcp.pop %v2887
        %v2909 = vmul.f32 1.0, %v2908
        %v2910 = vrcp.pop %v2888
        %v2911 = vmul.f32 1.0, %v2910
        %v2912 = vrcp.pop %v2889
        %v2913 = vmul.f32 1.0, %v2912
        %v2914 = vrcp.pop %v2890
        %v2915 = vmul.f32 1.0, %v2914
        %v2916 = vrcp.pop %v2891
        %v2917 = vmul.f32 1.0, %v2916
        %v2918 = vrcp.pop %v2892
        %v2919 = vmul.f32 1.0, %v2918
        %v2920 = vrcp.pop %v2893
        %v2921 = vmul.f32 1.0, %v2920
        %v2922 = vrcp.pop %v2894
        %v2923 = vmul.f32 1.0, %v2922
        %v2924 = vrcp.pop %v2895
        %v2925 = vmul.f32 1.0, %v2924
        %v2926 = vrcp.pop %v2896
        %v2927 = vmul.f32 1.0, %v2926
        %v2928 = vrcp.pop %v2897
        %v2929 = vmul.f32 1.0, %v2928
        %v2930 = vmul.f32 %v2756, %v2899
        %v2931 = vmul.f32 %v2761, %v2901
        %v2932 = vmul.f32 %v2766, %v2903
        %v2933 = vmul.f32 %v2771, %v2905
        %v2934 = vmul.f32 %v2776, %v2907
        %v2935 = vmul.f32 %v2781, %v2909
        %v2936 = vmul.f32 %v2786, %v2911
        %v2937 = vmul.f32 %v2791, %v2913
        %v2938 = vmul.f32 %v2796, %v2915
        %v2939 = vmul.f32 %v2801, %v2917
        %v2940 = vmul.f32 %v2806, %v2919
        %v2941 = vmul.f32 %v2811, %v2921
        %v2942 = vmul.f32 %v2816, %v2923
        %v2943 = vmul.f32 %v2821, %v2925
        %v2944 = vmul.f32 %v2826, %v2927
        %v2945 = vmul.f32 %v2831, %v2929
        %v2946 = vld [vmem:[%s16] sm:$0x1]
        %v2948 = vlaneseq
        %v2949 = vshrl.u32 %v2948, 7
        %v2950 = vsub.s32 0, %v2949
        %v2951 = vrot.slane %v2946, %v2950
        %v2953 = vmul.f32 %v2930, %v2951
        %v2954 = vmul.f32 %v2931, %v2951
        %v2955 = vmul.f32 %v2932, %v2951
        %v2956 = vmul.f32 %v2933, %v2951
        %v2957 = vmul.f32 %v2934, %v2951
        %v2958 = vmul.f32 %v2935, %v2951
        %v2959 = vmul.f32 %v2936, %v2951
        %v2960 = vmul.f32 %v2937, %v2951
        %v2961 = vmul.f32 %v2938, %v2951
        %v2962 = vmul.f32 %v2939, %v2951
        %v2963 = vmul.f32 %v2940, %v2951
        %v2964 = vmul.f32 %v2941, %v2951
        %v2965 = vmul.f32 %v2942, %v2951
        %v2966 = vmul.f32 %v2943, %v2951
        %v2967 = vmul.f32 %v2944, %v2951
        %v2968 = vmul.f32 %v2945, %v2951
        %v2969 = vsel %vm2149, %v2953, 0.0
        %2970 = vadd.xlane.f32.xlu0 %v2969
        %v2971 = vpop.xlane.xlu0 %2970
        %v2972 = vsel %vm2149, %v2954, 0.0
        %2973 = vadd.xlane.f32.xlu0 %v2972
        %v2974 = vpop.xlane.xlu0 %2973
        %v2975 = vsel %vm2149, %v2955, 0.0
        %2976 = vadd.xlane.f32.xlu0 %v2975
        %v2977 = vpop.xlane.xlu0 %2976
        %v2978 = vsel %vm2149, %v2956, 0.0
        %2979 = vadd.xlane.f32.xlu0 %v2978
        %v2980 = vpop.xlane.xlu0 %2979
        %v2981 = vsel %vm2149, %v2957, 0.0
        %2982 = vadd.xlane.f32.xlu0 %v2981
        %v2983 = vpop.xlane.xlu0 %2982
        %v2984 = vsel %vm2149, %v2958, 0.0
        %2985 = vadd.xlane.f32.xlu0 %v2984
        %v2986 = vpop.xlane.xlu0 %2985
        %v2987 = vsel %vm2149, %v2959, 0.0
        %2988 = vadd.xlane.f32.xlu0 %v2987
        %v2989 = vpop.xlane.xlu0 %2988
        %v2990 = vsel %vm2149, %v2960, 0.0
        %2991 = vadd.xlane.f32.xlu0 %v2990
        %v2992 = vpop.xlane.xlu0 %2991
        %v2993 = vsel %vm2149, %v2961, 0.0
        %2994 = vadd.xlane.f32.xlu0 %v2993
        %v2995 = vpop.xlane.xlu0 %2994
        %v2996 = vsel %vm2149, %v2962, 0.0
        %2997 = vadd.xlane.f32.xlu0 %v2996
        %v2998 = vpop.xlane.xlu0 %2997
        %v2999 = vsel %vm2149, %v2963, 0.0
        %3000 = vadd.xlane.f32.xlu0 %v2999
        %v3001 = vpop.xlane.xlu0 %3000
        %v3002 = vsel %vm2149, %v2964, 0.0
        %3003 = vadd.xlane.f32.xlu0 %v3002
        %v3004 = vpop.xlane.xlu0 %3003
        %v3005 = vsel %vm2149, %v2965, 0.0
        %3006 = vadd.xlane.f32.xlu0 %v3005
        %v3007 = vpop.xlane.xlu0 %3006
        %v3008 = vsel %vm2149, %v2966, 0.0
        %3009 = vadd.xlane.f32.xlu0 %v3008
        %v3010 = vpop.xlane.xlu0 %3009
        %v3011 = vsel %vm2149, %v2967, 0.0
        %3012 = vadd.xlane.f32.xlu0 %v3011
        %v3013 = vpop.xlane.xlu0 %3012
        %v3014 = vsel %vm2149, %v2968, 0.0
        %3015 = vadd.xlane.f32.xlu0 %v3014
        %v3016 = vpop.xlane.xlu0 %3015
        %v3017 = vmul.f32 %v1382, %v2971
        %v3018 = vmul.f32 %v1383, %v2974
        %v3019 = vmul.f32 %v1384, %v2977
        %v3020 = vmul.f32 %v1385, %v2980
        %v3021 = vmul.f32 %v1386, %v2983
        %v3022 = vmul.f32 %v1387, %v2986
        %v3023 = vmul.f32 %v1388, %v2989
        %v3024 = vmul.f32 %v1389, %v2992
        %v3025 = vmul.f32 %v1390, %v2995
        %v3026 = vmul.f32 %v1391, %v2998
        %v3027 = vmul.f32 %v1392, %v3001
        %v3028 = vmul.f32 %v1393, %v3004
        %v3029 = vmul.f32 %v1394, %v3007
        %v3030 = vmul.f32 %v1395, %v3010
        %v3031 = vmul.f32 %v1396, %v3013
        %v3032 = vmul.f32 %v1397, %v3016
        %v3033 = vlaneseq
        %v3034 = vshrl.u32 %v3033, 7
        %v3035 = vadd.s32 %v3034, 8
        %v3036 = vld [vmem:[%s748] sm:$0x1]
        %v3037 = vlaneseq
        %v3038 = vshrl.u32 %v3037, 7
        %v3039 = vsub.s32 0, %v3038
        %v3040 = vrot.slane %v3036, %v3039
        %vm3041 = vcmp.eq.s32.totalorder %v3034, %v3040
        %vm3042 = vcmp.eq.s32.totalorder %v3035, %v3040
        %v3043 = vsel %vm3041, 1, 0
        %v3044 = vsel %vm3042, 1, 0
        %v3045 = vcvt.s32.f32 %v3043
        %v3046 = vcvt.s32.f32 %v3044
        %3063 = vrot.lane.b32.xlu0 %v3017, 20
        %v3064 = vpop.permute.xlu0 %3063
        %3065 = vrot.lane.b32.xlu0 %v3018, 20
        %v3066 = vpop.permute.xlu0 %3065
        %3067 = vrot.lane.b32.xlu0 %v3019, 20
        %v3068 = vpop.permute.xlu0 %3067
        %3069 = vrot.lane.b32.xlu0 %v3020, 20
        %v3070 = vpop.permute.xlu0 %3069
        %3071 = vrot.lane.b32.xlu0 %v3021, 20
        %v3072 = vpop.permute.xlu0 %3071
        %3073 = vrot.lane.b32.xlu0 %v3022, 20
        %v3074 = vpop.permute.xlu0 %3073
        %3075 = vrot.lane.b32.xlu0 %v3023, 20
        %v3076 = vpop.permute.xlu0 %3075
        %3077 = vrot.lane.b32.xlu0 %v3024, 20
        %v3078 = vpop.permute.xlu0 %3077
        %3079 = vrot.lane.b32.xlu0 %v3025, 20
        %v3080 = vpop.permute.xlu0 %3079
        %3081 = vrot.lane.b32.xlu0 %v3026, 20
        %v3082 = vpop.permute.xlu0 %3081
        %3083 = vrot.lane.b32.xlu0 %v3027, 20
        %v3084 = vpop.permute.xlu0 %3083
        %3085 = vrot.lane.b32.xlu0 %v3028, 20
        %v3086 = vpop.permute.xlu0 %3085
        %3087 = vrot.lane.b32.xlu0 %v3029, 20
        %v3088 = vpop.permute.xlu0 %3087
        %3089 = vrot.lane.b32.xlu0 %v3030, 20
        %v3090 = vpop.permute.xlu0 %3089
        %3091 = vrot.lane.b32.xlu0 %v3031, 20
        %v3092 = vpop.permute.xlu0 %3091
        %3093 = vrot.lane.b32.xlu0 %v3032, 20
        %v3094 = vpop.permute.xlu0 %3093
        %v3111 = vsel %vm2149, %v2614, %v3064
        %v3112 = vsel %vm2149, %v2615, %v3066
        %v3113 = vsel %vm2149, %v2616, %v3068
        %v3114 = vsel %vm2149, %v2617, %v3070
        %v3115 = vsel %vm2149, %v2618, %v3072
        %v3116 = vsel %vm2149, %v2619, %v3074
        %v3117 = vsel %vm2149, %v2620, %v3076
        %v3118 = vsel %vm2149, %v2621, %v3078
        %v3119 = vsel %vm2149, %v2622, %v3080
        %v3120 = vsel %vm2149, %v2623, %v3082
        %v3121 = vsel %vm2149, %v2624, %v3084
        %v3122 = vsel %vm2149, %v2625, %v3086
        %v3123 = vsel %vm2149, %v2626, %v3088
        %v3124 = vsel %vm2149, %v2627, %v3090
        %v3125 = vsel %vm2149, %v2628, %v3092
        %v3126 = vsel %vm2149, %v2629, %v3094
        %v3127 = vld [vmem:[#allocation2] sm:$0xff]
        %v3128 = vld [vmem:[#allocation2 + $0x8] sm:$0xf]
        %3129 = vmatprep.subr.mxu0 0.0
        %3130 = vmatpush1.msra.mxu0 %v3126
        %3131 = vmatprep.subr.mxu0 0.0
        %3132 = vmatpush1.msra.mxu0 %v3125
        %3133 = vmatprep.subr.mxu0 0.0
        %3134 = vmatpush1.msra.mxu0 %v3124
        %3135 = vmatprep.subr.mxu0 0.0
        %3136 = vmatpush1.msra.mxu0 %v3123
        %3137 = vmatprep.subr.mxu0 0.0
        %3138 = vmatpush1.msra.mxu0 %v3122
        %3139 = vmatprep.subr.mxu0 0.0
        %3140 = vmatpush1.msra.mxu0 %v3121
        %3141 = vmatprep.subr.mxu0 0.0
        %3142 = vmatpush1.msra.mxu0 %v3120
        %3143 = vmatprep.subr.mxu0 0.0
        %3144 = vmatpush1.msra.mxu0 %v3119
        %3145 = vmatprep.subr.mxu0 0.0
        %3146 = vmatpush1.msra.mxu0 %v3118
        %3147 = vmatprep.subr.mxu0 0.0
        %3148 = vmatpush1.msra.mxu0 %v3117
        %3149 = vmatprep.subr.mxu0 0.0
        %3150 = vmatpush1.msra.mxu0 %v3116
        %3151 = vmatprep.subr.mxu0 0.0
        %3152 = vmatpush1.msra.mxu0 %v3115
        %3153 = vmatprep.subr.mxu0 0.0
        %3154 = vmatpush1.msra.mxu0 %v3114
        %3155 = vmatprep.subr.mxu0 0.0
        %3156 = vmatpush1.msra.mxu0 %v3113
        %3157 = vmatprep.subr.mxu0 0.0
        %3158 = vmatpush1.msra.mxu0 %v3112
        %3159 = vmatprep.subr.mxu0 0.0
        %3160 = vmatpush1.msra.mxu0 %v3111
        %3161 = vmatprep.subr.mxu0 0.0
        %3162 = vmatpush2.msra.mxu0 0.0
        %3163 = vmatprep.subr.mxu0 0.0
        %3164 = vmatpush2.msra.mxu0 0.0
        %3165 = vmatprep.subr.mxu0 0.0
        %3166 = vmatpush2.msra.mxu0 0.0
        %3167 = vmatprep.subr.mxu0 0.0
        %3168 = vmatpush2.msra.mxu0 0.0
        %3169 = vmatprep.subr.mxu0 0.0
        %3170 = vmatpush2.msra.mxu0 0.0
        %3171 = vmatprep.subr.mxu0 0.0
        %3172 = vmatpush2.msra.mxu0 0.0
        %3173 = vmatprep.subr.mxu0 0.0
        %3174 = vmatpush2.msra.mxu0 0.0
        %3175 = vmatprep.subr.mxu0 0.0
        %3176 = vmatpush2.msra.mxu0 0.0
        %3177 = vmatprep.subr.mxu0 0.0
        %3178 = vmatpush2.msra.mxu0 0.0
        %3179 = vmatprep.subr.mxu0 0.0
        %3180 = vmatpush2.msra.mxu0 0.0
        %3181 = vmatprep.subr.mxu0 0.0
        %3182 = vmatpush2.msra.mxu0 0.0
        %3183 = vmatprep.subr.mxu0 0.0
        %3184 = vmatpush2.msra.mxu0 0.0
        %3185 = vmatprep.subr.mxu0 0.0
        %3186 = vmatpush2.msra.mxu0 0.0
        %3187 = vmatprep.subr.mxu0 0.0
        %3188 = vmatpush2.msra.mxu0 0.0
        %3189 = vmatprep.subr.mxu0 0.0
        %3190 = vmatpush2.msra.mxu0 0.0
        %3191 = vmatprep.subr.mxu0 0.0
        %3192 = vmatpush2.msra.mxu0 0.0
        %3193 = vmatprep.mubr.f32.mxu0 0.0
        %3194 = vmatmul.mubr.f32.gmra.mxu0 %v3045
        %v3195 = vpop.f32.mrf.mxu0
        %v3196 = vadd.f32 0.0, %v3195
        %v3197 = vpop.f32.mrf.mxu0
        %3198 = vmatprep.mubr.f32.mxu0 0.0
        %3199 = vmatmul.mubr.f32.gmra.mxu0 %v3046
        %v3200 = vpop.f32.mrf.mxu0
        %v3201 = vadd.f32 0.0, %v3200
        %v3202 = vpop.f32.mrf.mxu0
        %3203 = vdwg.mxu0
        %v3204 = vadd.f32 %v3127, %v3196
        %v3205 = vadd.f32 %v3128, %v3201
        %vm3206 = vcmask 285696
        %3207 = vst.msk [vmem:[#allocation2] sm:$0xff] %vm3206, %v3204
        %vm3208 = vcmask 281600
        %3209 = vst.msk [vmem:[#allocation2 + $0x8] sm:$0xf] %vm3208, %v3205
        %p3210 = scmp.eq.s32.totalorder %s36, 1
        // Predicated region
        $region113: #{egcl_forward.1} parent=107 // pred_check
          %p3211 = pneg %p3210
        $region114: #{egcl_forward.1} parent=107 // pred_check_branch
          %3213 = sbr.rel (%p3211) target = $region116
        $region115: #{egcl_forward.1} parent=107 // pred_region
          %v3214 = vld [vmem:[#allocation2] sm:$0xff]
          %v3215 = vld [vmem:[#allocation2 + $0x8] sm:$0xf]
          %v3216 = vld [vmem:[%s5] sm:$0xff]
          %v3217 = vld [vmem:[%s5 + $0x8] sm:$0xf]
          %3220 = vrot.lane.b32.xlu0 %v3214, 96
          %v3221 = vpop.permute.xlu0 %3220
          %3222 = vrot.lane.b32.xlu0 %v3215, 96
          %v3223 = vpop.permute.xlu0 %3222
          %v3226 = vadd.f32 %v3216, %v3221
          %v3227 = vadd.f32 %v3217, %v3223
          %vm3228 = vcmask 23552
          %3229 = vst.msk [vmem:[%s23] sm:$0xff] %vm3228, %v3226
          %vm3230 = vcmask 19456
          %3231 = vst.msk [vmem:[%s23 + $0x8] sm:$0xf] %vm3230, %v3227
          %v3232 = vld [vmem:[%s4] sm:$0xff]
          %v3233 = vld [vmem:[%s4 + $0x8] sm:$0xf]
          %v3234 = vld [vmem:[%s17] sm:$0xff]
          %v3235 = vld [vmem:[%s17 + $0x8] sm:$0xff]
          %v3236 = vld [vmem:[%s18] sm:$0xff]
          %v3237 = vld [vmem:[%s18 + $0x8] sm:$0xff]
          %v3238 = vld [vmem:[%s18 + $0x10] sm:$0xff]
          %v3239 = vld [vmem:[%s18 + $0x18] sm:$0xff]
          %v3240 = vsel %vm2149, %v3214, 0
          %v3242 = vsel %vm2149, %v3215, 0
          %3244 = vmatprep.subr.mxu0 0.0
          %3245 = vmatpush1.msra.mxu0 0.0
          %3246 = vmatprep.subr.mxu0 0.0
          %3247 = vmatpush1.msra.mxu0 0.0
          %3248 = vmatprep.subr.mxu0 0.0
          %3249 = vmatpush1.msra.mxu0 0.0
          %3250 = vmatprep.subr.mxu0 0.0
          %3251 = vmatpush1.msra.mxu0 0.0
          %3252 = vmatprep.subr.mxu0 0.0
          %3253 = vmatpush1.msra.mxu0 0.0
          %3254 = vmatprep.subr.mxu0 0.0
          %3255 = vmatpush1.msra.mxu0 0.0
          %3256 = vmatprep.subr.mxu0 0.0
          %3257 = vmatpush1.msra.mxu0 0.0
          %3258 = vmatprep.subr.mxu0 0.0
          %3259 = vmatpush1.msra.mxu0 0.0
          %3260 = vmatprep.subr.mxu0 0.0
          %3261 = vmatpush1.msra.mxu0 0.0
          %3262 = vmatprep.subr.mxu0 0.0
          %3263 = vmatpush1.msra.mxu0 0.0
          %3264 = vmatprep.subr.mxu0 0.0
          %3265 = vmatpush1.msra.mxu0 0.0
          %3266 = vmatprep.subr.mxu0 0.0
          %3267 = vmatpush1.msra.mxu0 0.0
          %3268 = vmatprep.subr.mxu0 0.0
          %3269 = vmatpush1.msra.mxu0 %v3239
          %3270 = vmatprep.subr.mxu0 0.0
          %3271 = vmatpush1.msra.mxu0 %v3238
          %3272 = vmatprep.subr.mxu0 0.0
          %3273 = vmatpush1.msra.mxu0 %v3237
          %3274 = vmatprep.subr.mxu0 0.0
          %3275 = vmatpush1.msra.mxu0 %v3236
          %3276 = vmatprep.subr.mxu0 0.0
          %3277 = vmatpush2.msra.mxu0 0.0
          %3278 = vmatprep.subr.mxu0 0.0
          %3279 = vmatpush2.msra.mxu0 0.0
          %3280 = vmatprep.subr.mxu0 0.0
          %3281 = vmatpush2.msra.mxu0 0.0
          %3282 = vmatprep.subr.mxu0 0.0
          %3283 = vmatpush2.msra.mxu0 0.0
          %3284 = vmatprep.subr.mxu0 0.0
          %3285 = vmatpush2.msra.mxu0 0.0
          %3286 = vmatprep.subr.mxu0 0.0
          %3287 = vmatpush2.msra.mxu0 0.0
          %3288 = vmatprep.subr.mxu0 0.0
          %3289 = vmatpush2.msra.mxu0 0.0
          %3290 = vmatprep.subr.mxu0 0.0
          %3291 = vmatpush2.msra.mxu0 0.0
          %3292 = vmatprep.subr.mxu0 0.0
          %3293 = vmatpush2.msra.mxu0 0.0
          %3294 = vmatprep.subr.mxu0 0.0
          %3295 = vmatpush2.msra.mxu0 0.0
          %3296 = vmatprep.subr.mxu0 0.0
          %3297 = vmatpush2.msra.mxu0 0.0
          %3298 = vmatprep.subr.mxu0 0.0
          %3299 = vmatpush2.msra.mxu0 0.0
          %3300 = vmatprep.subr.mxu0 0.0
          %3301 = vmatpush2.msra.mxu0 0.0
          %3302 = vmatprep.subr.mxu0 0.0
          %3303 = vmatpush2.msra.mxu0 0.0
          %3304 = vmatprep.subr.mxu0 0.0
          %3305 = vmatpush2.msra.mxu0 0.0
          %3306 = vmatprep.subr.mxu0 0.0
          %3307 = vmatpush2.msra.mxu0 0.0
          %3308 = vmatprep.mubr.f32.mxu0 0.0
          %3309 = vmatmul.mubr.f32.gmra.mxu0 %v3240
          %v3310 = vpop.f32.mrf.mxu0
          %v3311 = vadd.f32 0.0, %v3310
          %v3312 = vpop.f32.mrf.mxu0
          %3313 = vmatprep.mubr.f32.mxu0 0.0
          %3314 = vmatmul.mubr.f32.gmra.mxu0 %v3242
          %v3315 = vpop.f32.mrf.mxu0
          %v3316 = vadd.f32 0.0, %v3315
          %v3317 = vpop.f32.mrf.mxu0
          %3318 = vdwg.mxu0
          %v3320 = vsel %vm1402, %v3232, 0
          %v3323 = vsel %vm1402, %v3233, 0
          %3325 = vmatprep.subr.mxu0 0.0
          %3326 = vmatpush1.msra.mxu0 0.0
          %3327 = vmatprep.subr.mxu0 0.0
          %3328 = vmatpush1.msra.mxu0 0.0
          %3329 = vmatprep.subr.mxu0 0.0
          %3330 = vmatpush1.msra.mxu0 0.0
          %3331 = vmatprep.subr.mxu0 0.0
          %3332 = vmatpush1.msra.mxu0 0.0
          %3333 = vmatprep.subr.mxu0 0.0
          %3334 = vmatpush1.msra.mxu0 0.0
          %3335 = vmatprep.subr.mxu0 0.0
          %3336 = vmatpush1.msra.mxu0 0.0
          %3337 = vmatprep.subr.mxu0 0.0
          %3338 = vmatpush1.msra.mxu0 0.0
          %3339 = vmatprep.subr.mxu0 0.0
          %3340 = vmatpush1.msra.mxu0 0.0
          %3341 = vmatprep.subr.mxu0 0.0
          %3342 = vmatpush1.msra.mxu0 0.0
          %3343 = vmatprep.subr.mxu0 0.0
          %3344 = vmatpush1.msra.mxu0 0.0
          %3345 = vmatprep.subr.mxu0 0.0
          %3346 = vmatpush1.msra.mxu0 0.0
          %3347 = vmatprep.subr.mxu0 0.0
          %3348 = vmatpush1.msra.mxu0 0.0
          %3349 = vmatprep.subr.mxu0 0.0
          %3350 = vmatpush1.msra.mxu0 0.0
          %3351 = vmatprep.subr.mxu0 0.0
          %3352 = vmatpush1.msra.mxu0 0.0
          %3353 = vmatprep.subr.mxu0 0.0
          %3354 = vmatpush1.msra.mxu0 %v3235
          %3355 = vmatprep.subr.mxu0 0.0
          %3356 = vmatpush1.msra.mxu0 %v3234
          %3357 = vmatprep.subr.mxu0 0.0
          %3358 = vmatpush2.msra.mxu0 0.0
          %3359 = vmatprep.subr.mxu0 0.0
          %3360 = vmatpush2.msra.mxu0 0.0
          %3361 = vmatprep.subr.mxu0 0.0
          %3362 = vmatpush2.msra.mxu0 0.0
          %3363 = vmatprep.subr.mxu0 0.0
          %3364 = vmatpush2.msra.mxu0 0.0
          %3365 = vmatprep.subr.mxu0 0.0
          %3366 = vmatpush2.msra.mxu0 0.0
          %3367 = vmatprep.subr.mxu0 0.0
          %3368 = vmatpush2.msra.mxu0 0.0
          %3369 = vmatprep.subr.mxu0 0.0
          %3370 = vmatpush2.msra.mxu0 0.0
          %3371 = vmatprep.subr.mxu0 0.0
          %3372 = vmatpush2.msra.mxu0 0.0
          %3373 = vmatprep.subr.mxu0 0.0
          %3374 = vmatpush2.msra.mxu0 0.0
          %3375 = vmatprep.subr.mxu0 0.0
          %3376 = vmatpush2.msra.mxu0 0.0
          %3377 = vmatprep.subr.mxu0 0.0
          %3378 = vmatpush2.msra.mxu0 0.0
          %3379 = vmatprep.subr.mxu0 0.0
          %3380 = vmatpush2.msra.mxu0 0.0
          %3381 = vmatprep.subr.mxu0 0.0
          %3382 = vmatpush2.msra.mxu0 0.0
          %3383 = vmatprep.subr.mxu0 0.0
          %3384 = vmatpush2.msra.mxu0 0.0
          %3385 = vmatprep.subr.mxu0 0.0
          %3386 = vmatpush2.msra.mxu0 0.0
          %3387 = vmatprep.subr.mxu0 0.0
          %3388 = vmatpush2.msra.mxu0 0.0
          %3389 = vmatprep.mubr.f32.mxu0 0.0
          %3390 = vmatmul.mubr.f32.gmra.mxu0 %v3320
          %v3391 = vpop.f32.mrf.mxu0
          %v3392 = vadd.f32 %v3311, %v3391
          %v3393 = vpop.f32.mrf.mxu0
          %3394 = vmatprep.mubr.f32.mxu0 0.0
          %3395 = vmatmul.mubr.f32.gmra.mxu0 %v3323
          %v3396 = vpop.f32.mrf.mxu0
          %v3397 = vadd.f32 %v3316, %v3396
          %v3398 = vpop.f32.mrf.mxu0
          %3399 = vdwg.mxu0
          %v3400 = vld [vmem:[%s19] sm:$0x1]
          %v3402 = vlaneseq
          %v3403 = vshrl.u32 %v3402, 7
          %v3404 = vsub.s32 0, %v3403
          %v3405 = vrot.slane %v3400, %v3404
          %v3407 = vadd.f32 %v3392, %v3405
          %v3408 = vadd.f32 %v3397, %v3405
          %v3409 = vxor.u32 %v3407, 2147483648
          %v3410 = vxor.u32 %v3408, 2147483648
          %v3411 = vmul.f32 %v3409, 1.442695
          %v3412 = vpow.pop %v3411
          %v3413 = vmul.f32 %v3410, 1.442695
          %v3414 = vpow.pop %v3413
          %v3415 = vadd.f32 %v3412, 1.0
          %v3416 = vadd.f32 %v3414, 1.0
          %v3417 = vrcp.pop %v3415
          %v3418 = vmul.f32 1.0, %v3417
          %v3419 = vrcp.pop %v3416
          %v3420 = vmul.f32 1.0, %v3419
          %v3421 = vmul.f32 %v3407, %v3418
          %v3422 = vmul.f32 %v3408, %v3420
          %v3423 = vld [vmem:[%s20] sm:$0xff]
          %v3424 = vld [vmem:[%s20 + $0x8] sm:$0xff]
          %v3425 = vld [vmem:[%s20 + $0x10] sm:$0xff]
          %v3426 = vld [vmem:[%s20 + $0x18] sm:$0xff]
          %v3427 = vld [vmem:[%s21] sm:$0x1]
          %v3429 = vlaneseq
          %v3430 = vshrl.u32 %v3429, 7
          %v3431 = vsub.s32 0, %v3430
          %v3432 = vrot.slane %v3427, %v3431
          %v3435 = vsel %vm2149, %v3421, 0
          %v3438 = vsel %vm2149, %v3422, 0
          %3440 = vmatprep.subr.mxu0 0.0
          %3441 = vmatpush1.msra.mxu0 0.0
          %3442 = vmatprep.subr.mxu0 0.0
          %3443 = vmatpush1.msra.mxu0 0.0
          %3444 = vmatprep.subr.mxu0 0.0
          %3445 = vmatpush1.msra.mxu0 0.0
          %3446 = vmatprep.subr.mxu0 0.0
          %3447 = vmatpush1.msra.mxu0 0.0
          %3448 = vmatprep.subr.mxu0 0.0
          %3449 = vmatpush1.msra.mxu0 0.0
          %3450 = vmatprep.subr.mxu0 0.0
          %3451 = vmatpush1.msra.mxu0 0.0
          %3452 = vmatprep.subr.mxu0 0.0
          %3453 = vmatpush1.msra.mxu0 0.0
          %3454 = vmatprep.subr.mxu0 0.0
          %3455 = vmatpush1.msra.mxu0 0.0
          %3456 = vmatprep.subr.mxu0 0.0
          %3457 = vmatpush1.msra.mxu0 0.0
          %3458 = vmatprep.subr.mxu0 0.0
          %3459 = vmatpush1.msra.mxu0 0.0
          %3460 = vmatprep.subr.mxu0 0.0
          %3461 = vmatpush1.msra.mxu0 0.0
          %3462 = vmatprep.subr.mxu0 0.0
          %3463 = vmatpush1.msra.mxu0 0.0
          %3464 = vmatprep.subr.mxu0 0.0
          %3465 = vmatpush1.msra.mxu0 %v3426
          %3466 = vmatprep.subr.mxu0 0.0
          %3467 = vmatpush1.msra.mxu0 %v3425
          %3468 = vmatprep.subr.mxu0 0.0
          %3469 = vmatpush1.msra.mxu0 %v3424
          %3470 = vmatprep.subr.mxu0 0.0
          %3471 = vmatpush1.msra.mxu0 %v3423
          %3472 = vmatprep.subr.mxu0 0.0
          %3473 = vmatpush2.msra.mxu0 0.0
          %3474 = vmatprep.subr.mxu0 0.0
          %3475 = vmatpush2.msra.mxu0 0.0
          %3476 = vmatprep.subr.mxu0 0.0
          %3477 = vmatpush2.msra.mxu0 0.0
          %3478 = vmatprep.subr.mxu0 0.0
          %3479 = vmatpush2.msra.mxu0 0.0
          %3480 = vmatprep.subr.mxu0 0.0
          %3481 = vmatpush2.msra.mxu0 0.0
          %3482 = vmatprep.subr.mxu0 0.0
          %3483 = vmatpush2.msra.mxu0 0.0
          %3484 = vmatprep.subr.mxu0 0.0
          %3485 = vmatpush2.msra.mxu0 0.0
          %3486 = vmatprep.subr.mxu0 0.0
          %3487 = vmatpush2.msra.mxu0 0.0
          %3488 = vmatprep.subr.mxu0 0.0
          %3489 = vmatpush2.msra.mxu0 0.0
          %3490 = vmatprep.subr.mxu0 0.0
          %3491 = vmatpush2.msra.mxu0 0.0
          %3492 = vmatprep.subr.mxu0 0.0
          %3493 = vmatpush2.msra.mxu0 0.0
          %3494 = vmatprep.subr.mxu0 0.0
          %3495 = vmatpush2.msra.mxu0 0.0
          %3496 = vmatprep.subr.mxu0 0.0
          %3497 = vmatpush2.msra.mxu0 0.0
          %3498 = vmatprep.subr.mxu0 0.0
          %3499 = vmatpush2.msra.mxu0 0.0
          %3500 = vmatprep.subr.mxu0 0.0
          %3501 = vmatpush2.msra.mxu0 0.0
          %3502 = vmatprep.subr.mxu0 0.0
          %3503 = vmatpush2.msra.mxu0 0.0
          %3504 = vmatprep.mubr.f32.mxu0 0.0
          %3505 = vmatmul.mubr.f32.gmra.mxu0 %v3435
          %v3506 = vpop.f32.mrf.mxu0
          %v3507 = vadd.f32 %v3432, %v3506
          %v3508 = vpop.f32.mrf.mxu0
          %3509 = vmatprep.mubr.f32.mxu0 0.0
          %3510 = vmatmul.mubr.f32.gmra.mxu0 %v3438
          %v3511 = vpop.f32.mrf.mxu0
          %v3512 = vadd.f32 %v3432, %v3511
          %v3513 = vpop.f32.mrf.mxu0
          %3514 = vdwg.mxu0
          %v3515 = vadd.f32 %v3232, %v3507
          %v3516 = vadd.f32 %v3233, %v3512
          %3517 = vst.msk [vmem:[#allocation3] sm:$0xff] %vm1402, %v3515
          %vm3518 = vcmask 125952
          %3519 = vst.msk [vmem:[#allocation3 + $0x8] sm:$0xf] %vm3518, %v3516
        $region116: #{egcl_forward.1} parent=107 // pred_fallthru
          _
        // Predicated region
        $region117: #{egcl_forward.1} parent=107 // pred_check
          %p3520 = pneg %p531
        $region118: #{egcl_forward.1} parent=107 // pred_check_branch
          %3522 = sbr.rel (%p3520) target = $region120
        $region119: #{egcl_forward.1} parent=107 // pred_region
          %s3524 = ssub.s32 256, 256
          %3525 = vsyncadd [#allocation4], %s3524
          %s3526 = sshll.u32 [#allocation3], 4
          %s3527 = int_to_ptr.vmem [resolvable:$true] %s3526
          %3532 = dma.vmem_to_hbm [thread:$0]  %s3527, 256, %s22, [#allocation4], 128, 128, 8
        $region120: #{egcl_forward.1} parent=107 // pred_fallthru
          _
        // Predicated region
        $region121: #{egcl_forward.1} parent=107 // pred_check
          %p3533 = pneg %p552
        $region122: #{egcl_forward.1} parent=107 // pred_check_branch
          %3535 = sbr.rel (%p3533) target = $region124
        $region123: #{egcl_forward.1} parent=107 // pred_region
          _
        $region124: #{egcl_forward.1} parent=107 // pred_fallthru
          _
        // Predicated region
        $region125: #{egcl_forward.1} parent=107 // pred_check
          %p3536 = pneg %p531
        $region126: #{egcl_forward.1} parent=107 // pred_check_branch
          %3538 = sbr.rel (%p3536) target = $region128
        $region127: #{egcl_forward.1} parent=107 // pred_region
          %3539 = dma.done [#allocation4], 256
        $region128: #{egcl_forward.1} parent=107 // pred_fallthru
          _
        // Predicated region
        $region129: #{egcl_forward.1} parent=107 // pred_check
          %p3540 = pneg %p552
        $region130: #{egcl_forward.1} parent=107 // pred_check_branch
          %3542 = sbr.rel (%p3540) target = $region132
        $region131: #{egcl_forward.1} parent=107 // pred_region
          _
        $region132: #{egcl_forward.1} parent=107 // pred_fallthru
          _
      $region108: #{egcl_forward.1} parent=5 // pred_fallthru
        _
      %p3543 = scmp.le.s32.totalorder 2, %s31
      // Predicated region
      $region133: #{egcl_forward.1} parent=5 // pred_check
        %p3544 = pneg %p3543
      $region134: #{egcl_forward.1} parent=5 // pred_check_branch
        %3546 = sbr.rel (%p3544) target = $region136
      $region135: #{egcl_forward.1} parent=5 // pred_region
        %s3547 = ssub.s32 %s31, 2
      $region136: #{egcl_forward.1} parent=5 // pred_fallthru
        _
    $region6: #{egcl_forward.1} parent=1 // loop_footer
      %s35 = sadd.s32 1, %s31
    $region7: #{egcl_forward.1} parent=1 // loop_footer_branch
      %30 = sbr.rel target = $region3
    $region8: #{egcl_forward.1} parent=1 // loop_exit
      _
    %3548 = vsyncpa [#allocation4], 1
    %s3549 = scalar_lea.sflag [#allocation4], 1
    %3550 = vsyncpa %s3549, 1

</llo_original>
